<compile_context>
chip_gen: v7x
topology: tpu7x:2x2x1
jax: 0.10.0
libtpu: 0.0.40
codegen_flags: <defaults>
</compile_context>

<pallas_src>
import functools

import jax
import jax.numpy as jnp
import numpy as np
from jax import lax
from jax.experimental import pallas as pl
from jax.experimental.pallas import tpu as pltpu


# ----------------------------------------------------------------------------
# Kernel 1: fused q/k/v projection + BatchNorm statistics -> per-channel affine
# ----------------------------------------------------------------------------
def _proj_kernel(x_ref, w_ref, gq_ref, bq_ref, gv_ref, bv_ref,
                 q_ref, k_ref, v_ref, qs_ref, qb_ref, vs_ref, vb_ref,
                 qsum, qsq, vsum, vsq, *, co_q, co_k, batch, eps):
    ib = pl.program_id(0)
    n = x_ref.shape[-1]

    @pl.when(ib == 0)
    def _():
        qsum[...] = jnp.zeros_like(qsum)
        qsq[...] = jnp.zeros_like(qsq)
        vsum[...] = jnp.zeros_like(vsum)
        vsq[...] = jnp.zeros_like(vsq)

    # One fused projection matmul per batch element: (co_q+co_k+co_v, c)@(c, N).
    out = jnp.dot(w_ref[...], x_ref[0], preferred_element_type=jnp.float32)
    q_b = out[:co_q]
    k_b = out[co_q:co_q + co_k]
    v_b = out[co_q + co_k:]
    q_ref[0] = q_b.astype(q_ref.dtype)          # bf16 intermediates to HBM
    k_ref[0] = k_b.astype(k_ref.dtype)
    v_ref[0] = v_b.astype(v_ref.dtype)

    # BatchNorm2d (training mode) partial sums, accumulated across the batch grid.
    qsum[...] += jnp.sum(q_b, axis=1, keepdims=True)
    qsq[...] += jnp.sum(q_b * q_b, axis=1, keepdims=True)
    vsum[...] += jnp.sum(v_b, axis=1, keepdims=True)
    vsq[...] += jnp.sum(v_b * v_b, axis=1, keepdims=True)

    @pl.when(ib == batch - 1)
    def _():
        # NOTE: E[x^2]-E[x]^2 in f32 is cancellation-prone for very large b*N
        # with un-centered activations; fine at these scales / tolerances.
        inv = 1.0 / float(batch * n)
        q_mean = qsum[...] * inv
        q_var = qsq[...] * inv - q_mean * q_mean
        q_scale = gq_ref[...] * lax.rsqrt(q_var + eps)
        qs_ref[...] = q_scale
        qb_ref[...] = bq_ref[...] - q_mean * q_scale

        v_mean = vsum[...] * inv
        v_var = vsq[...] * inv - v_mean * v_mean
        v_scale = gv_ref[...] * lax.rsqrt(v_var + eps)
        vs_ref[...] = v_scale
        vb_ref[...] = bv_ref[...] - v_mean * v_scale


def _project(x_flat, w_all, gq, bq, gv, bv, co_q, co_k, co_v):
    b, c, N = x_flat.shape
    co_total = co_q + co_k + co_v
    kernel = functools.partial(_proj_kernel, co_q=co_q, co_k=co_k,
                               batch=b, eps=1e-5)
    out_shape = (
        jax.ShapeDtypeStruct((b, co_q, N), jnp.bfloat16),
        jax.ShapeDtypeStruct((b, co_k, N), jnp.bfloat16),
        jax.ShapeDtypeStruct((b, co_v, N), jnp.bfloat16),
        jax.ShapeDtypeStruct((co_q, 1), jnp.float32),   # q scale
        jax.ShapeDtypeStruct((co_q, 1), jnp.float32),   # q shift
        jax.ShapeDtypeStruct((co_v, 1), jnp.float32),   # v scale
        jax.ShapeDtypeStruct((co_v, 1), jnp.float32),   # v shift
    )
    return pl.pallas_call(
        kernel,
        out_shape=out_shape,
        grid=(b,),
        in_specs=[
            pl.BlockSpec((1, c, N), lambda i: (i, 0, 0)),
            pl.BlockSpec((co_total, c), lambda i: (0, 0)),
            pl.BlockSpec((co_q, 1), lambda i: (0, 0)),
            pl.BlockSpec((co_q, 1), lambda i: (0, 0)),
            pl.BlockSpec((co_v, 1), lambda i: (0, 0)),
            pl.BlockSpec((co_v, 1), lambda i: (0, 0)),
        ],
        out_specs=(
            pl.BlockSpec((1, co_q, N), lambda i: (i, 0, 0)),
            pl.BlockSpec((1, co_k, N), lambda i: (i, 0, 0)),
            pl.BlockSpec((1, co_v, N), lambda i: (i, 0, 0)),
            pl.BlockSpec((co_q, 1), lambda i: (0, 0)),
            pl.BlockSpec((co_q, 1), lambda i: (0, 0)),
            pl.BlockSpec((co_v, 1), lambda i: (0, 0)),
            pl.BlockSpec((co_v, 1), lambda i: (0, 0)),
        ),
        scratch_shapes=[
            pltpu.VMEM((co_q, 1), jnp.float32),
            pltpu.VMEM((co_q, 1), jnp.float32),
            pltpu.VMEM((co_v, 1), jnp.float32),
            pltpu.VMEM((co_v, 1), jnp.float32),
        ],
        # Batch axis carries the BN-stat reduction -> must stay sequential.
        compiler_params=pltpu.CompilerParams(dimension_semantics=("arbitrary",)),
    )(x_flat, w_all, gq, bq, gv, bv)


# ----------------------------------------------------------------------------
# Kernel 2: softmax(k), lambda_c (cached), lambda_p (n-tiled), Y = Yc + Yp
# ----------------------------------------------------------------------------
def _lambda_kernel(q_ref, k_ref, v_ref, qs_ref, qb_ref, vs_ref, vb_ref, emb_ref,
                   o_ref, lamc_ref, *, heads, dim_k, dim_v, dim_u):
    j = pl.program_id(0)       # query-tile index (outer grid axis)
    ib = pl.program_id(1)      # batch index     (inner grid axis)
    tn = q_ref.shape[-1]

    # BatchNorm affine (from kernel 1) applied on load -- no HBM round trip.
    vn = v_ref[0].astype(jnp.float32) * vs_ref[...] + vb_ref[...]   # (u*dv, M)
    vn_bf = vn.astype(jnp.bfloat16)

    # softmax(k) + lambda_c: computed once per batch (first n-tile), cached.
    @pl.when(j == 0)
    def _():
        kr = k_ref[0].astype(jnp.float32)                            # (u*dk, M)
        kmax = jnp.max(kr, axis=-1, keepdims=True)
        kexp = jnp.exp(kr - kmax)
        ksm = kexp * pl.reciprocal(jnp.sum(kexp, axis=-1, keepdims=True),
                                   approx=True)
        ksm_bf = ksm.astype(jnp.bfloat16)
        lam_c = jnp.zeros((dim_v, dim_k), jnp.float32)
        for iu in range(dim_u):
            lam_c = lam_c + jnp.einsum(
                "vm,km->vk",
                vn_bf[iu * dim_v:(iu + 1) * dim_v],
                ksm_bf[iu * dim_k:(iu + 1) * dim_k],
                preferred_element_type=jnp.float32)
        lamc_ref[ib] = lam_c

    lam_c = lamc_ref[ib]                                             # (dv, dk)

    qn = q_ref[0].astype(jnp.float32) * qs_ref[...] + qb_ref[...]    # (h*dk, TN)

    # Y[h, v, n] = sum_k q[h, k, n] * (lam_c[v, k] + lam_p[v, k, n])
    # lam_p per k: natural (dv, M) @ (M, TN) MXU matmul (emb layout (u,k,m,n)),
    # then a VPU k-accumulation into per-head (dv, TN) f32 accumulators.
    accs = [jnp.zeros((dim_v, tn), jnp.float32) for _ in range(heads)]
    for kk in range(dim_k):
        lam_k = jnp.zeros((dim_v, tn), jnp.float32)
        for iu in range(dim_u):
            lam_k = lam_k + jnp.dot(vn_bf[iu * dim_v:(iu + 1) * dim_v],
                                    emb_ref[iu, kk],
                                    preferred_element_type=jnp.float32)
        lam_k = lam_k + lam_c[:, kk:kk + 1]      # fuse Yc into Yp (bcast over n)
        for h in range(heads):
            q_row = qn[h * dim_k + kk:h * dim_k + kk + 1, :]         # (1, TN)
            accs[h] = accs[h] + q_row * lam_k

    for h in range(heads):
        o_ref[0, h * dim_v:(h + 1) * dim_v, :] = accs[h].astype(o_ref.dtype)


def _lambda_attend(q, k, v, qs, qb, vs, vb, emb_t, *,
                   heads, dim_k, dim_v, dim_u, tn):
    b, co_q, N = q.shape
    co_k = k.shape[1]
    co_v = v.shape[1]
    assert N % tn == 0
    n_tiles = N // tn
    kernel = functools.partial(_lambda_kernel, heads=heads, dim_k=dim_k,
                               dim_v=dim_v, dim_u=dim_u)
    return pl.pallas_call(
        kernel,
        out_shape=jax.ShapeDtypeStruct((b, heads * dim_v, N), jnp.float32),
        # n-tile OUTER, batch INNER: each emb tile is DMA'd once and reused
        # across all batches (emb is the dominant HBM stream).
        grid=(n_tiles, b),
        in_specs=[
            pl.BlockSpec((1, co_q, tn), lambda j, ib: (ib, 0, j)),
            pl.BlockSpec((1, co_k, N), lambda j, ib: (ib, 0, 0)),
            pl.BlockSpec((1, co_v, N), lambda j, ib: (ib, 0, 0)),
            pl.BlockSpec((co_q, 1), lambda j, ib: (0, 0)),
            pl.BlockSpec((co_q, 1), lambda j, ib: (0, 0)),
            pl.BlockSpec((co_v, 1), lambda j, ib: (0, 0)),
            pl.BlockSpec((co_v, 1), lambda j, ib: (0, 0)),
            pl.BlockSpec((dim_u, dim_k, N, tn), lambda j, ib: (0, 0, 0, j)),
        ],
        out_specs=pl.BlockSpec((1, heads * dim_v, tn),
                               lambda j, ib: (ib, 0, j)),
        scratch_shapes=[pltpu.VMEM((b, dim_v, dim_k), jnp.float32)],
        # n-tile axis must stay "arbitrary" (lambda_c cache relies on j==0
        # running on the same core); batch axis is safe to parallelize.
        compiler_params=pltpu.CompilerParams(
            dimension_semantics=("arbitrary", "parallel")),
    )(q, k, v, qs, qb, vs, vb, emb_t)


# ----------------------------------------------------------------------------
# Wrapper / glue
# ----------------------------------------------------------------------------
def calc_rel_pos(n):
    pos = jnp.stack(jnp.meshgrid(jnp.arange(n), jnp.arange(n), indexing="ij"))
    pos = pos.reshape(2, -1).T                           # (n*n, 2)
    rel_pos = pos[None, :, :] - pos[:, None, :]
    return rel_pos + (n - 1)


def precompute_rel_pos_emb(rel_pos_emb, n):
    # Input-independent gather + relayout (hoisted out of the forward pass).
    # Layout (u, k, m, n): context m on sublanes, query n on lanes -> in-kernel
    # lam_p contractions are natural MXU matmuls with no transposes; bf16 halves
    # the dominant HBM stream and the VMEM footprint of each tile.
    rel_pos = calc_rel_pos(n)
    emb = rel_pos_emb[rel_pos[:, :, 0], rel_pos[:, :, 1]]   # (n*n, n*n, k, u)
    return jnp.transpose(emb, (3, 2, 1, 0)).astype(jnp.bfloat16)


def lambda_layer_forward(x, params, emb_t, *, heads, dim_k, dim_u, tn=128):
    b, c, hh, ww = x.shape
    N = hh * ww
    x_flat = x.reshape(b, c, N).astype(jnp.float32)

    wq, wk, wv = params["wq"], params["wk"], params["wv"]
    co_q, co_k, co_v = wq.shape[0], wk.shape[0], wv.shape[0]
    dim_v = co_v // dim_u
    w_all = jnp.concatenate([wq, wk, wv], axis=0).astype(jnp.float32)

    gq = params["gamma_q"].reshape(co_q, 1).astype(jnp.float32)
    bq = params["beta_q"].reshape(co_q, 1).astype(jnp.float32)
    gv = params["gamma_v"].reshape(co_v, 1).astype(jnp.float32)
    bv = params["beta_v"].reshape(co_v, 1).astype(jnp.float32)

    q, k, v, qs, qb, vs, vb = _project(x_flat, w_all, gq, bq, gv, bv,
                                       co_q, co_k, co_v)

    # Query-tile size: multiple of 128 for lane-dense stores / DMA; fall back to
    # a single tile when N is not a multiple (TODO(synk): pad small/odd N).
    TN = tn if (N % tn == 0) else N

    y = _lambda_attend(q, k, v, qs, qb, vs, vb, emb_t,
                       heads=heads, dim_k=dim_k, dim_v=dim_v, dim_u=dim_u,
                       tn=TN)
    return y.reshape(b, heads * dim_v, hh, ww)           # free reshape


# ----------------------------------------------------------------------------
# Pure-JAX reference (mirrors the PyTorch forward) for validation
# ----------------------------------------------------------------------------
HIGHEST = lax.Precision.HIGHEST


def _batchnorm_train(x, gamma, beta, eps=1e-5):
    mean = jnp.mean(x, axis=(0, 2), keepdims=True)
    var = jnp.mean(jnp.square(x - mean), axis=(0, 2), keepdims=True)
    return (x - mean) / jnp.sqrt(var + eps) * gamma[None, :, None] \
        + beta[None, :, None]


def reference_forward(x, params, *, heads, dim_k, dim_u):
    b, c, hh, ww = x.shape
    N = hh * ww
    xf = x.reshape(b, c, N)
    q = jnp.einsum("oc,bcn->bon", params["wq"], xf, precision=HIGHEST)
    k = jnp.einsum("oc,bcn->bon", params["wk"], xf, precision=HIGHEST)
    v = jnp.einsum("oc,bcn->bon", params["wv"], xf, precision=HIGHEST)
    q = _batchnorm_train(q, params["gamma_q"], params["beta_q"])
    v = _batchnorm_train(v, params["gamma_v"], params["beta_v"])
    dim_v = params["wv"].shape[0] // dim_u
    q = q.reshape(b, heads, dim_k, N)
    k = k.reshape(b, dim_u, dim_k, N)
    v = v.reshape(b, dim_u, dim_v, N)
    k = jax.nn.softmax(k, axis=-1)
    lam_c = jnp.einsum("bukm,buvm->bkv", k, v, precision=HIGHEST)
    y_c = jnp.einsum("bhkn,bkv->bhvn", q, lam_c, precision=HIGHEST)
    rel_pos = calc_rel_pos(hh)
    emb = params["rel_pos_emb"][rel_pos[:, :, 0], rel_pos[:, :, 1]]
    lam_p = jnp.einsum("nmku,buvm->bnkv", emb, v, precision=HIGHEST)
    y_p = jnp.einsum("bhkn,bnkv->bhvn", q, lam_p, precision=HIGHEST)
    y = y_c + y_p
    return y.reshape(b, heads * dim_v, hh, ww)


# ----------------------------------------------------------------------------
if __name__ == "__main__":
    # Small but tiling-exercising shapes: N = 16*16 = 256 -> two 128-wide tiles.
    b, dim, n = 2, 32, 16
    heads, dim_k, dim_u = 4, 16, 1
    dim_out = dim
    dim_v = dim_out // heads

    key = jax.random.PRNGKey(0)
    ks = jax.random.split(key, 9)
    params = {
        "wq": 0.1 * jax.random.normal(ks[0], (dim_k * heads, dim), jnp.float32),
        "wk": 0.1 * jax.random.normal(ks[1], (dim_k * dim_u, dim), jnp.float32),
        "wv": 0.1 * jax.random.normal(ks[2], (dim_v * dim_u, dim), jnp.float32),
        "gamma_q": 1.0 + 0.1 * jax.random.normal(ks[3], (dim_k * heads,), jnp.float32),
        "beta_q": 0.1 * jax.random.normal(ks[4], (dim_k * heads,), jnp.float32),
        "gamma_v": 1.0 + 0.1 * jax.random.normal(ks[5], (dim_v * dim_u,), jnp.float32),
        "beta_v": 0.1 * jax.random.normal(ks[6], (dim_v * dim_u,), jnp.float32),
        "rel_pos_emb": jax.random.normal(
            ks[7], (2 * n - 1, 2 * n - 1, dim_k, dim_u), jnp.float32),
    }
    x = jax.random.normal(ks[8], (b, dim, n, n), jnp.float32)

    # Rel-pos embedding gather/relayout is input-independent: computed once.
    emb_t = precompute_rel_pos_emb(params["rel_pos_emb"], n)

    fwd = jax.jit(functools.partial(lambda_layer_forward,
                                    heads=heads, dim_k=dim_k, dim_u=dim_u))
    out = jax.block_until_ready(fwd(x, params, emb_t))
    out = np.asarray(out)

    ref = np.asarray(jax.block_until_ready(
        reference_forward(x, params, heads=heads, dim_k=dim_k, dim_u=dim_u)))

    # Kernels store q/k/v/emb in bf16 and accumulate in f32; use a scale-aware
    # tolerance against the float32 HIGHEST-precision reference.
    err = np.max(np.abs(out - ref)) / max(float(np.max(np.abs(ref))), 1e-6)
    assert err < 2e-2, f"max relative error too large: {err}"
    print("KERNEL_OK")
</pallas_src>

<mosaic_0001>
module attributes {stable_mosaic.version = 11 : i64} {
  func.func @_proj_kernel(%arg0: i32, %arg1: memref<1x32x256xf32, #tpu.memory_space<vmem>>, %arg2: memref<88x32xf32, #tpu.memory_space<vmem>>, %arg3: memref<64x1xf32, #tpu.memory_space<vmem>>, %arg4: memref<64x1xf32, #tpu.memory_space<vmem>>, %arg5: memref<8x1xf32, #tpu.memory_space<vmem>>, %arg6: memref<8x1xf32, #tpu.memory_space<vmem>>, %arg7: memref<1x64x256xbf16, #tpu.memory_space<vmem>>, %arg8: memref<1x16x256xbf16, #tpu.memory_space<vmem>>, %arg9: memref<1x8x256xbf16, #tpu.memory_space<vmem>>, %arg10: memref<64x1xf32, #tpu.memory_space<vmem>>, %arg11: memref<64x1xf32, #tpu.memory_space<vmem>>, %arg12: memref<8x1xf32, #tpu.memory_space<vmem>>, %arg13: memref<8x1xf32, #tpu.memory_space<vmem>>, %arg14: memref<64x1xf32, #tpu.memory_space<vmem>>, %arg15: memref<64x1xf32, #tpu.memory_space<vmem>>, %arg16: memref<8x1xf32, #tpu.memory_space<vmem>>, %arg17: memref<8x1xf32, #tpu.memory_space<vmem>>) attributes {dimension_semantics = [#tpu.dimension_semantics<arbitrary>], iteration_bounds = array<i64: 2>, scalar_prefetch = 0 : i64, scratch_operands = 4 : i64, tpu.core_type = #tpu.core_type<tc>, window_params = [{transform_indices = @transform_0, window_bounds = array<i64: 1, 32, 256>}, {pipeline_mode = #tpu.pipeline_mode<synchronous>, transform_indices = @transform_1, window_bounds = array<i64: 88, 32>}, {pipeline_mode = #tpu.pipeline_mode<synchronous>, transform_indices = @transform_2, window_bounds = array<i64: 64, 1>}, {pipeline_mode = #tpu.pipeline_mode<synchronous>, transform_indices = @transform_3, window_bounds = array<i64: 64, 1>}, {pipeline_mode = #tpu.pipeline_mode<synchronous>, transform_indices = @transform_4, window_bounds = array<i64: 8, 1>}, {pipeline_mode = #tpu.pipeline_mode<synchronous>, transform_indices = @transform_5, window_bounds = array<i64: 8, 1>}, {transform_indices = @transform_6, window_bounds = array<i64: 1, 64, 256>}, {transform_indices = @transform_7, window_bounds = array<i64: 1, 16, 256>}, {transform_indices = @transform_8, window_bounds = array<i64: 1, 8, 256>}, {pipeline_mode = #tpu.pipeline_mode<synchronous>, transform_indices = @transform_9, window_bounds = array<i64: 64, 1>}, {pipeline_mode = #tpu.pipeline_mode<synchronous>, transform_indices = @transform_10, window_bounds = array<i64: 64, 1>}, {pipeline_mode = #tpu.pipeline_mode<synchronous>, transform_indices = @transform_11, window_bounds = array<i64: 8, 1>}, {pipeline_mode = #tpu.pipeline_mode<synchronous>, transform_indices = @transform_12, window_bounds = array<i64: 8, 1>}]} {
    %c0_i32 = arith.constant 0 : i32
    %0 = arith.cmpi eq, %arg0, %c0_i32 : i32
    %1 = arith.extui %0 : i1 to i32
    %c0_i32_0 = arith.constant 0 : i32
    %2 = arith.cmpi ne, %1, %c0_i32_0 : i32
    scf.if %2 {
      %cst_35 = arith.constant 0.000000e+00 : f32
      %47 = vector.broadcast %cst_35 : f32 to vector<64x1xf32>
      %c0_36 = arith.constant 0 : index
      %c0_37 = arith.constant 0 : index
      %48 = vector.load %arg14[%c0_36, %c0_37] : memref<64x1xf32, #tpu.memory_space<vmem>>, vector<64x1xf32>
      tpu.vector_store %arg14[%c0_36, %c0_37], %47 {strides = array<i32>} : memref<64x1xf32, #tpu.memory_space<vmem>>, vector<64x1xf32>,
      %cst_38 = arith.constant 0.000000e+00 : f32
      %49 = vector.broadcast %cst_38 : f32 to vector<64x1xf32>
      %c0_39 = arith.constant 0 : index
      %c0_40 = arith.constant 0 : index
      %50 = vector.load %arg15[%c0_39, %c0_40] : memref<64x1xf32, #tpu.memory_space<vmem>>, vector<64x1xf32>
      tpu.vector_store %arg15[%c0_39, %c0_40], %49 {strides = array<i32>} : memref<64x1xf32, #tpu.memory_space<vmem>>, vector<64x1xf32>,
      %cst_41 = arith.constant 0.000000e+00 : f32
      %51 = vector.broadcast %cst_41 : f32 to vector<8x1xf32>
      %c0_42 = arith.constant 0 : index
      %c0_43 = arith.constant 0 : index
      %52 = vector.load %arg16[%c0_42, %c0_43] : memref<8x1xf32, #tpu.memory_space<vmem>>, vector<8x1xf32>
      tpu.vector_store %arg16[%c0_42, %c0_43], %51 {strides = array<i32>} : memref<8x1xf32, #tpu.memory_space<vmem>>, vector<8x1xf32>,
      %cst_44 = arith.constant 0.000000e+00 : f32
      %53 = vector.broadcast %cst_44 : f32 to vector<8x1xf32>
      %c0_45 = arith.constant 0 : index
      %c0_46 = arith.constant 0 : index
      %54 = vector.load %arg17[%c0_45, %c0_46] : memref<8x1xf32, #tpu.memory_space<vmem>>, vector<8x1xf32>
      tpu.vector_store %arg17[%c0_45, %c0_46], %53 {strides = array<i32>} : memref<8x1xf32, #tpu.memory_space<vmem>>, vector<8x1xf32>,
    } else {
    }
    %c0 = arith.constant 0 : index
    %c0_1 = arith.constant 0 : index
    %3 = vector.load %arg2[%c0, %c0_1] : memref<88x32xf32, #tpu.memory_space<vmem>>, vector<88x32xf32>
    %c0_2 = arith.constant 0 : index
    %c0_3 = arith.constant 0 : index
    %c0_4 = arith.constant 0 : index
    %4 = vector.load %arg1[%c0_2, %c0_3, %c0_4] : memref<1x32x256xf32, #tpu.memory_space<vmem>>, vector<1x32x256xf32>
    %5 = vector.shape_cast %4 : vector<1x32x256xf32> to vector<32x256xf32>
    %cst = arith.constant dense<0.000000e+00> : vector<88x256xf32>
    %6 = tpu.matmul %3, %5, %cst {dimension_numbers = #tpu.dot_dimension_numbers<[1], [0], [0], [1], [0, 0, 1, 1], [], []>} : vector<88x32xf32>, vector<32x256xf32>, vector<88x256xf32> -> vector<88x256xf32>
    %7 = vector.extract_strided_slice %6 {offsets = [0, 0], sizes = [64, 256], strides = [1, 1]} : vector<88x256xf32> to vector<64x256xf32>
    %8 = vector.extract_strided_slice %6 {offsets = [64, 0], sizes = [16, 256], strides = [1, 1]} : vector<88x256xf32> to vector<16x256xf32>
    %9 = vector.extract_strided_slice %6 {offsets = [80, 0], sizes = [8, 256], strides = [1, 1]} : vector<88x256xf32> to vector<8x256xf32>
    %10 = arith.truncf %7 : vector<64x256xf32> to vector<64x256xbf16>
    %c0_5 = arith.constant 0 : index
    %c0_6 = arith.constant 0 : index
    %c0_7 = arith.constant 0 : index
    %11 = vector.load %arg7[%c0_5, %c0_6, %c0_7] : memref<1x64x256xbf16, #tpu.memory_space<vmem>>, vector<1x64x256xbf16>
    %12 = vector.shape_cast %11 : vector<1x64x256xbf16> to vector<64x256xbf16>
    %13 = vector.shape_cast %10 : vector<64x256xbf16> to vector<1x64x256xbf16>
    tpu.vector_store %arg7[%c0_5, %c0_6, %c0_7], %13 {strides = array<i32>} : memref<1x64x256xbf16, #tpu.memory_space<vmem>>, vector<1x64x256xbf16>,
    %14 = arith.truncf %8 : vector<16x256xf32> to vector<16x256xbf16>
    %c0_8 = arith.constant 0 : index
    %c0_9 = arith.constant 0 : index
    %c0_10 = arith.constant 0 : index
    %15 = vector.load %arg8[%c0_8, %c0_9, %c0_10] : memref<1x16x256xbf16, #tpu.memory_space<vmem>>, vector<1x16x256xbf16>
    %16 = vector.shape_cast %15 : vector<1x16x256xbf16> to vector<16x256xbf16>
    %17 = vector.shape_cast %14 : vector<16x256xbf16> to vector<1x16x256xbf16>
    tpu.vector_store %arg8[%c0_8, %c0_9, %c0_10], %17 {strides = array<i32>} : memref<1x16x256xbf16, #tpu.memory_space<vmem>>, vector<1x16x256xbf16>,
    %18 = arith.truncf %9 : vector<8x256xf32> to vector<8x256xbf16>
    %c0_11 = arith.constant 0 : index
    %c0_12 = arith.constant 0 : index
    %c0_13 = arith.constant 0 : index
    %19 = vector.load %arg9[%c0_11, %c0_12, %c0_13] : memref<1x8x256xbf16, #tpu.memory_space<vmem>>, vector<1x8x256xbf16>
    %20 = vector.shape_cast %19 : vector<1x8x256xbf16> to vector<8x256xbf16>
    %21 = vector.shape_cast %18 : vector<8x256xbf16> to vector<1x8x256xbf16>
    tpu.vector_store %arg9[%c0_11, %c0_12, %c0_13], %21 {strides = array<i32>} : memref<1x8x256xbf16, #tpu.memory_space<vmem>>, vector<1x8x256xbf16>,
    %c0_14 = arith.constant 0 : index
    %c0_15 = arith.constant 0 : index
    %22 = vector.load %arg14[%c0_14, %c0_15] : memref<64x1xf32, #tpu.memory_space<vmem>>, vector<64x1xf32>
    %cst_16 = arith.constant dense<0.000000e+00> : vector<64xf32>
    %23 = vector.multi_reduction <add>, %7, %cst_16 [1] : vector<64x256xf32> to vector<64xf32>
    %24 = vector.shape_cast %23 : vector<64xf32> to vector<64x1xf32>
    %25 = arith.addf %22, %24 : vector<64x1xf32>
    %c0_17 = arith.constant 0 : index
    %c0_18 = arith.constant 0 : index
    %26 = vector.load %arg14[%c0_17, %c0_18] : memref<64x1xf32, #tpu.memory_space<vmem>>, vector<64x1xf32>
    tpu.vector_store %arg14[%c0_17, %c0_18], %25 {strides = array<i32>} : memref<64x1xf32, #tpu.memory_space<vmem>>, vector<64x1xf32>,
    %c0_19 = arith.constant 0 : index
    %c0_20 = arith.constant 0 : index
    %27 = vector.load %arg15[%c0_19, %c0_20] : memref<64x1xf32, #tpu.memory_space<vmem>>, vector<64x1xf32>
    %28 = arith.mulf %7, %7 : vector<64x256xf32>
    %cst_21 = arith.constant dense<0.000000e+00> : vector<64xf32>
    %29 = vector.multi_reduction <add>, %28, %cst_21 [1] : vector<64x256xf32> to vector<64xf32>
    %30 = vector.shape_cast %29 : vector<64xf32> to vector<64x1xf32>
    %31 = arith.addf %27, %30 : vector<64x1xf32>
    %c0_22 = arith.constant 0 : index
    %c0_23 = arith.constant 0 : index
    %32 = vector.load %arg15[%c0_22, %c0_23] : memref<64x1xf32, #tpu.memory_space<vmem>>, vector<64x1xf32>
    tpu.vector_store %arg15[%c0_22, %c0_23], %31 {strides = array<i32>} : memref<64x1xf32, #tpu.memory_space<vmem>>, vector<64x1xf32>,
    %c0_24 = arith.constant 0 : index
    %c0_25 = arith.constant 0 : index
    %33 = vector.load %arg16[%c0_24, %c0_25] : memref<8x1xf32, #tpu.memory_space<vmem>>, vector<8x1xf32>
    %cst_26 = arith.constant dense<0.000000e+00> : vector<8xf32>
    %34 = vector.multi_reduction <add>, %9, %cst_26 [1] : vector<8x256xf32> to vector<8xf32>
    %35 = vector.shape_cast %34 : vector<8xf32> to vector<8x1xf32>
    %36 = arith.addf %33, %35 : vector<8x1xf32>
    %c0_27 = arith.constant 0 : index
    %c0_28 = arith.constant 0 : index
    %37 = vector.load %arg16[%c0_27, %c0_28] : memref<8x1xf32, #tpu.memory_space<vmem>>, vector<8x1xf32>
    tpu.vector_store %arg16[%c0_27, %c0_28], %36 {strides = array<i32>} : memref<8x1xf32, #tpu.memory_space<vmem>>, vector<8x1xf32>,
    %c0_29 = arith.constant 0 : index
    %c0_30 = arith.constant 0 : index
    %38 = vector.load %arg17[%c0_29, %c0_30] : memref<8x1xf32, #tpu.memory_space<vmem>>, vector<8x1xf32>
    %39 = arith.mulf %9, %9 : vector<8x256xf32>
    %cst_31 = arith.constant dense<0.000000e+00> : vector<8xf32>
    %40 = vector.multi_reduction <add>, %39, %cst_31 [1] : vector<8x256xf32> to vector<8xf32>
    %41 = vector.shape_cast %40 : vector<8xf32> to vector<8x1xf32>
    %42 = arith.addf %38, %41 : vector<8x1xf32>
    %c0_32 = arith.constant 0 : index
    %c0_33 = arith.constant 0 : index
    %43 = vector.load %arg17[%c0_32, %c0_33] : memref<8x1xf32, #tpu.memory_space<vmem>>, vector<8x1xf32>
    tpu.vector_store %arg17[%c0_32, %c0_33], %42 {strides = array<i32>} : memref<8x1xf32, #tpu.memory_space<vmem>>, vector<8x1xf32>,
    %c1_i32 = arith.constant 1 : i32
    %44 = arith.cmpi eq, %arg0, %c1_i32 : i32
    %45 = arith.extui %44 : i1 to i32
    %c0_i32_34 = arith.constant 0 : i32
    %46 = arith.cmpi ne, %45, %c0_i32_34 : i32
    scf.if %46 {
      %c0_35 = arith.constant 0 : index
      %c0_36 = arith.constant 0 : index
      %47 = vector.load %arg14[%c0_35, %c0_36] : memref<64x1xf32, #tpu.memory_space<vmem>>, vector<64x1xf32>
      %cst_37 = arith.constant 0.001953125 : f32
      %48 = vector.broadcast %cst_37 : f32 to vector<64x1xf32>
      %49 = arith.mulf %47, %48 : vector<64x1xf32>
      %c0_38 = arith.constant 0 : index
      %c0_39 = arith.constant 0 : index
      %50 = vector.load %arg15[%c0_38, %c0_39] : memref<64x1xf32, #tpu.memory_space<vmem>>, vector<64x1xf32>
      %cst_40 = arith.constant 0.001953125 : f32
      %51 = vector.broadcast %cst_40 : f32 to vector<64x1xf32>
      %52 = arith.mulf %50, %51 : vector<64x1xf32>
      %53 = arith.mulf %49, %49 : vector<64x1xf32>
      %54 = arith.subf %52, %53 : vector<64x1xf32>
      %c0_41 = arith.constant 0 : index
      %c0_42 = arith.constant 0 : index
      %55 = vector.load %arg3[%c0_41, %c0_42] : memref<64x1xf32, #tpu.memory_space<vmem>>, vector<64x1xf32>
      %cst_43 = arith.constant 9.99999974E-6 : f32
      %56 = vector.broadcast %cst_43 : f32 to vector<64x1xf32>
      %57 = arith.addf %54, %56 : vector<64x1xf32>
      %58 = math.rsqrt %57 : vector<64x1xf32>
      %59 = arith.mulf %55, %58 : vector<64x1xf32>
      %c0_44 = arith.constant 0 : index
      %c0_45 = arith.constant 0 : index
      %60 = vector.load %arg10[%c0_44, %c0_45] : memref<64x1xf32, #tpu.memory_space<vmem>>, vector<64x1xf32>
      tpu.vector_store %arg10[%c0_44, %c0_45], %59 {strides = array<i32>} : memref<64x1xf32, #tpu.memory_space<vmem>>, vector<64x1xf32>,
      %c0_46 = arith.constant 0 : index
      %c0_47 = arith.constant 0 : index
      %61 = vector.load %arg4[%c0_46, %c0_47] : memref<64x1xf32, #tpu.memory_space<vmem>>, vector<64x1xf32>
      %62 = arith.mulf %49, %59 : vector<64x1xf32>
      %63 = arith.subf %61, %62 : vector<64x1xf32>
      %c0_48 = arith.constant 0 : index
      %c0_49 = arith.constant 0 : index
      %64 = vector.load %arg11[%c0_48, %c0_49] : memref<64x1xf32, #tpu.memory_space<vmem>>, vector<64x1xf32>
      tpu.vector_store %arg11[%c0_48, %c0_49], %63 {strides = array<i32>} : memref<64x1xf32, #tpu.memory_space<vmem>>, vector<64x1xf32>,
      %c0_50 = arith.constant 0 : index
      %c0_51 = arith.constant 0 : index
      %65 = vector.load %arg16[%c0_50, %c0_51] : memref<8x1xf32, #tpu.memory_space<vmem>>, vector<8x1xf32>
      %cst_52 = arith.constant 0.001953125 : f32
      %66 = vector.broadcast %cst_52 : f32 to vector<8x1xf32>
      %67 = arith.mulf %65, %66 : vector<8x1xf32>
      %c0_53 = arith.constant 0 : index
      %c0_54 = arith.constant 0 : index
      %68 = vector.load %arg17[%c0_53, %c0_54] : memref<8x1xf32, #tpu.memory_space<vmem>>, vector<8x1xf32>
      %cst_55 = arith.constant 0.001953125 : f32
      %69 = vector.broadcast %cst_55 : f32 to vector<8x1xf32>
      %70 = arith.mulf %68, %69 : vector<8x1xf32>
      %71 = arith.mulf %67, %67 : vector<8x1xf32>
      %72 = arith.subf %70, %71 : vector<8x1xf32>
      %c0_56 = arith.constant 0 : index
      %c0_57 = arith.constant 0 : index
      %73 = vector.load %arg5[%c0_56, %c0_57] : memref<8x1xf32, #tpu.memory_space<vmem>>, vector<8x1xf32>
      %cst_58 = arith.constant 9.99999974E-6 : f32
      %74 = vector.broadcast %cst_58 : f32 to vector<8x1xf32>
      %75 = arith.addf %72, %74 : vector<8x1xf32>
      %76 = math.rsqrt %75 : vector<8x1xf32>
      %77 = arith.mulf %73, %76 : vector<8x1xf32>
      %c0_59 = arith.constant 0 : index
      %c0_60 = arith.constant 0 : index
      %78 = vector.load %arg12[%c0_59, %c0_60] : memref<8x1xf32, #tpu.memory_space<vmem>>, vector<8x1xf32>
      tpu.vector_store %arg12[%c0_59, %c0_60], %77 {strides = array<i32>} : memref<8x1xf32, #tpu.memory_space<vmem>>, vector<8x1xf32>,
      %c0_61 = arith.constant 0 : index
      %c0_62 = arith.constant 0 : index
      %79 = vector.load %arg6[%c0_61, %c0_62] : memref<8x1xf32, #tpu.memory_space<vmem>>, vector<8x1xf32>
      %80 = arith.mulf %67, %77 : vector<8x1xf32>
      %81 = arith.subf %79, %80 : vector<8x1xf32>
      %c0_63 = arith.constant 0 : index
      %c0_64 = arith.constant 0 : index
      %82 = vector.load %arg13[%c0_63, %c0_64] : memref<8x1xf32, #tpu.memory_space<vmem>>, vector<8x1xf32>
      tpu.vector_store %arg13[%c0_63, %c0_64], %81 {strides = array<i32>} : memref<8x1xf32, #tpu.memory_space<vmem>>, vector<8x1xf32>,
    } else {
    }
    return
  }
  func.func @transform_0(%arg0: i32) -> (i32, i32, i32) {
    %c0_i32 = arith.constant 0 : i32
    %c0_i32_0 = arith.constant 0 : i32
    %c0_i32_1 = arith.constant 0 : i32
    return %arg0, %c0_i32, %c0_i32_0 : i32, i32, i32
  }
  func.func @transform_1(%arg0: i32) -> (i32, i32) {
    %c0_i32 = arith.constant 0 : i32
    %c0_i32_0 = arith.constant 0 : i32
    %c0_i32_1 = arith.constant 0 : i32
    return %c0_i32, %c0_i32_0 : i32, i32
  }
  func.func @transform_2(%arg0: i32) -> (i32, i32) {
    %c0_i32 = arith.constant 0 : i32
    %c0_i32_0 = arith.constant 0 : i32
    %c0_i32_1 = arith.constant 0 : i32
    return %c0_i32, %c0_i32_0 : i32, i32
  }
  func.func @transform_3(%arg0: i32) -> (i32, i32) {
    %c0_i32 = arith.constant 0 : i32
    %c0_i32_0 = arith.constant 0 : i32
    %c0_i32_1 = arith.constant 0 : i32
    return %c0_i32, %c0_i32_0 : i32, i32
  }
  func.func @transform_4(%arg0: i32) -> (i32, i32) {
    %c0_i32 = arith.constant 0 : i32
    %c0_i32_0 = arith.constant 0 : i32
    %c0_i32_1 = arith.constant 0 : i32
    return %c0_i32, %c0_i32_0 : i32, i32
  }
  func.func @transform_5(%arg0: i32) -> (i32, i32) {
    %c0_i32 = arith.constant 0 : i32
    %c0_i32_0 = arith.constant 0 : i32
    %c0_i32_1 = arith.constant 0 : i32
    return %c0_i32, %c0_i32_0 : i32, i32
  }
  func.func @transform_6(%arg0: i32) -> (i32, i32, i32) {
    %c0_i32 = arith.constant 0 : i32
    %c0_i32_0 = arith.constant 0 : i32
    %c0_i32_1 = arith.constant 0 : i32
    return %arg0, %c0_i32, %c0_i32_0 : i32, i32, i32
  }
  func.func @transform_7(%arg0: i32) -> (i32, i32, i32) {
    %c0_i32 = arith.constant 0 : i32
    %c0_i32_0 = arith.constant 0 : i32
    %c0_i32_1 = arith.constant 0 : i32
    return %arg0, %c0_i32, %c0_i32_0 : i32, i32, i32
  }
  func.func @transform_8(%arg0: i32) -> (i32, i32, i32) {
    %c0_i32 = arith.constant 0 : i32
    %c0_i32_0 = arith.constant 0 : i32
    %c0_i32_1 = arith.constant 0 : i32
    return %arg0, %c0_i32, %c0_i32_0 : i32, i32, i32
  }
  func.func @transform_9(%arg0: i32) -> (i32, i32) {
    %c0_i32 = arith.constant 0 : i32
    %c0_i32_0 = arith.constant 0 : i32
    %c0_i32_1 = arith.constant 0 : i32
    return %c0_i32, %c0_i32_0 : i32, i32
  }
  func.func @transform_10(%arg0: i32) -> (i32, i32) {
    %c0_i32 = arith.constant 0 : i32
    %c0_i32_0 = arith.constant 0 : i32
    %c0_i32_1 = arith.constant 0 : i32
    return %c0_i32, %c0_i32_0 : i32, i32
  }
  func.func @transform_11(%arg0: i32) -> (i32, i32) {
    %c0_i32 = arith.constant 0 : i32
    %c0_i32_0 = arith.constant 0 : i32
    %c0_i32_1 = arith.constant 0 : i32
    return %c0_i32, %c0_i32_0 : i32, i32
  }
  func.func @transform_12(%arg0: i32) -> (i32, i32) {
    %c0_i32 = arith.constant 0 : i32
    %c0_i32_0 = arith.constant 0 : i32
    %c0_i32_1 = arith.constant 0 : i32
    return %c0_i32, %c0_i32_0 : i32, i32
  }
}

module attributes {stable_mosaic.version = 11 : i64} {
  func.func @_lambda_kernel(%arg0: i32, %arg1: i32, %arg2: memref<1x64x128xbf16, #tpu.memory_space<vmem>>, %arg3: memref<1x16x256xbf16, #tpu.memory_space<vmem>>, %arg4: memref<1x8x256xbf16, #tpu.memory_space<vmem>>, %arg5: memref<64x1xf32, #tpu.memory_space<vmem>>, %arg6: memref<64x1xf32, #tpu.memory_space<vmem>>, %arg7: memref<8x1xf32, #tpu.memory_space<vmem>>, %arg8: memref<8x1xf32, #tpu.memory_space<vmem>>, %arg9: memref<1x16x256x128xbf16, #tpu.memory_space<vmem>>, %arg10: memref<1x32x128xf32, #tpu.memory_space<vmem>>, %arg11: memref<2x8x16xf32, #tpu.memory_space<vmem>>) attributes {dimension_semantics = [#tpu.dimension_semantics<arbitrary>, #tpu.dimension_semantics<parallel>], iteration_bounds = array<i64: 2, 2>, scalar_prefetch = 0 : i64, scratch_operands = 1 : i64, tpu.core_type = #tpu.core_type<tc>, window_params = [{transform_indices = @transform_0, window_bounds = array<i64: 1, 64, 128>}, {transform_indices = @transform_1, window_bounds = array<i64: 1, 16, 256>}, {transform_indices = @transform_2, window_bounds = array<i64: 1, 8, 256>}, {pipeline_mode = #tpu.pipeline_mode<synchronous>, transform_indices = @transform_3, window_bounds = array<i64: 64, 1>}, {pipeline_mode = #tpu.pipeline_mode<synchronous>, transform_indices = @transform_4, window_bounds = array<i64: 64, 1>}, {pipeline_mode = #tpu.pipeline_mode<synchronous>, transform_indices = @transform_5, window_bounds = array<i64: 8, 1>}, {pipeline_mode = #tpu.pipeline_mode<synchronous>, transform_indices = @transform_6, window_bounds = array<i64: 8, 1>}, {transform_indices = @transform_7, window_bounds = array<i64: 1, 16, 256, 128>}, {transform_indices = @transform_8, window_bounds = array<i64: 1, 32, 128>}]} {
    %c0 = arith.constant 0 : index
    %c0_0 = arith.constant 0 : index
    %c0_1 = arith.constant 0 : index
    %0 = vector.load %arg4[%c0, %c0_0, %c0_1] : memref<1x8x256xbf16, #tpu.memory_space<vmem>>, vector<1x8x256xbf16>
    %1 = vector.shape_cast %0 : vector<1x8x256xbf16> to vector<8x256xbf16>
    %2 = arith.extf %1 : vector<8x256xbf16> to vector<8x256xf32>
    %c0_2 = arith.constant 0 : index
    %c0_3 = arith.constant 0 : index
    %3 = vector.load %arg7[%c0_2, %c0_3] : memref<8x1xf32, #tpu.memory_space<vmem>>, vector<8x1xf32>
    %4 = vector.broadcast %3 : vector<8x1xf32> to vector<8x256xf32>
    %5 = arith.mulf %2, %4 : vector<8x256xf32>
    %c0_4 = arith.constant 0 : index
    %c0_5 = arith.constant 0 : index
    %6 = vector.load %arg8[%c0_4, %c0_5] : memref<8x1xf32, #tpu.memory_space<vmem>>, vector<8x1xf32>
    %7 = vector.broadcast %6 : vector<8x1xf32> to vector<8x256xf32>
    %8 = arith.addf %5, %7 : vector<8x256xf32>
    %9 = arith.truncf %8 : vector<8x256xf32> to vector<8x256xbf16>
    %c0_i32 = arith.constant 0 : i32
    %10 = arith.cmpi eq, %arg0, %c0_i32 : i32
    %11 = arith.extui %10 : i1 to i32
    %c0_i32_6 = arith.constant 0 : i32
    %12 = arith.cmpi ne, %11, %c0_i32_6 : i32
    scf.if %12 {
      %c0_110 = arith.constant 0 : index
      %c0_111 = arith.constant 0 : index
      %c0_112 = arith.constant 0 : index
      %425 = vector.load %arg3[%c0_110, %c0_111, %c0_112] : memref<1x16x256xbf16, #tpu.memory_space<vmem>>, vector<1x16x256xbf16>
      %426 = vector.shape_cast %425 : vector<1x16x256xbf16> to vector<16x256xbf16>
      %427 = arith.extf %426 : vector<16x256xbf16> to vector<16x256xf32>
      %cst_113 = arith.constant dense<0xFF800000> : vector<16xf32>
      %428 = vector.multi_reduction <maximumf>, %427, %cst_113 [1] : vector<16x256xf32> to vector<16xf32>
      %429 = vector.shape_cast %428 : vector<16xf32> to vector<16x1xf32>
      %430 = vector.broadcast %429 : vector<16x1xf32> to vector<16x256xf32>
      %431 = arith.subf %427, %430 : vector<16x256xf32>
      %432 = math.exp %431 : vector<16x256xf32>
      %cst_114 = arith.constant dense<0.000000e+00> : vector<16xf32>
      %433 = vector.multi_reduction <add>, %432, %cst_114 [1] : vector<16x256xf32> to vector<16xf32>
      %434 = vector.shape_cast %433 : vector<16xf32> to vector<16x1xf32>
      %435 = tpu.reciprocal %434 {approx = true} : vector<16x1xf32> -> vector<16x1xf32>
      %436 = vector.broadcast %435 : vector<16x1xf32> to vector<16x256xf32>
      %437 = arith.mulf %432, %436 : vector<16x256xf32>
      %438 = arith.truncf %437 : vector<16x256xf32> to vector<16x256xbf16>
      %cst_115 = arith.constant 0.000000e+00 : f32
      %439 = vector.broadcast %cst_115 : f32 to vector<8x16xf32>
      "tpu.trace_start"() <{level = 10 : i32, message = "vm,km->vk"}> : () -> ()
      %cst_116 = arith.constant dense<0.000000e+00> : vector<8x16xf32>
      %440 = tpu.matmul %9, %438, %cst_116 {dimension_numbers = #tpu.dot_dimension_numbers<[1], [1], [0], [0], [0, 0, 1, 0], [], []>} : vector<8x256xbf16>, vector<16x256xbf16>, vector<8x16xf32> -> vector<8x16xf32>
      "tpu.trace_stop"() : () -> ()
      %441 = arith.addf %439, %440 : vector<8x16xf32>
      %442 = arith.index_cast %arg1 : i32 to index
      %c0_117 = arith.constant 0 : index
      %c0_118 = arith.constant 0 : index
      %443 = vector.load %arg11[%442, %c0_117, %c0_118] : memref<2x8x16xf32, #tpu.memory_space<vmem>>, vector<1x8x16xf32>
      %444 = vector.shape_cast %443 : vector<1x8x16xf32> to vector<8x16xf32>
      %445 = vector.shape_cast %441 : vector<8x16xf32> to vector<1x8x16xf32>
      tpu.vector_store %arg11[%442, %c0_117, %c0_118], %445 {strides = array<i32>} : memref<2x8x16xf32, #tpu.memory_space<vmem>>, vector<1x8x16xf32>,
    } else {
    }
    %13 = arith.index_cast %arg1 : i32 to index
    %c0_7 = arith.constant 0 : index
    %c0_8 = arith.constant 0 : index
    %14 = vector.load %arg11[%13, %c0_7, %c0_8] : memref<2x8x16xf32, #tpu.memory_space<vmem>>, vector<1x8x16xf32>
    %15 = vector.shape_cast %14 : vector<1x8x16xf32> to vector<8x16xf32>
    %c0_9 = arith.constant 0 : index
    %c0_10 = arith.constant 0 : index
    %c0_11 = arith.constant 0 : index
    %16 = vector.load %arg2[%c0_9, %c0_10, %c0_11] : memref<1x64x128xbf16, #tpu.memory_space<vmem>>, vector<1x64x128xbf16>
    %17 = vector.shape_cast %16 : vector<1x64x128xbf16> to vector<64x128xbf16>
    %18 = arith.extf %17 : vector<64x128xbf16> to vector<64x128xf32>
    %c0_12 = arith.constant 0 : index
    %c0_13 = arith.constant 0 : index
    %19 = vector.load %arg5[%c0_12, %c0_13] : memref<64x1xf32, #tpu.memory_space<vmem>>, vector<64x1xf32>
    %20 = vector.broadcast %19 : vector<64x1xf32> to vector<64x128xf32>
    %21 = arith.mulf %18, %20 : vector<64x128xf32>
    %c0_14 = arith.constant 0 : index
    %c0_15 = arith.constant 0 : index
    %22 = vector.load %arg6[%c0_14, %c0_15] : memref<64x1xf32, #tpu.memory_space<vmem>>, vector<64x1xf32>
    %23 = vector.broadcast %22 : vector<64x1xf32> to vector<64x128xf32>
    %24 = arith.addf %21, %23 : vector<64x128xf32>
    %cst = arith.constant 0.000000e+00 : f32
    %25 = vector.broadcast %cst : f32 to vector<8x128xf32>
    %cst_16 = arith.constant 0.000000e+00 : f32
    %26 = vector.broadcast %cst_16 : f32 to vector<8x128xf32>
    %cst_17 = arith.constant 0.000000e+00 : f32
    %27 = vector.broadcast %cst_17 : f32 to vector<8x128xf32>
    %cst_18 = arith.constant 0.000000e+00 : f32
    %28 = vector.broadcast %cst_18 : f32 to vector<8x128xf32>
    %cst_19 = arith.constant 0.000000e+00 : f32
    %29 = vector.broadcast %cst_19 : f32 to vector<8x128xf32>
    %c0_20 = arith.constant 0 : index
    %c0_21 = arith.constant 0 : index
    %c0_22 = arith.constant 0 : index
    %c0_23 = arith.constant 0 : index
    %30 = vector.load %arg9[%c0_20, %c0_21, %c0_22, %c0_23] : memref<1x16x256x128xbf16, #tpu.memory_space<vmem>>, vector<1x1x256x128xbf16>
    %31 = vector.shape_cast %30 : vector<1x1x256x128xbf16> to vector<256x128xbf16>
    %cst_24 = arith.constant dense<0.000000e+00> : vector<8x128xf32>
    %32 = tpu.matmul %9, %31, %cst_24 {dimension_numbers = #tpu.dot_dimension_numbers<[1], [0], [0], [1], [0, 0, 1, 1], [], []>} : vector<8x256xbf16>, vector<256x128xbf16>, vector<8x128xf32> -> vector<8x128xf32>
    %33 = arith.addf %29, %32 : vector<8x128xf32>
    %34 = vector.extract_strided_slice %15 {offsets = [0, 0], sizes = [8, 1], strides = [1, 1]} : vector<8x16xf32> to vector<8x1xf32>
    %35 = vector.broadcast %34 : vector<8x1xf32> to vector<8x128xf32>
    %36 = arith.addf %33, %35 : vector<8x128xf32>
    %37 = vector.extract_strided_slice %24 {offsets = [0, 0], sizes = [1, 128], strides = [1, 1]} : vector<64x128xf32> to vector<1x128xf32>
    %38 = vector.broadcast %37 : vector<1x128xf32> to vector<8x128xf32>
    %39 = arith.mulf %38, %36 : vector<8x128xf32>
    %40 = arith.addf %25, %39 : vector<8x128xf32>
    %41 = vector.extract_strided_slice %24 {offsets = [16, 0], sizes = [1, 128], strides = [1, 1]} : vector<64x128xf32> to vector<1x128xf32>
    %42 = vector.broadcast %41 : vector<1x128xf32> to vector<8x128xf32>
    %43 = arith.mulf %42, %36 : vector<8x128xf32>
    %44 = arith.addf %26, %43 : vector<8x128xf32>
    %45 = vector.extract_strided_slice %24 {offsets = [32, 0], sizes = [1, 128], strides = [1, 1]} : vector<64x128xf32> to vector<1x128xf32>
    %46 = vector.broadcast %45 : vector<1x128xf32> to vector<8x128xf32>
    %47 = arith.mulf %46, %36 : vector<8x128xf32>
    %48 = arith.addf %27, %47 : vector<8x128xf32>
    %49 = vector.extract_strided_slice %24 {offsets = [48, 0], sizes = [1, 128], strides = [1, 1]} : vector<64x128xf32> to vector<1x128xf32>
    %50 = vector.broadcast %49 : vector<1x128xf32> to vector<8x128xf32>
    %51 = arith.mulf %50, %36 : vector<8x128xf32>
    %52 = arith.addf %28, %51 : vector<8x128xf32>
    %cst_25 = arith.constant 0.000000e+00 : f32
    %53 = vector.broadcast %cst_25 : f32 to vector<8x128xf32>
    %c0_26 = arith.constant 0 : index
    %c1 = arith.constant 1 : index
    %c0_27 = arith.constant 0 : index
    %c0_28 = arith.constant 0 : index
    %54 = vector.load %arg9[%c0_26, %c1, %c0_27, %c0_28] : memref<1x16x256x128xbf16, #tpu.memory_space<vmem>>, vector<1x1x256x128xbf16>
    %55 = vector.shape_cast %54 : vector<1x1x256x128xbf16> to vector<256x128xbf16>
    %cst_29 = arith.constant dense<0.000000e+00> : vector<8x128xf32>
    %56 = tpu.matmul %9, %55, %cst_29 {dimension_numbers = #tpu.dot_dimension_numbers<[1], [0], [0], [1], [0, 0, 1, 1], [], []>} : vector<8x256xbf16>, vector<256x128xbf16>, vector<8x128xf32> -> vector<8x128xf32>
    %57 = arith.addf %53, %56 : vector<8x128xf32>
    %58 = vector.extract_strided_slice %15 {offsets = [0, 1], sizes = [8, 1], strides = [1, 1]} : vector<8x16xf32> to vector<8x1xf32>
    %59 = vector.broadcast %58 : vector<8x1xf32> to vector<8x128xf32>
    %60 = arith.addf %57, %59 : vector<8x128xf32>
    %61 = vector.extract_strided_slice %24 {offsets = [1, 0], sizes = [1, 128], strides = [1, 1]} : vector<64x128xf32> to vector<1x128xf32>
    %62 = vector.broadcast %61 : vector<1x128xf32> to vector<8x128xf32>
    %63 = arith.mulf %62, %60 : vector<8x128xf32>
    %64 = arith.addf %40, %63 : vector<8x128xf32>
    %65 = vector.extract_strided_slice %24 {offsets = [17, 0], sizes = [1, 128], strides = [1, 1]} : vector<64x128xf32> to vector<1x128xf32>
    %66 = vector.broadcast %65 : vector<1x128xf32> to vector<8x128xf32>
    %67 = arith.mulf %66, %60 : vector<8x128xf32>
    %68 = arith.addf %44, %67 : vector<8x128xf32>
    %69 = vector.extract_strided_slice %24 {offsets = [33, 0], sizes = [1, 128], strides = [1, 1]} : vector<64x128xf32> to vector<1x128xf32>
    %70 = vector.broadcast %69 : vector<1x128xf32> to vector<8x128xf32>
    %71 = arith.mulf %70, %60 : vector<8x128xf32>
    %72 = arith.addf %48, %71 : vector<8x128xf32>
    %73 = vector.extract_strided_slice %24 {offsets = [49, 0], sizes = [1, 128], strides = [1, 1]} : vector<64x128xf32> to vector<1x128xf32>
    %74 = vector.broadcast %73 : vector<1x128xf32> to vector<8x128xf32>
    %75 = arith.mulf %74, %60 : vector<8x128xf32>
    %76 = arith.addf %52, %75 : vector<8x128xf32>
    %cst_30 = arith.constant 0.000000e+00 : f32
    %77 = vector.broadcast %cst_30 : f32 to vector<8x128xf32>
    %c0_31 = arith.constant 0 : index
    %c2 = arith.constant 2 : index
    %c0_32 = arith.constant 0 : index
    %c0_33 = arith.constant 0 : index
    %78 = vector.load %arg9[%c0_31, %c2, %c0_32, %c0_33] : memref<1x16x256x128xbf16, #tpu.memory_space<vmem>>, vector<1x1x256x128xbf16>
    %79 = vector.shape_cast %78 : vector<1x1x256x128xbf16> to vector<256x128xbf16>
    %cst_34 = arith.constant dense<0.000000e+00> : vector<8x128xf32>
    %80 = tpu.matmul %9, %79, %cst_34 {dimension_numbers = #tpu.dot_dimension_numbers<[1], [0], [0], [1], [0, 0, 1, 1], [], []>} : vector<8x256xbf16>, vector<256x128xbf16>, vector<8x128xf32> -> vector<8x128xf32>
    %81 = arith.addf %77, %80 : vector<8x128xf32>
    %82 = vector.extract_strided_slice %15 {offsets = [0, 2], sizes = [8, 1], strides = [1, 1]} : vector<8x16xf32> to vector<8x1xf32>
    %83 = vector.broadcast %82 : vector<8x1xf32> to vector<8x128xf32>
    %84 = arith.addf %81, %83 : vector<8x128xf32>
    %85 = vector.extract_strided_slice %24 {offsets = [2, 0], sizes = [1, 128], strides = [1, 1]} : vector<64x128xf32> to vector<1x128xf32>
    %86 = vector.broadcast %85 : vector<1x128xf32> to vector<8x128xf32>
    %87 = arith.mulf %86, %84 : vector<8x128xf32>
    %88 = arith.addf %64, %87 : vector<8x128xf32>
    %89 = vector.extract_strided_slice %24 {offsets = [18, 0], sizes = [1, 128], strides = [1, 1]} : vector<64x128xf32> to vector<1x128xf32>
    %90 = vector.broadcast %89 : vector<1x128xf32> to vector<8x128xf32>
    %91 = arith.mulf %90, %84 : vector<8x128xf32>
    %92 = arith.addf %68, %91 : vector<8x128xf32>
    %93 = vector.extract_strided_slice %24 {offsets = [34, 0], sizes = [1, 128], strides = [1, 1]} : vector<64x128xf32> to vector<1x128xf32>
    %94 = vector.broadcast %93 : vector<1x128xf32> to vector<8x128xf32>
    %95 = arith.mulf %94, %84 : vector<8x128xf32>
    %96 = arith.addf %72, %95 : vector<8x128xf32>
    %97 = vector.extract_strided_slice %24 {offsets = [50, 0], sizes = [1, 128], strides = [1, 1]} : vector<64x128xf32> to vector<1x128xf32>
    %98 = vector.broadcast %97 : vector<1x128xf32> to vector<8x128xf32>
    %99 = arith.mulf %98, %84 : vector<8x128xf32>
    %100 = arith.addf %76, %99 : vector<8x128xf32>
    %cst_35 = arith.constant 0.000000e+00 : f32
    %101 = vector.broadcast %cst_35 : f32 to vector<8x128xf32>
    %c0_36 = arith.constant 0 : index
    %c3 = arith.constant 3 : index
    %c0_37 = arith.constant 0 : index
    %c0_38 = arith.constant 0 : index
    %102 = vector.load %arg9[%c0_36, %c3, %c0_37, %c0_38] : memref<1x16x256x128xbf16, #tpu.memory_space<vmem>>, vector<1x1x256x128xbf16>
    %103 = vector.shape_cast %102 : vector<1x1x256x128xbf16> to vector<256x128xbf16>
    %cst_39 = arith.constant dense<0.000000e+00> : vector<8x128xf32>
    %104 = tpu.matmul %9, %103, %cst_39 {dimension_numbers = #tpu.dot_dimension_numbers<[1], [0], [0], [1], [0, 0, 1, 1], [], []>} : vector<8x256xbf16>, vector<256x128xbf16>, vector<8x128xf32> -> vector<8x128xf32>
    %105 = arith.addf %101, %104 : vector<8x128xf32>
    %106 = vector.extract_strided_slice %15 {offsets = [0, 3], sizes = [8, 1], strides = [1, 1]} : vector<8x16xf32> to vector<8x1xf32>
    %107 = vector.broadcast %106 : vector<8x1xf32> to vector<8x128xf32>
    %108 = arith.addf %105, %107 : vector<8x128xf32>
    %109 = vector.extract_strided_slice %24 {offsets = [3, 0], sizes = [1, 128], strides = [1, 1]} : vector<64x128xf32> to vector<1x128xf32>
    %110 = vector.broadcast %109 : vector<1x128xf32> to vector<8x128xf32>
    %111 = arith.mulf %110, %108 : vector<8x128xf32>
    %112 = arith.addf %88, %111 : vector<8x128xf32>
    %113 = vector.extract_strided_slice %24 {offsets = [19, 0], sizes = [1, 128], strides = [1, 1]} : vector<64x128xf32> to vector<1x128xf32>
    %114 = vector.broadcast %113 : vector<1x128xf32> to vector<8x128xf32>
    %115 = arith.mulf %114, %108 : vector<8x128xf32>
    %116 = arith.addf %92, %115 : vector<8x128xf32>
    %117 = vector.extract_strided_slice %24 {offsets = [35, 0], sizes = [1, 128], strides = [1, 1]} : vector<64x128xf32> to vector<1x128xf32>
    %118 = vector.broadcast %117 : vector<1x128xf32> to vector<8x128xf32>
    %119 = arith.mulf %118, %108 : vector<8x128xf32>
    %120 = arith.addf %96, %119 : vector<8x128xf32>
    %121 = vector.extract_strided_slice %24 {offsets = [51, 0], sizes = [1, 128], strides = [1, 1]} : vector<64x128xf32> to vector<1x128xf32>
    %122 = vector.broadcast %121 : vector<1x128xf32> to vector<8x128xf32>
    %123 = arith.mulf %122, %108 : vector<8x128xf32>
    %124 = arith.addf %100, %123 : vector<8x128xf32>
    %cst_40 = arith.constant 0.000000e+00 : f32
    %125 = vector.broadcast %cst_40 : f32 to vector<8x128xf32>
    %c0_41 = arith.constant 0 : index
    %c4 = arith.constant 4 : index
    %c0_42 = arith.constant 0 : index
    %c0_43 = arith.constant 0 : index
    %126 = vector.load %arg9[%c0_41, %c4, %c0_42, %c0_43] : memref<1x16x256x128xbf16, #tpu.memory_space<vmem>>, vector<1x1x256x128xbf16>
    %127 = vector.shape_cast %126 : vector<1x1x256x128xbf16> to vector<256x128xbf16>
    %cst_44 = arith.constant dense<0.000000e+00> : vector<8x128xf32>
    %128 = tpu.matmul %9, %127, %cst_44 {dimension_numbers = #tpu.dot_dimension_numbers<[1], [0], [0], [1], [0, 0, 1, 1], [], []>} : vector<8x256xbf16>, vector<256x128xbf16>, vector<8x128xf32> -> vector<8x128xf32>
    %129 = arith.addf %125, %128 : vector<8x128xf32>
    %130 = vector.extract_strided_slice %15 {offsets = [0, 4], sizes = [8, 1], strides = [1, 1]} : vector<8x16xf32> to vector<8x1xf32>
    %131 = vector.broadcast %130 : vector<8x1xf32> to vector<8x128xf32>
    %132 = arith.addf %129, %131 : vector<8x128xf32>
    %133 = vector.extract_strided_slice %24 {offsets = [4, 0], sizes = [1, 128], strides = [1, 1]} : vector<64x128xf32> to vector<1x128xf32>
    %134 = vector.broadcast %133 : vector<1x128xf32> to vector<8x128xf32>
    %135 = arith.mulf %134, %132 : vector<8x128xf32>
    %136 = arith.addf %112, %135 : vector<8x128xf32>
    %137 = vector.extract_strided_slice %24 {offsets = [20, 0], sizes = [1, 128], strides = [1, 1]} : vector<64x128xf32> to vector<1x128xf32>
    %138 = vector.broadcast %137 : vector<1x128xf32> to vector<8x128xf32>
    %139 = arith.mulf %138, %132 : vector<8x128xf32>
    %140 = arith.addf %116, %139 : vector<8x128xf32>
    %141 = vector.extract_strided_slice %24 {offsets = [36, 0], sizes = [1, 128], strides = [1, 1]} : vector<64x128xf32> to vector<1x128xf32>
    %142 = vector.broadcast %141 : vector<1x128xf32> to vector<8x128xf32>
    %143 = arith.mulf %142, %132 : vector<8x128xf32>
    %144 = arith.addf %120, %143 : vector<8x128xf32>
    %145 = vector.extract_strided_slice %24 {offsets = [52, 0], sizes = [1, 128], strides = [1, 1]} : vector<64x128xf32> to vector<1x128xf32>
    %146 = vector.broadcast %145 : vector<1x128xf32> to vector<8x128xf32>
    %147 = arith.mulf %146, %132 : vector<8x128xf32>
    %148 = arith.addf %124, %147 : vector<8x128xf32>
    %cst_45 = arith.constant 0.000000e+00 : f32
    %149 = vector.broadcast %cst_45 : f32 to vector<8x128xf32>
    %c0_46 = arith.constant 0 : index
    %c5 = arith.constant 5 : index
    %c0_47 = arith.constant 0 : index
    %c0_48 = arith.constant 0 : index
    %150 = vector.load %arg9[%c0_46, %c5, %c0_47, %c0_48] : memref<1x16x256x128xbf16, #tpu.memory_space<vmem>>, vector<1x1x256x128xbf16>
    %151 = vector.shape_cast %150 : vector<1x1x256x128xbf16> to vector<256x128xbf16>
    %cst_49 = arith.constant dense<0.000000e+00> : vector<8x128xf32>
    %152 = tpu.matmul %9, %151, %cst_49 {dimension_numbers = #tpu.dot_dimension_numbers<[1], [0], [0], [1], [0, 0, 1, 1], [], []>} : vector<8x256xbf16>, vector<256x128xbf16>, vector<8x128xf32> -> vector<8x128xf32>
    %153 = arith.addf %149, %152 : vector<8x128xf32>
    %154 = vector.extract_strided_slice %15 {offsets = [0, 5], sizes = [8, 1], strides = [1, 1]} : vector<8x16xf32> to vector<8x1xf32>
    %155 = vector.broadcast %154 : vector<8x1xf32> to vector<8x128xf32>
    %156 = arith.addf %153, %155 : vector<8x128xf32>
    %157 = vector.extract_strided_slice %24 {offsets = [5, 0], sizes = [1, 128], strides = [1, 1]} : vector<64x128xf32> to vector<1x128xf32>
    %158 = vector.broadcast %157 : vector<1x128xf32> to vector<8x128xf32>
    %159 = arith.mulf %158, %156 : vector<8x128xf32>
    %160 = arith.addf %136, %159 : vector<8x128xf32>
    %161 = vector.extract_strided_slice %24 {offsets = [21, 0], sizes = [1, 128], strides = [1, 1]} : vector<64x128xf32> to vector<1x128xf32>
    %162 = vector.broadcast %161 : vector<1x128xf32> to vector<8x128xf32>
    %163 = arith.mulf %162, %156 : vector<8x128xf32>
    %164 = arith.addf %140, %163 : vector<8x128xf32>
    %165 = vector.extract_strided_slice %24 {offsets = [37, 0], sizes = [1, 128], strides = [1, 1]} : vector<64x128xf32> to vector<1x128xf32>
    %166 = vector.broadcast %165 : vector<1x128xf32> to vector<8x128xf32>
    %167 = arith.mulf %166, %156 : vector<8x128xf32>
    %168 = arith.addf %144, %167 : vector<8x128xf32>
    %169 = vector.extract_strided_slice %24 {offsets = [53, 0], sizes = [1, 128], strides = [1, 1]} : vector<64x128xf32> to vector<1x128xf32>
    %170 = vector.broadcast %169 : vector<1x128xf32> to vector<8x128xf32>
    %171 = arith.mulf %170, %156 : vector<8x128xf32>
    %172 = arith.addf %148, %171 : vector<8x128xf32>
    %cst_50 = arith.constant 0.000000e+00 : f32
    %173 = vector.broadcast %cst_50 : f32 to vector<8x128xf32>
    %c0_51 = arith.constant 0 : index
    %c6 = arith.constant 6 : index
    %c0_52 = arith.constant 0 : index
    %c0_53 = arith.constant 0 : index
    %174 = vector.load %arg9[%c0_51, %c6, %c0_52, %c0_53] : memref<1x16x256x128xbf16, #tpu.memory_space<vmem>>, vector<1x1x256x128xbf16>
    %175 = vector.shape_cast %174 : vector<1x1x256x128xbf16> to vector<256x128xbf16>
    %cst_54 = arith.constant dense<0.000000e+00> : vector<8x128xf32>
    %176 = tpu.matmul %9, %175, %cst_54 {dimension_numbers = #tpu.dot_dimension_numbers<[1], [0], [0], [1], [0, 0, 1, 1], [], []>} : vector<8x256xbf16>, vector<256x128xbf16>, vector<8x128xf32> -> vector<8x128xf32>
    %177 = arith.addf %173, %176 : vector<8x128xf32>
    %178 = vector.extract_strided_slice %15 {offsets = [0, 6], sizes = [8, 1], strides = [1, 1]} : vector<8x16xf32> to vector<8x1xf32>
    %179 = vector.broadcast %178 : vector<8x1xf32> to vector<8x128xf32>
    %180 = arith.addf %177, %179 : vector<8x128xf32>
    %181 = vector.extract_strided_slice %24 {offsets = [6, 0], sizes = [1, 128], strides = [1, 1]} : vector<64x128xf32> to vector<1x128xf32>
    %182 = vector.broadcast %181 : vector<1x128xf32> to vector<8x128xf32>
    %183 = arith.mulf %182, %180 : vector<8x128xf32>
    %184 = arith.addf %160, %183 : vector<8x128xf32>
    %185 = vector.extract_strided_slice %24 {offsets = [22, 0], sizes = [1, 128], strides = [1, 1]} : vector<64x128xf32> to vector<1x128xf32>
    %186 = vector.broadcast %185 : vector<1x128xf32> to vector<8x128xf32>
    %187 = arith.mulf %186, %180 : vector<8x128xf32>
    %188 = arith.addf %164, %187 : vector<8x128xf32>
    %189 = vector.extract_strided_slice %24 {offsets = [38, 0], sizes = [1, 128], strides = [1, 1]} : vector<64x128xf32> to vector<1x128xf32>
    %190 = vector.broadcast %189 : vector<1x128xf32> to vector<8x128xf32>
    %191 = arith.mulf %190, %180 : vector<8x128xf32>
    %192 = arith.addf %168, %191 : vector<8x128xf32>
    %193 = vector.extract_strided_slice %24 {offsets = [54, 0], sizes = [1, 128], strides = [1, 1]} : vector<64x128xf32> to vector<1x128xf32>
    %194 = vector.broadcast %193 : vector<1x128xf32> to vector<8x128xf32>
    %195 = arith.mulf %194, %180 : vector<8x128xf32>
    %196 = arith.addf %172, %195 : vector<8x128xf32>
    %cst_55 = arith.constant 0.000000e+00 : f32
    %197 = vector.broadcast %cst_55 : f32 to vector<8x128xf32>
    %c0_56 = arith.constant 0 : index
    %c7 = arith.constant 7 : index
    %c0_57 = arith.constant 0 : index
    %c0_58 = arith.constant 0 : index
    %198 = vector.load %arg9[%c0_56, %c7, %c0_57, %c0_58] : memref<1x16x256x128xbf16, #tpu.memory_space<vmem>>, vector<1x1x256x128xbf16>
    %199 = vector.shape_cast %198 : vector<1x1x256x128xbf16> to vector<256x128xbf16>
    %cst_59 = arith.constant dense<0.000000e+00> : vector<8x128xf32>
    %200 = tpu.matmul %9, %199, %cst_59 {dimension_numbers = #tpu.dot_dimension_numbers<[1], [0], [0], [1], [0, 0, 1, 1], [], []>} : vector<8x256xbf16>, vector<256x128xbf16>, vector<8x128xf32> -> vector<8x128xf32>
    %201 = arith.addf %197, %200 : vector<8x128xf32>
    %202 = vector.extract_strided_slice %15 {offsets = [0, 7], sizes = [8, 1], strides = [1, 1]} : vector<8x16xf32> to vector<8x1xf32>
    %203 = vector.broadcast %202 : vector<8x1xf32> to vector<8x128xf32>
    %204 = arith.addf %201, %203 : vector<8x128xf32>
    %205 = vector.extract_strided_slice %24 {offsets = [7, 0], sizes = [1, 128], strides = [1, 1]} : vector<64x128xf32> to vector<1x128xf32>
    %206 = vector.broadcast %205 : vector<1x128xf32> to vector<8x128xf32>
    %207 = arith.mulf %206, %204 : vector<8x128xf32>
    %208 = arith.addf %184, %207 : vector<8x128xf32>
    %209 = vector.extract_strided_slice %24 {offsets = [23, 0], sizes = [1, 128], strides = [1, 1]} : vector<64x128xf32> to vector<1x128xf32>
    %210 = vector.broadcast %209 : vector<1x128xf32> to vector<8x128xf32>
    %211 = arith.mulf %210, %204 : vector<8x128xf32>
    %212 = arith.addf %188, %211 : vector<8x128xf32>
    %213 = vector.extract_strided_slice %24 {offsets = [39, 0], sizes = [1, 128], strides = [1, 1]} : vector<64x128xf32> to vector<1x128xf32>
    %214 = vector.broadcast %213 : vector<1x128xf32> to vector<8x128xf32>
    %215 = arith.mulf %214, %204 : vector<8x128xf32>
    %216 = arith.addf %192, %215 : vector<8x128xf32>
    %217 = vector.extract_strided_slice %24 {offsets = [55, 0], sizes = [1, 128], strides = [1, 1]} : vector<64x128xf32> to vector<1x128xf32>
    %218 = vector.broadcast %217 : vector<1x128xf32> to vector<8x128xf32>
    %219 = arith.mulf %218, %204 : vector<8x128xf32>
    %220 = arith.addf %196, %219 : vector<8x128xf32>
    %cst_60 = arith.constant 0.000000e+00 : f32
    %221 = vector.broadcast %cst_60 : f32 to vector<8x128xf32>
    %c0_61 = arith.constant 0 : index
    %c8 = arith.constant 8 : index
    %c0_62 = arith.constant 0 : index
    %c0_63 = arith.constant 0 : index
    %222 = vector.load %arg9[%c0_61, %c8, %c0_62, %c0_63] : memref<1x16x256x128xbf16, #tpu.memory_space<vmem>>, vector<1x1x256x128xbf16>
    %223 = vector.shape_cast %222 : vector<1x1x256x128xbf16> to vector<256x128xbf16>
    %cst_64 = arith.constant dense<0.000000e+00> : vector<8x128xf32>
    %224 = tpu.matmul %9, %223, %cst_64 {dimension_numbers = #tpu.dot_dimension_numbers<[1], [0], [0], [1], [0, 0, 1, 1], [], []>} : vector<8x256xbf16>, vector<256x128xbf16>, vector<8x128xf32> -> vector<8x128xf32>
    %225 = arith.addf %221, %224 : vector<8x128xf32>
    %226 = vector.extract_strided_slice %15 {offsets = [0, 8], sizes = [8, 1], strides = [1, 1]} : vector<8x16xf32> to vector<8x1xf32>
    %227 = vector.broadcast %226 : vector<8x1xf32> to vector<8x128xf32>
    %228 = arith.addf %225, %227 : vector<8x128xf32>
    %229 = vector.extract_strided_slice %24 {offsets = [8, 0], sizes = [1, 128], strides = [1, 1]} : vector<64x128xf32> to vector<1x128xf32>
    %230 = vector.broadcast %229 : vector<1x128xf32> to vector<8x128xf32>
    %231 = arith.mulf %230, %228 : vector<8x128xf32>
    %232 = arith.addf %208, %231 : vector<8x128xf32>
    %233 = vector.extract_strided_slice %24 {offsets = [24, 0], sizes = [1, 128], strides = [1, 1]} : vector<64x128xf32> to vector<1x128xf32>
    %234 = vector.broadcast %233 : vector<1x128xf32> to vector<8x128xf32>
    %235 = arith.mulf %234, %228 : vector<8x128xf32>
    %236 = arith.addf %212, %235 : vector<8x128xf32>
    %237 = vector.extract_strided_slice %24 {offsets = [40, 0], sizes = [1, 128], strides = [1, 1]} : vector<64x128xf32> to vector<1x128xf32>
    %238 = vector.broadcast %237 : vector<1x128xf32> to vector<8x128xf32>
    %239 = arith.mulf %238, %228 : vector<8x128xf32>
    %240 = arith.addf %216, %239 : vector<8x128xf32>
    %241 = vector.extract_strided_slice %24 {offsets = [56, 0], sizes = [1, 128], strides = [1, 1]} : vector<64x128xf32> to vector<1x128xf32>
    %242 = vector.broadcast %241 : vector<1x128xf32> to vector<8x128xf32>
    %243 = arith.mulf %242, %228 : vector<8x128xf32>
    %244 = arith.addf %220, %243 : vector<8x128xf32>
    %cst_65 = arith.constant 0.000000e+00 : f32
    %245 = vector.broadcast %cst_65 : f32 to vector<8x128xf32>
    %c0_66 = arith.constant 0 : index
    %c9 = arith.constant 9 : index
    %c0_67 = arith.constant 0 : index
    %c0_68 = arith.constant 0 : index
    %246 = vector.load %arg9[%c0_66, %c9, %c0_67, %c0_68] : memref<1x16x256x128xbf16, #tpu.memory_space<vmem>>, vector<1x1x256x128xbf16>
    %247 = vector.shape_cast %246 : vector<1x1x256x128xbf16> to vector<256x128xbf16>
    %cst_69 = arith.constant dense<0.000000e+00> : vector<8x128xf32>
    %248 = tpu.matmul %9, %247, %cst_69 {dimension_numbers = #tpu.dot_dimension_numbers<[1], [0], [0], [1], [0, 0, 1, 1], [], []>} : vector<8x256xbf16>, vector<256x128xbf16>, vector<8x128xf32> -> vector<8x128xf32>
    %249 = arith.addf %245, %248 : vector<8x128xf32>
    %250 = vector.extract_strided_slice %15 {offsets = [0, 9], sizes = [8, 1], strides = [1, 1]} : vector<8x16xf32> to vector<8x1xf32>
    %251 = vector.broadcast %250 : vector<8x1xf32> to vector<8x128xf32>
    %252 = arith.addf %249, %251 : vector<8x128xf32>
    %253 = vector.extract_strided_slice %24 {offsets = [9, 0], sizes = [1, 128], strides = [1, 1]} : vector<64x128xf32> to vector<1x128xf32>
    %254 = vector.broadcast %253 : vector<1x128xf32> to vector<8x128xf32>
    %255 = arith.mulf %254, %252 : vector<8x128xf32>
    %256 = arith.addf %232, %255 : vector<8x128xf32>
    %257 = vector.extract_strided_slice %24 {offsets = [25, 0], sizes = [1, 128], strides = [1, 1]} : vector<64x128xf32> to vector<1x128xf32>
    %258 = vector.broadcast %257 : vector<1x128xf32> to vector<8x128xf32>
    %259 = arith.mulf %258, %252 : vector<8x128xf32>
    %260 = arith.addf %236, %259 : vector<8x128xf32>
    %261 = vector.extract_strided_slice %24 {offsets = [41, 0], sizes = [1, 128], strides = [1, 1]} : vector<64x128xf32> to vector<1x128xf32>
    %262 = vector.broadcast %261 : vector<1x128xf32> to vector<8x128xf32>
    %263 = arith.mulf %262, %252 : vector<8x128xf32>
    %264 = arith.addf %240, %263 : vector<8x128xf32>
    %265 = vector.extract_strided_slice %24 {offsets = [57, 0], sizes = [1, 128], strides = [1, 1]} : vector<64x128xf32> to vector<1x128xf32>
    %266 = vector.broadcast %265 : vector<1x128xf32> to vector<8x128xf32>
    %267 = arith.mulf %266, %252 : vector<8x128xf32>
    %268 = arith.addf %244, %267 : vector<8x128xf32>
    %cst_70 = arith.constant 0.000000e+00 : f32
    %269 = vector.broadcast %cst_70 : f32 to vector<8x128xf32>
    %c0_71 = arith.constant 0 : index
    %c10 = arith.constant 10 : index
    %c0_72 = arith.constant 0 : index
    %c0_73 = arith.constant 0 : index
    %270 = vector.load %arg9[%c0_71, %c10, %c0_72, %c0_73] : memref<1x16x256x128xbf16, #tpu.memory_space<vmem>>, vector<1x1x256x128xbf16>
    %271 = vector.shape_cast %270 : vector<1x1x256x128xbf16> to vector<256x128xbf16>
    %cst_74 = arith.constant dense<0.000000e+00> : vector<8x128xf32>
    %272 = tpu.matmul %9, %271, %cst_74 {dimension_numbers = #tpu.dot_dimension_numbers<[1], [0], [0], [1], [0, 0, 1, 1], [], []>} : vector<8x256xbf16>, vector<256x128xbf16>, vector<8x128xf32> -> vector<8x128xf32>
    %273 = arith.addf %269, %272 : vector<8x128xf32>
    %274 = vector.extract_strided_slice %15 {offsets = [0, 10], sizes = [8, 1], strides = [1, 1]} : vector<8x16xf32> to vector<8x1xf32>
    %275 = vector.broadcast %274 : vector<8x1xf32> to vector<8x128xf32>
    %276 = arith.addf %273, %275 : vector<8x128xf32>
    %277 = vector.extract_strided_slice %24 {offsets = [10, 0], sizes = [1, 128], strides = [1, 1]} : vector<64x128xf32> to vector<1x128xf32>
    %278 = vector.broadcast %277 : vector<1x128xf32> to vector<8x128xf32>
    %279 = arith.mulf %278, %276 : vector<8x128xf32>
    %280 = arith.addf %256, %279 : vector<8x128xf32>
    %281 = vector.extract_strided_slice %24 {offsets = [26, 0], sizes = [1, 128], strides = [1, 1]} : vector<64x128xf32> to vector<1x128xf32>
    %282 = vector.broadcast %281 : vector<1x128xf32> to vector<8x128xf32>
    %283 = arith.mulf %282, %276 : vector<8x128xf32>
    %284 = arith.addf %260, %283 : vector<8x128xf32>
    %285 = vector.extract_strided_slice %24 {offsets = [42, 0], sizes = [1, 128], strides = [1, 1]} : vector<64x128xf32> to vector<1x128xf32>
    %286 = vector.broadcast %285 : vector<1x128xf32> to vector<8x128xf32>
    %287 = arith.mulf %286, %276 : vector<8x128xf32>
    %288 = arith.addf %264, %287 : vector<8x128xf32>
    %289 = vector.extract_strided_slice %24 {offsets = [58, 0], sizes = [1, 128], strides = [1, 1]} : vector<64x128xf32> to vector<1x128xf32>
    %290 = vector.broadcast %289 : vector<1x128xf32> to vector<8x128xf32>
    %291 = arith.mulf %290, %276 : vector<8x128xf32>
    %292 = arith.addf %268, %291 : vector<8x128xf32>
    %cst_75 = arith.constant 0.000000e+00 : f32
    %293 = vector.broadcast %cst_75 : f32 to vector<8x128xf32>
    %c0_76 = arith.constant 0 : index
    %c11 = arith.constant 11 : index
    %c0_77 = arith.constant 0 : index
    %c0_78 = arith.constant 0 : index
    %294 = vector.load %arg9[%c0_76, %c11, %c0_77, %c0_78] : memref<1x16x256x128xbf16, #tpu.memory_space<vmem>>, vector<1x1x256x128xbf16>
    %295 = vector.shape_cast %294 : vector<1x1x256x128xbf16> to vector<256x128xbf16>
    %cst_79 = arith.constant dense<0.000000e+00> : vector<8x128xf32>
    %296 = tpu.matmul %9, %295, %cst_79 {dimension_numbers = #tpu.dot_dimension_numbers<[1], [0], [0], [1], [0, 0, 1, 1], [], []>} : vector<8x256xbf16>, vector<256x128xbf16>, vector<8x128xf32> -> vector<8x128xf32>
    %297 = arith.addf %293, %296 : vector<8x128xf32>
    %298 = vector.extract_strided_slice %15 {offsets = [0, 11], sizes = [8, 1], strides = [1, 1]} : vector<8x16xf32> to vector<8x1xf32>
    %299 = vector.broadcast %298 : vector<8x1xf32> to vector<8x128xf32>
    %300 = arith.addf %297, %299 : vector<8x128xf32>
    %301 = vector.extract_strided_slice %24 {offsets = [11, 0], sizes = [1, 128], strides = [1, 1]} : vector<64x128xf32> to vector<1x128xf32>
    %302 = vector.broadcast %301 : vector<1x128xf32> to vector<8x128xf32>
    %303 = arith.mulf %302, %300 : vector<8x128xf32>
    %304 = arith.addf %280, %303 : vector<8x128xf32>
    %305 = vector.extract_strided_slice %24 {offsets = [27, 0], sizes = [1, 128], strides = [1, 1]} : vector<64x128xf32> to vector<1x128xf32>
    %306 = vector.broadcast %305 : vector<1x128xf32> to vector<8x128xf32>
    %307 = arith.mulf %306, %300 : vector<8x128xf32>
    %308 = arith.addf %284, %307 : vector<8x128xf32>
    %309 = vector.extract_strided_slice %24 {offsets = [43, 0], sizes = [1, 128], strides = [1, 1]} : vector<64x128xf32> to vector<1x128xf32>
    %310 = vector.broadcast %309 : vector<1x128xf32> to vector<8x128xf32>
    %311 = arith.mulf %310, %300 : vector<8x128xf32>
    %312 = arith.addf %288, %311 : vector<8x128xf32>
    %313 = vector.extract_strided_slice %24 {offsets = [59, 0], sizes = [1, 128], strides = [1, 1]} : vector<64x128xf32> to vector<1x128xf32>
    %314 = vector.broadcast %313 : vector<1x128xf32> to vector<8x128xf32>
    %315 = arith.mulf %314, %300 : vector<8x128xf32>
    %316 = arith.addf %292, %315 : vector<8x128xf32>
    %cst_80 = arith.constant 0.000000e+00 : f32
    %317 = vector.broadcast %cst_80 : f32 to vector<8x128xf32>
    %c0_81 = arith.constant 0 : index
    %c12 = arith.constant 12 : index
    %c0_82 = arith.constant 0 : index
    %c0_83 = arith.constant 0 : index
    %318 = vector.load %arg9[%c0_81, %c12, %c0_82, %c0_83] : memref<1x16x256x128xbf16, #tpu.memory_space<vmem>>, vector<1x1x256x128xbf16>
    %319 = vector.shape_cast %318 : vector<1x1x256x128xbf16> to vector<256x128xbf16>
    %cst_84 = arith.constant dense<0.000000e+00> : vector<8x128xf32>
    %320 = tpu.matmul %9, %319, %cst_84 {dimension_numbers = #tpu.dot_dimension_numbers<[1], [0], [0], [1], [0, 0, 1, 1], [], []>} : vector<8x256xbf16>, vector<256x128xbf16>, vector<8x128xf32> -> vector<8x128xf32>
    %321 = arith.addf %317, %320 : vector<8x128xf32>
    %322 = vector.extract_strided_slice %15 {offsets = [0, 12], sizes = [8, 1], strides = [1, 1]} : vector<8x16xf32> to vector<8x1xf32>
    %323 = vector.broadcast %322 : vector<8x1xf32> to vector<8x128xf32>
    %324 = arith.addf %321, %323 : vector<8x128xf32>
    %325 = vector.extract_strided_slice %24 {offsets = [12, 0], sizes = [1, 128], strides = [1, 1]} : vector<64x128xf32> to vector<1x128xf32>
    %326 = vector.broadcast %325 : vector<1x128xf32> to vector<8x128xf32>
    %327 = arith.mulf %326, %324 : vector<8x128xf32>
    %328 = arith.addf %304, %327 : vector<8x128xf32>
    %329 = vector.extract_strided_slice %24 {offsets = [28, 0], sizes = [1, 128], strides = [1, 1]} : vector<64x128xf32> to vector<1x128xf32>
    %330 = vector.broadcast %329 : vector<1x128xf32> to vector<8x128xf32>
    %331 = arith.mulf %330, %324 : vector<8x128xf32>
    %332 = arith.addf %308, %331 : vector<8x128xf32>
    %333 = vector.extract_strided_slice %24 {offsets = [44, 0], sizes = [1, 128], strides = [1, 1]} : vector<64x128xf32> to vector<1x128xf32>
    %334 = vector.broadcast %333 : vector<1x128xf32> to vector<8x128xf32>
    %335 = arith.mulf %334, %324 : vector<8x128xf32>
    %336 = arith.addf %312, %335 : vector<8x128xf32>
    %337 = vector.extract_strided_slice %24 {offsets = [60, 0], sizes = [1, 128], strides = [1, 1]} : vector<64x128xf32> to vector<1x128xf32>
    %338 = vector.broadcast %337 : vector<1x128xf32> to vector<8x128xf32>
    %339 = arith.mulf %338, %324 : vector<8x128xf32>
    %340 = arith.addf %316, %339 : vector<8x128xf32>
    %cst_85 = arith.constant 0.000000e+00 : f32
    %341 = vector.broadcast %cst_85 : f32 to vector<8x128xf32>
    %c0_86 = arith.constant 0 : index
    %c13 = arith.constant 13 : index
    %c0_87 = arith.constant 0 : index
    %c0_88 = arith.constant 0 : index
    %342 = vector.load %arg9[%c0_86, %c13, %c0_87, %c0_88] : memref<1x16x256x128xbf16, #tpu.memory_space<vmem>>, vector<1x1x256x128xbf16>
    %343 = vector.shape_cast %342 : vector<1x1x256x128xbf16> to vector<256x128xbf16>
    %cst_89 = arith.constant dense<0.000000e+00> : vector<8x128xf32>
    %344 = tpu.matmul %9, %343, %cst_89 {dimension_numbers = #tpu.dot_dimension_numbers<[1], [0], [0], [1], [0, 0, 1, 1], [], []>} : vector<8x256xbf16>, vector<256x128xbf16>, vector<8x128xf32> -> vector<8x128xf32>
    %345 = arith.addf %341, %344 : vector<8x128xf32>
    %346 = vector.extract_strided_slice %15 {offsets = [0, 13], sizes = [8, 1], strides = [1, 1]} : vector<8x16xf32> to vector<8x1xf32>
    %347 = vector.broadcast %346 : vector<8x1xf32> to vector<8x128xf32>
    %348 = arith.addf %345, %347 : vector<8x128xf32>
    %349 = vector.extract_strided_slice %24 {offsets = [13, 0], sizes = [1, 128], strides = [1, 1]} : vector<64x128xf32> to vector<1x128xf32>
    %350 = vector.broadcast %349 : vector<1x128xf32> to vector<8x128xf32>
    %351 = arith.mulf %350, %348 : vector<8x128xf32>
    %352 = arith.addf %328, %351 : vector<8x128xf32>
    %353 = vector.extract_strided_slice %24 {offsets = [29, 0], sizes = [1, 128], strides = [1, 1]} : vector<64x128xf32> to vector<1x128xf32>
    %354 = vector.broadcast %353 : vector<1x128xf32> to vector<8x128xf32>
    %355 = arith.mulf %354, %348 : vector<8x128xf32>
    %356 = arith.addf %332, %355 : vector<8x128xf32>
    %357 = vector.extract_strided_slice %24 {offsets = [45, 0], sizes = [1, 128], strides = [1, 1]} : vector<64x128xf32> to vector<1x128xf32>
    %358 = vector.broadcast %357 : vector<1x128xf32> to vector<8x128xf32>
    %359 = arith.mulf %358, %348 : vector<8x128xf32>
    %360 = arith.addf %336, %359 : vector<8x128xf32>
    %361 = vector.extract_strided_slice %24 {offsets = [61, 0], sizes = [1, 128], strides = [1, 1]} : vector<64x128xf32> to vector<1x128xf32>
    %362 = vector.broadcast %361 : vector<1x128xf32> to vector<8x128xf32>
    %363 = arith.mulf %362, %348 : vector<8x128xf32>
    %364 = arith.addf %340, %363 : vector<8x128xf32>
    %cst_90 = arith.constant 0.000000e+00 : f32
    %365 = vector.broadcast %cst_90 : f32 to vector<8x128xf32>
    %c0_91 = arith.constant 0 : index
    %c14 = arith.constant 14 : index
    %c0_92 = arith.constant 0 : index
    %c0_93 = arith.constant 0 : index
    %366 = vector.load %arg9[%c0_91, %c14, %c0_92, %c0_93] : memref<1x16x256x128xbf16, #tpu.memory_space<vmem>>, vector<1x1x256x128xbf16>
    %367 = vector.shape_cast %366 : vector<1x1x256x128xbf16> to vector<256x128xbf16>
    %cst_94 = arith.constant dense<0.000000e+00> : vector<8x128xf32>
    %368 = tpu.matmul %9, %367, %cst_94 {dimension_numbers = #tpu.dot_dimension_numbers<[1], [0], [0], [1], [0, 0, 1, 1], [], []>} : vector<8x256xbf16>, vector<256x128xbf16>, vector<8x128xf32> -> vector<8x128xf32>
    %369 = arith.addf %365, %368 : vector<8x128xf32>
    %370 = vector.extract_strided_slice %15 {offsets = [0, 14], sizes = [8, 1], strides = [1, 1]} : vector<8x16xf32> to vector<8x1xf32>
    %371 = vector.broadcast %370 : vector<8x1xf32> to vector<8x128xf32>
    %372 = arith.addf %369, %371 : vector<8x128xf32>
    %373 = vector.extract_strided_slice %24 {offsets = [14, 0], sizes = [1, 128], strides = [1, 1]} : vector<64x128xf32> to vector<1x128xf32>
    %374 = vector.broadcast %373 : vector<1x128xf32> to vector<8x128xf32>
    %375 = arith.mulf %374, %372 : vector<8x128xf32>
    %376 = arith.addf %352, %375 : vector<8x128xf32>
    %377 = vector.extract_strided_slice %24 {offsets = [30, 0], sizes = [1, 128], strides = [1, 1]} : vector<64x128xf32> to vector<1x128xf32>
    %378 = vector.broadcast %377 : vector<1x128xf32> to vector<8x128xf32>
    %379 = arith.mulf %378, %372 : vector<8x128xf32>
    %380 = arith.addf %356, %379 : vector<8x128xf32>
    %381 = vector.extract_strided_slice %24 {offsets = [46, 0], sizes = [1, 128], strides = [1, 1]} : vector<64x128xf32> to vector<1x128xf32>
    %382 = vector.broadcast %381 : vector<1x128xf32> to vector<8x128xf32>
    %383 = arith.mulf %382, %372 : vector<8x128xf32>
    %384 = arith.addf %360, %383 : vector<8x128xf32>
    %385 = vector.extract_strided_slice %24 {offsets = [62, 0], sizes = [1, 128], strides = [1, 1]} : vector<64x128xf32> to vector<1x128xf32>
    %386 = vector.broadcast %385 : vector<1x128xf32> to vector<8x128xf32>
    %387 = arith.mulf %386, %372 : vector<8x128xf32>
    %388 = arith.addf %364, %387 : vector<8x128xf32>
    %cst_95 = arith.constant 0.000000e+00 : f32
    %389 = vector.broadcast %cst_95 : f32 to vector<8x128xf32>
    %c0_96 = arith.constant 0 : index
    %c15 = arith.constant 15 : index
    %c0_97 = arith.constant 0 : index
    %c0_98 = arith.constant 0 : index
    %390 = vector.load %arg9[%c0_96, %c15, %c0_97, %c0_98] : memref<1x16x256x128xbf16, #tpu.memory_space<vmem>>, vector<1x1x256x128xbf16>
    %391 = vector.shape_cast %390 : vector<1x1x256x128xbf16> to vector<256x128xbf16>
    %cst_99 = arith.constant dense<0.000000e+00> : vector<8x128xf32>
    %392 = tpu.matmul %9, %391, %cst_99 {dimension_numbers = #tpu.dot_dimension_numbers<[1], [0], [0], [1], [0, 0, 1, 1], [], []>} : vector<8x256xbf16>, vector<256x128xbf16>, vector<8x128xf32> -> vector<8x128xf32>
    %393 = arith.addf %389, %392 : vector<8x128xf32>
    %394 = vector.extract_strided_slice %15 {offsets = [0, 15], sizes = [8, 1], strides = [1, 1]} : vector<8x16xf32> to vector<8x1xf32>
    %395 = vector.broadcast %394 : vector<8x1xf32> to vector<8x128xf32>
    %396 = arith.addf %393, %395 : vector<8x128xf32>
    %397 = vector.extract_strided_slice %24 {offsets = [15, 0], sizes = [1, 128], strides = [1, 1]} : vector<64x128xf32> to vector<1x128xf32>
    %398 = vector.broadcast %397 : vector<1x128xf32> to vector<8x128xf32>
    %399 = arith.mulf %398, %396 : vector<8x128xf32>
    %400 = arith.addf %376, %399 : vector<8x128xf32>
    %401 = vector.extract_strided_slice %24 {offsets = [31, 0], sizes = [1, 128], strides = [1, 1]} : vector<64x128xf32> to vector<1x128xf32>
    %402 = vector.broadcast %401 : vector<1x128xf32> to vector<8x128xf32>
    %403 = arith.mulf %402, %396 : vector<8x128xf32>
    %404 = arith.addf %380, %403 : vector<8x128xf32>
    %405 = vector.extract_strided_slice %24 {offsets = [47, 0], sizes = [1, 128], strides = [1, 1]} : vector<64x128xf32> to vector<1x128xf32>
    %406 = vector.broadcast %405 : vector<1x128xf32> to vector<8x128xf32>
    %407 = arith.mulf %406, %396 : vector<8x128xf32>
    %408 = arith.addf %384, %407 : vector<8x128xf32>
    %409 = vector.extract_strided_slice %24 {offsets = [63, 0], sizes = [1, 128], strides = [1, 1]} : vector<64x128xf32> to vector<1x128xf32>
    %410 = vector.broadcast %409 : vector<1x128xf32> to vector<8x128xf32>
    %411 = arith.mulf %410, %396 : vector<8x128xf32>
    %412 = arith.addf %388, %411 : vector<8x128xf32>
    %c0_100 = arith.constant 0 : index
    %c0_101 = arith.constant 0 : index
    %c0_102 = arith.constant 0 : index
    %413 = vector.load %arg10[%c0_100, %c0_101, %c0_102] : memref<1x32x128xf32, #tpu.memory_space<vmem>>, vector<1x8x128xf32>
    %414 = vector.shape_cast %413 : vector<1x8x128xf32> to vector<8x128xf32>
    %415 = vector.shape_cast %400 : vector<8x128xf32> to vector<1x8x128xf32>
    tpu.vector_store %arg10[%c0_100, %c0_101, %c0_102], %415 {strides = array<i32>} : memref<1x32x128xf32, #tpu.memory_space<vmem>>, vector<1x8x128xf32>,
    %c0_103 = arith.constant 0 : index
    %c8_104 = arith.constant 8 : index
    %c0_105 = arith.constant 0 : index
    %416 = vector.load %arg10[%c0_103, %c8_104, %c0_105] : memref<1x32x128xf32, #tpu.memory_space<vmem>>, vector<1x8x128xf32>
    %417 = vector.shape_cast %416 : vector<1x8x128xf32> to vector<8x128xf32>
    %418 = vector.shape_cast %404 : vector<8x128xf32> to vector<1x8x128xf32>
    tpu.vector_store %arg10[%c0_103, %c8_104, %c0_105], %418 {strides = array<i32>} : memref<1x32x128xf32, #tpu.memory_space<vmem>>, vector<1x8x128xf32>,
    %c0_106 = arith.constant 0 : index
    %c16 = arith.constant 16 : index
    %c0_107 = arith.constant 0 : index
    %419 = vector.load %arg10[%c0_106, %c16, %c0_107] : memref<1x32x128xf32, #tpu.memory_space<vmem>>, vector<1x8x128xf32>
    %420 = vector.shape_cast %419 : vector<1x8x128xf32> to vector<8x128xf32>
    %421 = vector.shape_cast %408 : vector<8x128xf32> to vector<1x8x128xf32>
    tpu.vector_store %arg10[%c0_106, %c16, %c0_107], %421 {strides = array<i32>} : memref<1x32x128xf32, #tpu.memory_space<vmem>>, vector<1x8x128xf32>,
    %c0_108 = arith.constant 0 : index
    %c24 = arith.constant 24 : index
    %c0_109 = arith.constant 0 : index
    %422 = vector.load %arg10[%c0_108, %c24, %c0_109] : memref<1x32x128xf32, #tpu.memory_space<vmem>>, vector<1x8x128xf32>
    %423 = vector.shape_cast %422 : vector<1x8x128xf32> to vector<8x128xf32>
    %424 = vector.shape_cast %412 : vector<8x128xf32> to vector<1x8x128xf32>
    tpu.vector_store %arg10[%c0_108, %c24, %c0_109], %424 {strides = array<i32>} : memref<1x32x128xf32, #tpu.memory_space<vmem>>, vector<1x8x128xf32>,
    return
  }
  func.func @transform_0(%arg0: i32, %arg1: i32) -> (i32, i32, i32) {
    %c0_i32 = arith.constant 0 : i32
    %c0_i32_0 = arith.constant 0 : i32
    return %arg1, %c0_i32, %arg0 : i32, i32, i32
  }
  func.func @transform_1(%arg0: i32, %arg1: i32) -> (i32, i32, i32) {
    %c0_i32 = arith.constant 0 : i32
    %c0_i32_0 = arith.constant 0 : i32
    %c0_i32_1 = arith.constant 0 : i32
    return %arg1, %c0_i32, %c0_i32_0 : i32, i32, i32
  }
  func.func @transform_2(%arg0: i32, %arg1: i32) -> (i32, i32, i32) {
    %c0_i32 = arith.constant 0 : i32
    %c0_i32_0 = arith.constant 0 : i32
    %c0_i32_1 = arith.constant 0 : i32
    return %arg1, %c0_i32, %c0_i32_0 : i32, i32, i32
  }
  func.func @transform_3(%arg0: i32, %arg1: i32) -> (i32, i32) {
    %c0_i32 = arith.constant 0 : i32
    %c0_i32_0 = arith.constant 0 : i32
    %c0_i32_1 = arith.constant 0 : i32
    return %c0_i32, %c0_i32_0 : i32, i32
  }
  func.func @transform_4(%arg0: i32, %arg1: i32) -> (i32, i32) {
    %c0_i32 = arith.constant 0 : i32
    %c0_i32_0 = arith.constant 0 : i32
    %c0_i32_1 = arith.constant 0 : i32
    return %c0_i32, %c0_i32_0 : i32, i32
  }
  func.func @transform_5(%arg0: i32, %arg1: i32) -> (i32, i32) {
    %c0_i32 = arith.constant 0 : i32
    %c0_i32_0 = arith.constant 0 : i32
    %c0_i32_1 = arith.constant 0 : i32
    return %c0_i32, %c0_i32_0 : i32, i32
  }
  func.func @transform_6(%arg0: i32, %arg1: i32) -> (i32, i32) {
    %c0_i32 = arith.constant 0 : i32
    %c0_i32_0 = arith.constant 0 : i32
    %c0_i32_1 = arith.constant 0 : i32
    return %c0_i32, %c0_i32_0 : i32, i32
  }
  func.func @transform_7(%arg0: i32, %arg1: i32) -> (i32, i32, i32, i32) {
    %c0_i32 = arith.constant 0 : i32
    %c0_i32_0 = arith.constant 0 : i32
    %c0_i32_1 = arith.constant 0 : i32
    %c0_i32_2 = arith.constant 0 : i32
    return %c0_i32, %c0_i32_0, %c0_i32_1, %arg0 : i32, i32, i32, i32
  }
  func.func @transform_8(%arg0: i32, %arg1: i32) -> (i32, i32, i32) {
    %c0_i32 = arith.constant 0 : i32
    %c0_i32_0 = arith.constant 0 : i32
    return %arg1, %c0_i32, %arg0 : i32, i32, i32
  }
}

</mosaic_0001>

<llo_original>
// kernel: lambda_layer_forward.2
$region0: #{lambda_layer_forward.2}
  #allocation0 [shape = 'u32[]', space=smem, size = 0x4, offset = 0x4, fixed_abs, tag = 'smem constant byte address 0x4 - core index']
  #allocation1 [shape = 'u32[144,128]{1,0:T(1,128)}', space=vmem, size = 0x12000, scoped, tag = 'internal scratch']
  #allocation2 [shape = 'f32[64,1]{1,0:T(8,128)}', space=vmem, size = 0x8000, scoped, tag = 'scratch operand']
  #allocation3 [shape = 'f32[64,1]{1,0:T(8,128)}', space=vmem, size = 0x8000, scoped, tag = 'scratch operand']
  #allocation4 [shape = 'f32[8,1]{1,0:T(8,128)}', space=vmem, size = 0x1000, scoped, tag = 'scratch operand']
  #allocation5 [shape = 'f32[8,1]{1,0:T(8,128)}', space=vmem, size = 0x1000, scoped, tag = 'scratch operand']
  %s0 = inlined_call_operand.vmem [shape: f32[2,32,256], index: 0, kind: input, shape index: {}]
  %s1 = inlined_call_operand.vmem [shape: f32[88,32], index: 1, kind: input, shape index: {}]
  %s2 = inlined_call_operand.vmem [shape: f32[64,1], index: 2, kind: input, shape index: {}]
  %s3 = inlined_call_operand.vmem [shape: f32[64,1], index: 3, kind: input, shape index: {}]
  %s4 = inlined_call_operand.vmem [shape: f32[8,1], index: 4, kind: input, shape index: {}]
  %s5 = inlined_call_operand.vmem [shape: f32[8,1], index: 5, kind: input, shape index: {}]
  %s6 = inlined_call_operand.vmem [shape: bf16[2,64,256], index: 6, kind: output, shape index: {0}]
  %s7 = inlined_call_operand.vmem [shape: bf16[2,16,256], index: 7, kind: output, shape index: {1}]
  %s8 = inlined_call_operand.vmem [shape: bf16[2,8,256], index: 8, kind: output, shape index: {2}]
  %s9 = inlined_call_operand.vmem [shape: f32[64,1], index: 9, kind: output, shape index: {3}]
  %s10 = inlined_call_operand.vmem [shape: f32[64,1], index: 10, kind: output, shape index: {4}]
  %s11 = inlined_call_operand.vmem [shape: f32[8,1], index: 11, kind: output, shape index: {5}]
  %s12 = inlined_call_operand.vmem [shape: f32[8,1], index: 12, kind: output, shape index: {6}]
  %13 = xla_tuple %s6, %s7, %s8, %s9, %s10, %s11, %s12
  %s14 = sld [smem:[#allocation0]]
  $region113: #{lambda_layer_forward.2} parent=0
    _
  %s16 = ssub.s32 1, %s14
  %s17 = scalar_select 0, %s16, %s14
  loop: start=0, step=1, limit=4
  $region2: #{lambda_layer_forward.2} parent=0 // loop_pre_header
    _
  $region3: #{lambda_layer_forward.2} parent=0 // loop_header
    %s19 = sphi 0, %s23
    %p20 = scmp.ge.s32.totalorder %s19, 4
    %s29 = sphi 0, %s31
    %s32 = sphi 0, %s29
    %s33 = sphi 0, %s32
    %s49 = sphi 0, %s33
    %s53 = sphi 0, %s53
    %s55 = sphi 0, %s53
    %s56 = sphi 0, %s55
    %s70 = sphi 0, %s56
    %s74 = sphi 0, %s74
    %s76 = sphi 0, %s74
    %s77 = sphi 0, %s76
    %s91 = sphi 0, %s77
    %s95 = sphi 0, %s95
    %s97 = sphi 0, %s95
    %s98 = sphi 0, %s97
    %s112 = sphi 0, %s98
    %s116 = sphi 0, %s116
    %s118 = sphi 0, %s116
    %s119 = sphi 0, %s118
    %s133 = sphi 0, %s119
    %s137 = sphi 0, %s137
    %s139 = sphi 0, %s137
    %s140 = sphi 0, %s139
    %s154 = sphi 0, %s140
    %s160 = sphi 0, %s162
    %s163 = sphi 0, %s160
    %s164 = sphi 0, %s163
    %s180 = sphi 0, %s164
    %s186 = sphi 0, %s188
    %s189 = sphi 0, %s186
    %s190 = sphi 0, %s189
    %s206 = sphi 0, %s190
    %s212 = sphi 0, %s214
    %s215 = sphi 0, %s212
    %s216 = sphi 0, %s215
    %s232 = sphi 0, %s216
    %s236 = sphi 0, %s236
    %s238 = sphi 0, %s236
    %s239 = sphi 0, %s238
    %s253 = sphi 0, %s239
    %s257 = sphi 0, %s257
    %s259 = sphi 0, %s257
    %s260 = sphi 0, %s259
    %s274 = sphi 0, %s260
    %s278 = sphi 0, %s278
    %s280 = sphi 0, %s278
    %s281 = sphi 0, %s280
    %s295 = sphi 0, %s281
    %s299 = sphi 0, %s299
    %s301 = sphi 0, %s299
    %s302 = sphi 0, %s301
    %s316 = sphi 0, %s302
  $region4: #{lambda_layer_forward.2} parent=0 // loop_header_branch
    %22 = sbr.rel (%p20) target = $region8
  $region5: #{lambda_layer_forward.2} parent=0 // loop_body
    %s24 = ssub.s32 %s19, 1
    %s25 = ssub.s32 %s19, 2
    %s26 = sadd.s32 %s19, 1
    %s27 = ssub.s32 %s19, %s26
    %p28 = scmp.eq.s32.totalorder %s27, 0
    %s30 = sadd.s32 %s29, 1
    %s31 = scalar_select %p28, %s29, %s30
    %p34 = pneg %p28
    %p35 = scmp.eq.s32.totalorder %s19, 1
    %p36 = por %p34, %p35
    %p37 = scmp.ne.s32.totalorder %s29, %s32
    %p38 = scmp.eq.s32.totalorder %s19, 0
    %p39 = por %p37, %p38
    %p40 = scmp.ne.s32.totalorder %s29, %s32
    %p41 = scmp.eq.s32.totalorder %s24, 1
    %p42 = por %p40, %p41
    %p43 = scmp.ne.s32.totalorder %s32, %s33
    %p44 = scmp.eq.s32.totalorder %s24, 0
    %p45 = por %p43, %p44
    %p46 = scmp.ne.s32.totalorder %s32, %s33
    %p47 = scmp.eq.s32.totalorder %s25, 1
    %p48 = por %p46, %p47
    %p50 = scmp.ne.s32.totalorder %s33, %s49
    %p51 = scmp.eq.s32.totalorder %s25, 0
    %p52 = por %p50, %p51
    %s54 = sadd.s32 %s53, 1
    %p57 = scmp.eq.s32.totalorder %s19, 1
    %p58 = scmp.ne.s32.totalorder %s53, %s55
    %p59 = scmp.eq.s32.totalorder %s19, 0
    %p60 = por %p58, %p59
    %p61 = scmp.ne.s32.totalorder %s53, %s55
    %p62 = scmp.eq.s32.totalorder %s24, 1
    %p63 = por %p61, %p62
    %p64 = scmp.ne.s32.totalorder %s55, %s56
    %p65 = scmp.eq.s32.totalorder %s24, 0
    %p66 = por %p64, %p65
    %p67 = scmp.ne.s32.totalorder %s55, %s56
    %p68 = scmp.eq.s32.totalorder %s25, 1
    %p69 = por %p67, %p68
    %p71 = scmp.ne.s32.totalorder %s56, %s70
    %p72 = scmp.eq.s32.totalorder %s25, 0
    %p73 = por %p71, %p72
    %s75 = sadd.s32 %s74, 1
    %p78 = scmp.eq.s32.totalorder %s19, 1
    %p79 = scmp.ne.s32.totalorder %s74, %s76
    %p80 = scmp.eq.s32.totalorder %s19, 0
    %p81 = por %p79, %p80
    %p82 = scmp.ne.s32.totalorder %s74, %s76
    %p83 = scmp.eq.s32.totalorder %s24, 1
    %p84 = por %p82, %p83
    %p85 = scmp.ne.s32.totalorder %s76, %s77
    %p86 = scmp.eq.s32.totalorder %s24, 0
    %p87 = por %p85, %p86
    %p88 = scmp.ne.s32.totalorder %s76, %s77
    %p89 = scmp.eq.s32.totalorder %s25, 1
    %p90 = por %p88, %p89
    %p92 = scmp.ne.s32.totalorder %s77, %s91
    %p93 = scmp.eq.s32.totalorder %s25, 0
    %p94 = por %p92, %p93
    %s96 = sadd.s32 %s95, 1
    %p99 = scmp.eq.s32.totalorder %s19, 1
    %p100 = scmp.ne.s32.totalorder %s95, %s97
    %p101 = scmp.eq.s32.totalorder %s19, 0
    %p102 = por %p100, %p101
    %p103 = scmp.ne.s32.totalorder %s95, %s97
    %p104 = scmp.eq.s32.totalorder %s24, 1
    %p105 = por %p103, %p104
    %p106 = scmp.ne.s32.totalorder %s97, %s98
    %p107 = scmp.eq.s32.totalorder %s24, 0
    %p108 = por %p106, %p107
    %p109 = scmp.ne.s32.totalorder %s97, %s98
    %p110 = scmp.eq.s32.totalorder %s25, 1
    %p111 = por %p109, %p110
    %p113 = scmp.ne.s32.totalorder %s98, %s112
    %p114 = scmp.eq.s32.totalorder %s25, 0
    %p115 = por %p113, %p114
    %s117 = sadd.s32 %s116, 1
    %p120 = scmp.eq.s32.totalorder %s19, 1
    %p121 = scmp.ne.s32.totalorder %s116, %s118
    %p122 = scmp.eq.s32.totalorder %s19, 0
    %p123 = por %p121, %p122
    %p124 = scmp.ne.s32.totalorder %s116, %s118
    %p125 = scmp.eq.s32.totalorder %s24, 1
    %p126 = por %p124, %p125
    %p127 = scmp.ne.s32.totalorder %s118, %s119
    %p128 = scmp.eq.s32.totalorder %s24, 0
    %p129 = por %p127, %p128
    %p130 = scmp.ne.s32.totalorder %s118, %s119
    %p131 = scmp.eq.s32.totalorder %s25, 1
    %p132 = por %p130, %p131
    %p134 = scmp.ne.s32.totalorder %s119, %s133
    %p135 = scmp.eq.s32.totalorder %s25, 0
    %p136 = por %p134, %p135
    %s138 = sadd.s32 %s137, 1
    %p141 = scmp.eq.s32.totalorder %s19, 1
    %p142 = scmp.ne.s32.totalorder %s137, %s139
    %p143 = scmp.eq.s32.totalorder %s19, 0
    %p144 = por %p142, %p143
    %p145 = scmp.ne.s32.totalorder %s137, %s139
    %p146 = scmp.eq.s32.totalorder %s24, 1
    %p147 = por %p145, %p146
    %p148 = scmp.ne.s32.totalorder %s139, %s140
    %p149 = scmp.eq.s32.totalorder %s24, 0
    %p150 = por %p148, %p149
    %p151 = scmp.ne.s32.totalorder %s139, %s140
    %p152 = scmp.eq.s32.totalorder %s25, 1
    %p153 = por %p151, %p152
    %p155 = scmp.ne.s32.totalorder %s140, %s154
    %p156 = scmp.eq.s32.totalorder %s25, 0
    %p157 = por %p155, %p156
    %s158 = ssub.s32 %s19, %s26
    %p159 = scmp.eq.s32.totalorder %s158, 0
    %s161 = sadd.s32 %s160, 1
    %s162 = scalar_select %p159, %s160, %s161
    %p165 = pneg %p159
    %p166 = scmp.eq.s32.totalorder %s19, 1
    %p167 = por %p165, %p166
    %p168 = scmp.ne.s32.totalorder %s160, %s163
    %p169 = scmp.eq.s32.totalorder %s19, 0
    %p170 = por %p168, %p169
    %p171 = scmp.ne.s32.totalorder %s160, %s163
    %p172 = scmp.eq.s32.totalorder %s24, 1
    %p173 = por %p171, %p172
    %p174 = scmp.ne.s32.totalorder %s163, %s164
    %p175 = scmp.eq.s32.totalorder %s24, 0
    %p176 = por %p174, %p175
    %p177 = scmp.ne.s32.totalorder %s163, %s164
    %p178 = scmp.eq.s32.totalorder %s25, 1
    %p179 = por %p177, %p178
    %p181 = scmp.ne.s32.totalorder %s164, %s180
    %p182 = scmp.eq.s32.totalorder %s25, 0
    %p183 = por %p181, %p182
    %s184 = ssub.s32 %s19, %s26
    %p185 = scmp.eq.s32.totalorder %s184, 0
    %s187 = sadd.s32 %s186, 1
    %s188 = scalar_select %p185, %s186, %s187
    %p191 = pneg %p185
    %p192 = scmp.eq.s32.totalorder %s19, 1
    %p193 = por %p191, %p192
    %p194 = scmp.ne.s32.totalorder %s186, %s189
    %p195 = scmp.eq.s32.totalorder %s19, 0
    %p196 = por %p194, %p195
    %p197 = scmp.ne.s32.totalorder %s186, %s189
    %p198 = scmp.eq.s32.totalorder %s24, 1
    %p199 = por %p197, %p198
    %p200 = scmp.ne.s32.totalorder %s189, %s190
    %p201 = scmp.eq.s32.totalorder %s24, 0
    %p202 = por %p200, %p201
    %p203 = scmp.ne.s32.totalorder %s189, %s190
    %p204 = scmp.eq.s32.totalorder %s25, 1
    %p205 = por %p203, %p204
    %p207 = scmp.ne.s32.totalorder %s190, %s206
    %p208 = scmp.eq.s32.totalorder %s25, 0
    %p209 = por %p207, %p208
    %s210 = ssub.s32 %s19, %s26
    %p211 = scmp.eq.s32.totalorder %s210, 0
    %s213 = sadd.s32 %s212, 1
    %s214 = scalar_select %p211, %s212, %s213
    %p217 = pneg %p211
    %p218 = scmp.eq.s32.totalorder %s19, 1
    %p219 = por %p217, %p218
    %p220 = scmp.ne.s32.totalorder %s212, %s215
    %p221 = scmp.eq.s32.totalorder %s19, 0
    %p222 = por %p220, %p221
    %p223 = scmp.ne.s32.totalorder %s212, %s215
    %p224 = scmp.eq.s32.totalorder %s24, 1
    %p225 = por %p223, %p224
    %p226 = scmp.ne.s32.totalorder %s215, %s216
    %p227 = scmp.eq.s32.totalorder %s24, 0
    %p228 = por %p226, %p227
    %p229 = scmp.ne.s32.totalorder %s215, %s216
    %p230 = scmp.eq.s32.totalorder %s25, 1
    %p231 = por %p229, %p230
    %p233 = scmp.ne.s32.totalorder %s216, %s232
    %p234 = scmp.eq.s32.totalorder %s25, 0
    %p235 = por %p233, %p234
    %s237 = sadd.s32 %s236, 1
    %p240 = scmp.eq.s32.totalorder %s19, 1
    %p241 = scmp.ne.s32.totalorder %s236, %s238
    %p242 = scmp.eq.s32.totalorder %s19, 0
    %p243 = por %p241, %p242
    %p244 = scmp.ne.s32.totalorder %s236, %s238
    %p245 = scmp.eq.s32.totalorder %s24, 1
    %p246 = por %p244, %p245
    %p247 = scmp.ne.s32.totalorder %s238, %s239
    %p248 = scmp.eq.s32.totalorder %s24, 0
    %p249 = por %p247, %p248
    %p250 = scmp.ne.s32.totalorder %s238, %s239
    %p251 = scmp.eq.s32.totalorder %s25, 1
    %p252 = por %p250, %p251
    %p254 = scmp.ne.s32.totalorder %s239, %s253
    %p255 = scmp.eq.s32.totalorder %s25, 0
    %p256 = por %p254, %p255
    %s258 = sadd.s32 %s257, 1
    %p261 = scmp.eq.s32.totalorder %s19, 1
    %p262 = scmp.ne.s32.totalorder %s257, %s259
    %p263 = scmp.eq.s32.totalorder %s19, 0
    %p264 = por %p262, %p263
    %p265 = scmp.ne.s32.totalorder %s257, %s259
    %p266 = scmp.eq.s32.totalorder %s24, 1
    %p267 = por %p265, %p266
    %p268 = scmp.ne.s32.totalorder %s259, %s260
    %p269 = scmp.eq.s32.totalorder %s24, 0
    %p270 = por %p268, %p269
    %p271 = scmp.ne.s32.totalorder %s259, %s260
    %p272 = scmp.eq.s32.totalorder %s25, 1
    %p273 = por %p271, %p272
    %p275 = scmp.ne.s32.totalorder %s260, %s274
    %p276 = scmp.eq.s32.totalorder %s25, 0
    %p277 = por %p275, %p276
    %s279 = sadd.s32 %s278, 1
    %p282 = scmp.eq.s32.totalorder %s19, 1
    %p283 = scmp.ne.s32.totalorder %s278, %s280
    %p284 = scmp.eq.s32.totalorder %s19, 0
    %p285 = por %p283, %p284
    %p286 = scmp.ne.s32.totalorder %s278, %s280
    %p287 = scmp.eq.s32.totalorder %s24, 1
    %p288 = por %p286, %p287
    %p289 = scmp.ne.s32.totalorder %s280, %s281
    %p290 = scmp.eq.s32.totalorder %s24, 0
    %p291 = por %p289, %p290
    %p292 = scmp.ne.s32.totalorder %s280, %s281
    %p293 = scmp.eq.s32.totalorder %s25, 1
    %p294 = por %p292, %p293
    %p296 = scmp.ne.s32.totalorder %s281, %s295
    %p297 = scmp.eq.s32.totalorder %s25, 0
    %p298 = por %p296, %p297
    %s300 = sadd.s32 %s299, 1
    %p303 = scmp.eq.s32.totalorder %s19, 1
    %p304 = scmp.ne.s32.totalorder %s299, %s301
    %p305 = scmp.eq.s32.totalorder %s19, 0
    %p306 = por %p304, %p305
    %p307 = scmp.ne.s32.totalorder %s299, %s301
    %p308 = scmp.eq.s32.totalorder %s24, 1
    %p309 = por %p307, %p308
    %p310 = scmp.ne.s32.totalorder %s301, %s302
    %p311 = scmp.eq.s32.totalorder %s24, 0
    %p312 = por %p310, %p311
    %p313 = scmp.ne.s32.totalorder %s301, %s302
    %p314 = scmp.eq.s32.totalorder %s25, 1
    %p315 = por %p313, %p314
    %p317 = scmp.ne.s32.totalorder %s302, %s316
    %p318 = scmp.eq.s32.totalorder %s25, 0
    %p319 = por %p317, %p318
    %p320 = scmp.le.s32.totalorder 1, %s19
    %p321 = scmp.lt.s32.totalorder %s19, 3
    %p322 = pnand %p320, %p321
    %p323 = pneg %p322
    // Predicated region
    $region9: #{lambda_layer_forward.2} parent=5 // pred_check
      _
    $region10: #{lambda_layer_forward.2} parent=5 // pred_check_branch
      %325 = sbr.rel (%p322) target = $region12
    $region11: #{lambda_layer_forward.2} parent=5 // pred_region
      %s326 = ssub.s32 %s19, 1
      // Predicated region
      $region13: #{lambda_layer_forward.2} parent=11 // pred_check
        %p327 = pneg %p66
      $region14: #{lambda_layer_forward.2} parent=11 // pred_check_branch
        %329 = sbr.rel (%p327) target = $region16
      $region15: #{lambda_layer_forward.2} parent=11 // pred_region
        _
      $region16: #{lambda_layer_forward.2} parent=11 // pred_fallthru
        _
      // Predicated region
      $region17: #{lambda_layer_forward.2} parent=11 // pred_check
        %p330 = pneg %p87
      $region18: #{lambda_layer_forward.2} parent=11 // pred_check_branch
        %332 = sbr.rel (%p330) target = $region20
      $region19: #{lambda_layer_forward.2} parent=11 // pred_region
        _
      $region20: #{lambda_layer_forward.2} parent=11 // pred_fallthru
        _
      // Predicated region
      $region21: #{lambda_layer_forward.2} parent=11 // pred_check
        %p333 = pneg %p108
      $region22: #{lambda_layer_forward.2} parent=11 // pred_check_branch
        %335 = sbr.rel (%p333) target = $region24
      $region23: #{lambda_layer_forward.2} parent=11 // pred_region
        _
      $region24: #{lambda_layer_forward.2} parent=11 // pred_fallthru
        _
      // Predicated region
      $region25: #{lambda_layer_forward.2} parent=11 // pred_check
        %p336 = pneg %p129
      $region26: #{lambda_layer_forward.2} parent=11 // pred_check_branch
        %338 = sbr.rel (%p336) target = $region28
      $region27: #{lambda_layer_forward.2} parent=11 // pred_region
        _
      $region28: #{lambda_layer_forward.2} parent=11 // pred_fallthru
        _
      // Predicated region
      $region29: #{lambda_layer_forward.2} parent=11 // pred_check
        %p339 = pneg %p150
      $region30: #{lambda_layer_forward.2} parent=11 // pred_check_branch
        %341 = sbr.rel (%p339) target = $region32
      $region31: #{lambda_layer_forward.2} parent=11 // pred_region
        _
      $region32: #{lambda_layer_forward.2} parent=11 // pred_fallthru
        _
    $region12: #{lambda_layer_forward.2} parent=5 // pred_fallthru
      _
    %p342 = scmp.lt.s32.totalorder %s19, 2
    // Predicated region
    $region33: #{lambda_layer_forward.2} parent=5 // pred_check
      %p343 = pneg %p342
    $region34: #{lambda_layer_forward.2} parent=5 // pred_check_branch
      %345 = sbr.rel (%p343) target = $region36
    $region35: #{lambda_layer_forward.2} parent=5 // pred_region
      // Predicated region
      $region37: #{lambda_layer_forward.2} parent=35 // pred_check
        %p346 = pneg %p39
      $region38: #{lambda_layer_forward.2} parent=35 // pred_check_branch
        %348 = sbr.rel (%p346) target = $region40
      $region39: #{lambda_layer_forward.2} parent=35 // pred_region
        %p349 = scmp.lt.s32.totalorder %s19, 1
        %s350 = scalar_select %p349, %s19, 1
        %s351 = smul.addr %s350, 8
        %s352 = smul.addr %s351, 8
        %s353 = scalar_lea.vmem %s0, %s352
      $region40: #{lambda_layer_forward.2} parent=35 // pred_fallthru
        _
    $region36: #{lambda_layer_forward.2} parent=5 // pred_fallthru
      _
    %p354 = scmp.le.s32.totalorder 1, %s19
    %p355 = scmp.lt.s32.totalorder %s19, 3
    %p356 = pnand %p354, %p355
    %p357 = pneg %p356
    // Predicated region
    $region41: #{lambda_layer_forward.2} parent=5 // pred_check
      _
    $region42: #{lambda_layer_forward.2} parent=5 // pred_check_branch
      %359 = sbr.rel (%p356) target = $region44
    $region43: #{lambda_layer_forward.2} parent=5 // pred_region
      %s360 = ssub.s32 %s19, 1
      %p361 = scmp.lt.s32.totalorder %s24, 1
      %s362 = scalar_select %p361, %s24, 1
      %s363 = smul.addr %s362, 8
      %s364 = smul.addr %s363, 8
      %s365 = scalar_lea.vmem %s0, %s364
      %p366 = pneg %p45
      %p367 = pneg %p42
      %p368 = pneg %p66
      %p369 = pneg %p63
      %p370 = pneg %p87
      %p371 = pneg %p84
      %p372 = pneg %p108
      %p373 = pneg %p105
      %p374 = pneg %p129
      %p375 = pneg %p126
      %p376 = pneg %p150
      %p377 = pneg %p147
      %p378 = pneg %p176
      %p379 = pneg %p173
      %p380 = scmp.lt.s32.totalorder %s24, 1
      %s381 = scalar_select %p380, %s24, 1
      %s382 = smul.addr %s381, 16
      %s383 = smul.addr %s382, 4
      %s384 = scalar_lea.vmem %s6, %s383
      %p385 = pneg %p202
      %p386 = pneg %p199
      %p387 = scmp.lt.s32.totalorder %s24, 1
      %s388 = scalar_select %p387, %s24, 1
      %s389 = smul.addr %s388, 4
      %s390 = smul.addr %s389, 4
      %s391 = scalar_lea.vmem %s7, %s390
      %p392 = pneg %p228
      %p393 = pneg %p225
      %p394 = scmp.lt.s32.totalorder %s24, 1
      %s395 = scalar_select %p394, %s24, 1
      %s396 = smul.addr %s395, 2
      %s397 = smul.addr %s396, 4
      %s398 = scalar_lea.vmem %s8, %s397
      %p399 = pneg %p249
      %p400 = pneg %p246
      %p401 = pneg %p270
      %p402 = pneg %p267
      %p403 = pneg %p291
      %p404 = pneg %p288
      %p405 = pneg %p312
      %p406 = pneg %p309
      %p407 = scmp.lt.s32.totalorder %s24, 1
      %s408 = scalar_select %p407, %s24, 1
      %s409 = smul.addr %s408, 8
      %s410 = smul.addr %s409, 8
      %s411 = scalar_lea.vmem %s0, %s410
      %p412 = scmp.lt.s32.totalorder %s24, 1
      %s413 = scalar_select %p412, %s24, 1
      %s414 = smul.addr %s413, 16
      %s415 = smul.addr %s414, 4
      %s416 = scalar_lea.vmem %s6, %s415
      %p417 = scmp.lt.s32.totalorder %s24, 1
      %s418 = scalar_select %p417, %s24, 1
      %s419 = smul.addr %s418, 4
      %s420 = smul.addr %s419, 4
      %s421 = scalar_lea.vmem %s7, %s420
      %p422 = scmp.lt.s32.totalorder %s24, 1
      %s423 = scalar_select %p422, %s24, 1
      %s424 = smul.addr %s423, 2
      %s425 = smul.addr %s424, 4
      %s426 = scalar_lea.vmem %s8, %s425
      %p427 = scmp.eq.s32.totalorder %s24, 0
      // Predicated region
      $region45: #{lambda_layer_forward.2} parent=43 // pred_check
        %p428 = pneg %p427
      $region46: #{lambda_layer_forward.2} parent=43 // pred_check_branch
        %430 = sbr.rel (%p428) target = $region48
      $region47: #{lambda_layer_forward.2} parent=43 // pred_region
        %vm431 = vcmask 7168
        %432 = vst.msk [vmem:[#allocation2] sm:$0xff] %vm431, 0.0
        %433 = vst.msk [vmem:[#allocation2 + $0x8] sm:$0xff] %vm431, 0.0
        %434 = vst.msk [vmem:[#allocation2 + $0x10] sm:$0xff] %vm431, 0.0
        %435 = vst.msk [vmem:[#allocation2 + $0x18] sm:$0xff] %vm431, 0.0
        %436 = vst.msk [vmem:[#allocation2 + $0x20] sm:$0xff] %vm431, 0.0
        %437 = vst.msk [vmem:[#allocation2 + $0x28] sm:$0xff] %vm431, 0.0
        %438 = vst.msk [vmem:[#allocation2 + $0x30] sm:$0xff] %vm431, 0.0
        %439 = vst.msk [vmem:[#allocation2 + $0x38] sm:$0xff] %vm431, 0.0
        %440 = vst.msk [vmem:[#allocation3] sm:$0xff] %vm431, 0.0
        %441 = vst.msk [vmem:[#allocation3 + $0x8] sm:$0xff] %vm431, 0.0
        %442 = vst.msk [vmem:[#allocation3 + $0x10] sm:$0xff] %vm431, 0.0
        %443 = vst.msk [vmem:[#allocation3 + $0x18] sm:$0xff] %vm431, 0.0
        %444 = vst.msk [vmem:[#allocation3 + $0x20] sm:$0xff] %vm431, 0.0
        %445 = vst.msk [vmem:[#allocation3 + $0x28] sm:$0xff] %vm431, 0.0
        %446 = vst.msk [vmem:[#allocation3 + $0x30] sm:$0xff] %vm431, 0.0
        %447 = vst.msk [vmem:[#allocation3 + $0x38] sm:$0xff] %vm431, 0.0
        %448 = vst.msk [vmem:[#allocation4] sm:$0xff] %vm431, 0.0
        %449 = vst.msk [vmem:[#allocation5] sm:$0xff] %vm431, 0.0
      $region48: #{lambda_layer_forward.2} parent=43 // pred_fallthru
        _
      %v450 = vld [vmem:[%s1] sm:$0xff]
      %v451 = vld [vmem:[%s1 + $0x8] sm:$0xff]
      %v452 = vld [vmem:[%s1 + $0x10] sm:$0xff]
      %v453 = vld [vmem:[%s1 + $0x18] sm:$0xff]
      %v454 = vld [vmem:[%s1 + $0x20] sm:$0xff]
      %v455 = vld [vmem:[%s1 + $0x28] sm:$0xff]
      %v456 = vld [vmem:[%s1 + $0x30] sm:$0xff]
      %v457 = vld [vmem:[%s1 + $0x38] sm:$0xff]
      %v458 = vld [vmem:[%s1 + $0x40] sm:$0xff]
      %v459 = vld [vmem:[%s1 + $0x48] sm:$0xff]
      %v460 = vld [vmem:[%s1 + $0x50] sm:$0xff]
      %v461 = vld [vmem:[%s411] sm:$0xff]
      %v462 = vld [vmem:[%s411 + $0x8] sm:$0xff]
      %v463 = vld [vmem:[%s411 + $0x10] sm:$0xff]
      %v464 = vld [vmem:[%s411 + $0x18] sm:$0xff]
      %v465 = vld [vmem:[%s411 + $0x20] sm:$0xff]
      %v466 = vld [vmem:[%s411 + $0x28] sm:$0xff]
      %v467 = vld [vmem:[%s411 + $0x30] sm:$0xff]
      %v468 = vld [vmem:[%s411 + $0x38] sm:$0xff]
      %vm469 = vcmask 261120
      %v471 = vsel %vm469, %v450, 0
      %v474 = vsel %vm469, %v451, 0
      %v477 = vsel %vm469, %v452, 0
      %v480 = vsel %vm469, %v453, 0
      %v483 = vsel %vm469, %v454, 0
      %v486 = vsel %vm469, %v455, 0
      %v489 = vsel %vm469, %v456, 0
      %v492 = vsel %vm469, %v457, 0
      %v495 = vsel %vm469, %v458, 0
      %v498 = vsel %vm469, %v459, 0
      %v501 = vsel %vm469, %v460, 0
      %503 = vmatprep.subr.mxu0 %v462
      %504 = vmatpush1.msra.mxu0 %v461
      %505 = vmatprep.subr.mxu0 %v464
      %506 = vmatpush1.msra.mxu0 %v463
      %507 = vmatprep.subr.mxu0 %v466
      %508 = vmatpush1.msra.mxu0 %v465
      %509 = vmatprep.subr.mxu0 %v468
      %510 = vmatpush1.msra.mxu0 %v467
      %511 = vmatprep.subr.mxu0 0.0
      %512 = vmatpush1.msra.mxu0 0.0
      %513 = vmatprep.subr.mxu0 0.0
      %514 = vmatpush1.msra.mxu0 0.0
      %515 = vmatprep.subr.mxu0 0.0
      %516 = vmatpush1.msra.mxu0 0.0
      %517 = vmatprep.subr.mxu0 0.0
      %518 = vmatpush1.msra.mxu0 0.0
      %519 = vmatprep.subr.mxu0 0.0
      %520 = vmatpush1.msra.mxu0 0.0
      %521 = vmatprep.subr.mxu0 0.0
      %522 = vmatpush1.msra.mxu0 0.0
      %523 = vmatprep.subr.mxu0 0.0
      %524 = vmatpush1.msra.mxu0 0.0
      %525 = vmatprep.subr.mxu0 0.0
      %526 = vmatpush1.msra.mxu0 0.0
      %527 = vmatprep.subr.mxu0 0.0
      %528 = vmatpush1.msra.mxu0 0.0
      %529 = vmatprep.subr.mxu0 0.0
      %530 = vmatpush1.msra.mxu0 0.0
      %531 = vmatprep.subr.mxu0 0.0
      %532 = vmatpush1.msra.mxu0 0.0
      %533 = vmatprep.subr.mxu0 0.0
      %534 = vmatpush1.msra.mxu0 0.0
      %535 = vmatprep.subr.mxu0 0.0
      %536 = vmatpush1.msra.mxu0 0.0
      %537 = vmatprep.subr.mxu0 0.0
      %538 = vmatpush1.msra.mxu0 0.0
      %539 = vmatprep.subr.mxu0 0.0
      %540 = vmatpush1.msra.mxu0 0.0
      %541 = vmatprep.subr.mxu0 0.0
      %542 = vmatpush1.msra.mxu0 0.0
      %543 = vmatprep.subr.mxu0 0.0
      %544 = vmatpush1.msra.mxu0 0.0
      %545 = vmatprep.subr.mxu0 0.0
      %546 = vmatpush1.msra.mxu0 0.0
      %547 = vmatprep.subr.mxu0 0.0
      %548 = vmatpush1.msra.mxu0 0.0
      %549 = vmatprep.subr.mxu0 0.0
      %550 = vmatpush1.msra.mxu0 0.0
      %551 = vmatprep.subr.mxu0 0.0
      %552 = vmatpush1.msra.mxu0 0.0
      %553 = vmatprep.subr.mxu0 0.0
      %554 = vmatpush1.msra.mxu0 0.0
      %555 = vmatprep.subr.mxu0 0.0
      %556 = vmatpush1.msra.mxu0 0.0
      %557 = vmatprep.subr.mxu0 0.0
      %558 = vmatpush1.msra.mxu0 0.0
      %559 = vmatprep.subr.mxu0 0.0
      %560 = vmatpush1.msra.mxu0 0.0
      %561 = vmatprep.subr.mxu0 0.0
      %562 = vmatpush1.msra.mxu0 0.0
      %563 = vmatprep.subr.mxu0 0.0
      %564 = vmatpush1.msra.mxu0 0.0
      %565 = vmatprep.subr.mxu0 0.0
      %566 = vmatpush1.msra.mxu0 0.0
      %567 = vmatprep.mubr.f32.mxu0 0.0
      %568 = vmatmul.mubr.f32.gmra.mrb[0].mxu0 %v471
      %v569 = vpop.f32.mrb[0].mxu0
      %v570 = vadd.f32 0.0, %v569
      %v571 = vpop.f32.mrb[0].mxu0
      %v572 = vadd.f32 0.0, %v571
      %573 = vmatprep.mubr.f32.mxu0 0.0
      %574 = vmatmul.mubr.f32.gmra.mrb[0].mxu0 %v474
      %v575 = vpop.f32.mrb[0].mxu0
      %v576 = vadd.f32 0.0, %v575
      %v577 = vpop.f32.mrb[0].mxu0
      %v578 = vadd.f32 0.0, %v577
      %579 = vmatprep.mubr.f32.mxu0 0.0
      %580 = vmatmul.mubr.f32.gmra.mrb[0].mxu0 %v477
      %v581 = vpop.f32.mrb[0].mxu0
      %v582 = vadd.f32 0.0, %v581
      %v583 = vpop.f32.mrb[0].mxu0
      %v584 = vadd.f32 0.0, %v583
      %585 = vmatprep.mubr.f32.mxu0 0.0
      %586 = vmatmul.mubr.f32.gmra.mrb[0].mxu0 %v480
      %v587 = vpop.f32.mrb[0].mxu0
      %v588 = vadd.f32 0.0, %v587
      %v589 = vpop.f32.mrb[0].mxu0
      %v590 = vadd.f32 0.0, %v589
      %591 = vmatprep.mubr.f32.mxu0 0.0
      %592 = vmatmul.mubr.f32.gmra.mrb[0].mxu0 %v483
      %v593 = vpop.f32.mrb[0].mxu0
      %v594 = vadd.f32 0.0, %v593
      %v595 = vpop.f32.mrb[0].mxu0
      %v596 = vadd.f32 0.0, %v595
      %597 = vmatprep.mubr.f32.mxu0 0.0
      %598 = vmatmul.mubr.f32.gmra.mrb[0].mxu0 %v486
      %v599 = vpop.f32.mrb[0].mxu0
      %v600 = vadd.f32 0.0, %v599
      %v601 = vpop.f32.mrb[0].mxu0
      %v602 = vadd.f32 0.0, %v601
      %603 = vmatprep.mubr.f32.mxu0 0.0
      %604 = vmatmul.mubr.f32.gmra.mrb[0].mxu0 %v489
      %v605 = vpop.f32.mrb[0].mxu0
      %v606 = vadd.f32 0.0, %v605
      %v607 = vpop.f32.mrb[0].mxu0
      %v608 = vadd.f32 0.0, %v607
      %609 = vmatprep.mubr.f32.mxu0 0.0
      %610 = vmatmul.mubr.f32.gmra.mrb[0].mxu0 %v492
      %v611 = vpop.f32.mrb[0].mxu0
      %v612 = vadd.f32 0.0, %v611
      %v613 = vpop.f32.mrb[0].mxu0
      %v614 = vadd.f32 0.0, %v613
      %615 = vmatprep.mubr.f32.mxu0 0.0
      %616 = vmatmul.mubr.f32.gmra.mrb[0].mxu0 %v495
      %v617 = vpop.f32.mrb[0].mxu0
      %v618 = vadd.f32 0.0, %v617
      %v619 = vpop.f32.mrb[0].mxu0
      %v620 = vadd.f32 0.0, %v619
      %621 = vmatprep.mubr.f32.mxu0 0.0
      %622 = vmatmul.mubr.f32.gmra.mrb[0].mxu0 %v498
      %v623 = vpop.f32.mrb[0].mxu0
      %v624 = vadd.f32 0.0, %v623
      %v625 = vpop.f32.mrb[0].mxu0
      %v626 = vadd.f32 0.0, %v625
      %627 = vmatprep.mubr.f32.mxu0 0.0
      %628 = vmatmul.mubr.f32.gmra.mrb[0].mxu0 %v501
      %v629 = vpop.f32.mrb[0].mxu0
      %v630 = vadd.f32 0.0, %v629
      %v631 = vpop.f32.mrb[0].mxu0
      %v632 = vadd.f32 0.0, %v631
      %633 = vdwg.mxu0
      %v634 = vpack.c.bf16 %v576, %v570
      %v635 = vpack.c.bf16 %v578, %v572
      %v636 = vpack.c.bf16 %v588, %v582
      %v637 = vpack.c.bf16 %v590, %v584
      %v638 = vpack.c.bf16 %v600, %v594
      %v639 = vpack.c.bf16 %v602, %v596
      %v640 = vpack.c.bf16 %v612, %v606
      %v641 = vpack.c.bf16 %v614, %v608
      %v650 = vunpack.c.l.b16 %v634
      %v651 = vunpack.c.l.b16 %v635
      %v652 = vunpack.c.h.b16 %v634
      %v653 = vunpack.c.h.b16 %v635
      %v654 = vunpack.c.l.b16 %v636
      %v655 = vunpack.c.l.b16 %v637
      %v656 = vunpack.c.h.b16 %v636
      %v657 = vunpack.c.h.b16 %v637
      %v658 = vunpack.c.l.b16 %v638
      %v659 = vunpack.c.l.b16 %v639
      %v660 = vunpack.c.h.b16 %v638
      %v661 = vunpack.c.h.b16 %v639
      %v662 = vunpack.c.l.b16 %v640
      %v663 = vunpack.c.l.b16 %v641
      %v664 = vunpack.c.h.b16 %v640
      %v665 = vunpack.c.h.b16 %v641
      %v666 = vpack.c.b16 %v651, %v650
      %v667 = vpack.c.b16 %v653, %v652
      %v668 = vpack.c.b16 %v655, %v654
      %v669 = vpack.c.b16 %v657, %v656
      %v670 = vpack.c.b16 %v659, %v658
      %v671 = vpack.c.b16 %v661, %v660
      %v672 = vpack.c.b16 %v663, %v662
      %v673 = vpack.c.b16 %v665, %v664
      %682 = vst [vmem:[%s416] sm:$0xff] %v666
      %683 = vst [vmem:[%s416 + $0x8] sm:$0xff] %v667
      %684 = vst [vmem:[%s416 + $0x10] sm:$0xff] %v668
      %685 = vst [vmem:[%s416 + $0x18] sm:$0xff] %v669
      %686 = vst [vmem:[%s416 + $0x20] sm:$0xff] %v670
      %687 = vst [vmem:[%s416 + $0x28] sm:$0xff] %v671
      %688 = vst [vmem:[%s416 + $0x30] sm:$0xff] %v672
      %689 = vst [vmem:[%s416 + $0x38] sm:$0xff] %v673
      %v690 = vpack.c.bf16 %v624, %v618
      %v691 = vpack.c.bf16 %v626, %v620
      %v694 = vunpack.c.l.b16 %v690
      %v695 = vunpack.c.l.b16 %v691
      %v696 = vunpack.c.h.b16 %v690
      %v697 = vunpack.c.h.b16 %v691
      %v698 = vpack.c.b16 %v695, %v694
      %v699 = vpack.c.b16 %v697, %v696
      %702 = vst [vmem:[%s421] sm:$0xff] %v698
      %703 = vst [vmem:[%s421 + $0x8] sm:$0xff] %v699
      %v704 = vpack.c.bf16 %v630, %v630
      %v705 = vpack.c.bf16 %v632, %v632
      %v708 = vunpack.c.l.b16 %v704
      %v709 = vunpack.c.l.b16 %v705
      %v710 = vpack.c.b16 %v709, %v708
      %712 = vst [vmem:[%s426] sm:$0xff] %v710
      %v713 = vld [vmem:[#allocation2] sm:$0xff]
      %v714 = vld [vmem:[#allocation2 + $0x8] sm:$0xff]
      %v715 = vld [vmem:[#allocation2 + $0x10] sm:$0xff]
      %v716 = vld [vmem:[#allocation2 + $0x18] sm:$0xff]
      %v717 = vld [vmem:[#allocation2 + $0x20] sm:$0xff]
      %v718 = vld [vmem:[#allocation2 + $0x28] sm:$0xff]
      %v719 = vld [vmem:[#allocation2 + $0x30] sm:$0xff]
      %v720 = vld [vmem:[#allocation2 + $0x38] sm:$0xff]
      %v721 = vadd.f32 %v570, %v572
      %722 = vadd.xlane.f32.xlu0 %v721
      %v723 = vpop.xlane.xlu0 %722
      %v724 = vadd.f32 %v576, %v578
      %725 = vadd.xlane.f32.xlu0 %v724
      %v726 = vpop.xlane.xlu0 %725
      %v727 = vadd.f32 %v582, %v584
      %728 = vadd.xlane.f32.xlu0 %v727
      %v729 = vpop.xlane.xlu0 %728
      %v730 = vadd.f32 %v588, %v590
      %731 = vadd.xlane.f32.xlu0 %v730
      %v732 = vpop.xlane.xlu0 %731
      %v733 = vadd.f32 %v594, %v596
      %734 = vadd.xlane.f32.xlu0 %v733
      %v735 = vpop.xlane.xlu0 %734
      %v736 = vadd.f32 %v600, %v602
      %737 = vadd.xlane.f32.xlu0 %v736
      %v738 = vpop.xlane.xlu0 %737
      %v739 = vadd.f32 %v606, %v608
      %740 = vadd.xlane.f32.xlu0 %v739
      %v741 = vpop.xlane.xlu0 %740
      %v742 = vadd.f32 %v612, %v614
      %743 = vadd.xlane.f32.xlu0 %v742
      %v744 = vpop.xlane.xlu0 %743
      %v745 = vadd.f32 %v713, %v723
      %v746 = vadd.f32 %v714, %v726
      %v747 = vadd.f32 %v715, %v729
      %v748 = vadd.f32 %v716, %v732
      %v749 = vadd.f32 %v717, %v735
      %v750 = vadd.f32 %v718, %v738
      %v751 = vadd.f32 %v719, %v741
      %v752 = vadd.f32 %v720, %v744
      %vm753 = vcmask 7168
      %754 = vst.msk [vmem:[#allocation2] sm:$0xff] %vm753, %v745
      %755 = vst.msk [vmem:[#allocation2 + $0x8] sm:$0xff] %vm753, %v746
      %756 = vst.msk [vmem:[#allocation2 + $0x10] sm:$0xff] %vm753, %v747
      %757 = vst.msk [vmem:[#allocation2 + $0x18] sm:$0xff] %vm753, %v748
      %758 = vst.msk [vmem:[#allocation2 + $0x20] sm:$0xff] %vm753, %v749
      %759 = vst.msk [vmem:[#allocation2 + $0x28] sm:$0xff] %vm753, %v750
      %760 = vst.msk [vmem:[#allocation2 + $0x30] sm:$0xff] %vm753, %v751
      %761 = vst.msk [vmem:[#allocation2 + $0x38] sm:$0xff] %vm753, %v752
      %v762 = vld [vmem:[#allocation3] sm:$0xff]
      %v763 = vld [vmem:[#allocation3 + $0x8] sm:$0xff]
      %v764 = vld [vmem:[#allocation3 + $0x10] sm:$0xff]
      %v765 = vld [vmem:[#allocation3 + $0x18] sm:$0xff]
      %v766 = vld [vmem:[#allocation3 + $0x20] sm:$0xff]
      %v767 = vld [vmem:[#allocation3 + $0x28] sm:$0xff]
      %v768 = vld [vmem:[#allocation3 + $0x30] sm:$0xff]
      %v769 = vld [vmem:[#allocation3 + $0x38] sm:$0xff]
      %v770 = vmul.f32 %v570, %v570
      %v771 = vmul.f32 %v572, %v572
      %v772 = vmul.f32 %v576, %v576
      %v773 = vmul.f32 %v578, %v578
      %v774 = vmul.f32 %v582, %v582
      %v775 = vmul.f32 %v584, %v584
      %v776 = vmul.f32 %v588, %v588
      %v777 = vmul.f32 %v590, %v590
      %v778 = vmul.f32 %v594, %v594
      %v779 = vmul.f32 %v596, %v596
      %v780 = vmul.f32 %v600, %v600
      %v781 = vmul.f32 %v602, %v602
      %v782 = vmul.f32 %v606, %v606
      %v783 = vmul.f32 %v608, %v608
      %v784 = vmul.f32 %v612, %v612
      %v785 = vmul.f32 %v614, %v614
      %v786 = vadd.f32 %v770, %v771
      %787 = vadd.xlane.f32.xlu0 %v786
      %v788 = vpop.xlane.xlu0 %787
      %v789 = vadd.f32 %v772, %v773
      %790 = vadd.xlane.f32.xlu0 %v789
      %v791 = vpop.xlane.xlu0 %790
      %v792 = vadd.f32 %v774, %v775
      %793 = vadd.xlane.f32.xlu0 %v792
      %v794 = vpop.xlane.xlu0 %793
      %v795 = vadd.f32 %v776, %v777
      %796 = vadd.xlane.f32.xlu0 %v795
      %v797 = vpop.xlane.xlu0 %796
      %v798 = vadd.f32 %v778, %v779
      %799 = vadd.xlane.f32.xlu0 %v798
      %v800 = vpop.xlane.xlu0 %799
      %v801 = vadd.f32 %v780, %v781
      %802 = vadd.xlane.f32.xlu0 %v801
      %v803 = vpop.xlane.xlu0 %802
      %v804 = vadd.f32 %v782, %v783
      %805 = vadd.xlane.f32.xlu0 %v804
      %v806 = vpop.xlane.xlu0 %805
      %v807 = vadd.f32 %v784, %v785
      %808 = vadd.xlane.f32.xlu0 %v807
      %v809 = vpop.xlane.xlu0 %808
      %v810 = vadd.f32 %v762, %v788
      %v811 = vadd.f32 %v763, %v791
      %v812 = vadd.f32 %v764, %v794
      %v813 = vadd.f32 %v765, %v797
      %v814 = vadd.f32 %v766, %v800
      %v815 = vadd.f32 %v767, %v803
      %v816 = vadd.f32 %v768, %v806
      %v817 = vadd.f32 %v769, %v809
      %818 = vst.msk [vmem:[#allocation3] sm:$0xff] %vm753, %v810
      %819 = vst.msk [vmem:[#allocation3 + $0x8] sm:$0xff] %vm753, %v811
      %820 = vst.msk [vmem:[#allocation3 + $0x10] sm:$0xff] %vm753, %v812
      %821 = vst.msk [vmem:[#allocation3 + $0x18] sm:$0xff] %vm753, %v813
      %822 = vst.msk [vmem:[#allocation3 + $0x20] sm:$0xff] %vm753, %v814
      %823 = vst.msk [vmem:[#allocation3 + $0x28] sm:$0xff] %vm753, %v815
      %824 = vst.msk [vmem:[#allocation3 + $0x30] sm:$0xff] %vm753, %v816
      %825 = vst.msk [vmem:[#allocation3 + $0x38] sm:$0xff] %vm753, %v817
      %v826 = vld [vmem:[#allocation4] sm:$0xff]
      %v827 = vadd.f32 %v630, %v632
      %828 = vadd.xlane.f32.xlu0 %v827
      %v829 = vpop.xlane.xlu0 %828
      %v830 = vadd.f32 %v826, %v829
      %831 = vst.msk [vmem:[#allocation4] sm:$0xff] %vm753, %v830
      %v832 = vld [vmem:[#allocation5] sm:$0xff]
      %v833 = vmul.f32 %v630, %v630
      %v834 = vmul.f32 %v632, %v632
      %v835 = vadd.f32 %v833, %v834
      %836 = vadd.xlane.f32.xlu0 %v835
      %v837 = vpop.xlane.xlu0 %836
      %v838 = vadd.f32 %v832, %v837
      %839 = vst.msk [vmem:[#allocation5] sm:$0xff] %vm753, %v838
      %p840 = scmp.eq.s32.totalorder %s24, 1
      // Predicated region
      $region49: #{lambda_layer_forward.2} parent=43 // pred_check
        %p841 = pneg %p840
      $region50: #{lambda_layer_forward.2} parent=43 // pred_check_branch
        %843 = sbr.rel (%p841) target = $region52
      $region51: #{lambda_layer_forward.2} parent=43 // pred_region
        %v844 = vld [vmem:[#allocation2] sm:$0xff]
        %v845 = vld [vmem:[#allocation2 + $0x8] sm:$0xff]
        %v846 = vld [vmem:[#allocation2 + $0x10] sm:$0xff]
        %v847 = vld [vmem:[#allocation2 + $0x18] sm:$0xff]
        %v848 = vld [vmem:[#allocation2 + $0x20] sm:$0xff]
        %v849 = vld [vmem:[#allocation2 + $0x28] sm:$0xff]
        %v850 = vld [vmem:[#allocation2 + $0x30] sm:$0xff]
        %v851 = vld [vmem:[#allocation2 + $0x38] sm:$0xff]
        %v852 = vmul.f32 %v844, 0.001953125
        %v853 = vmul.f32 %v845, 0.001953125
        %v854 = vmul.f32 %v846, 0.001953125
        %v855 = vmul.f32 %v847, 0.001953125
        %v856 = vmul.f32 %v848, 0.001953125
        %v857 = vmul.f32 %v849, 0.001953125
        %v858 = vmul.f32 %v850, 0.001953125
        %v859 = vmul.f32 %v851, 0.001953125
        %v860 = vld [vmem:[#allocation3] sm:$0xff]
        %v861 = vld [vmem:[#allocation3 + $0x8] sm:$0xff]
        %v862 = vld [vmem:[#allocation3 + $0x10] sm:$0xff]
        %v863 = vld [vmem:[#allocation3 + $0x18] sm:$0xff]
        %v864 = vld [vmem:[#allocation3 + $0x20] sm:$0xff]
        %v865 = vld [vmem:[#allocation3 + $0x28] sm:$0xff]
        %v866 = vld [vmem:[#allocation3 + $0x30] sm:$0xff]
        %v867 = vld [vmem:[#allocation3 + $0x38] sm:$0xff]
        %v868 = vmul.f32 %v860, 0.001953125
        %v869 = vmul.f32 %v861, 0.001953125
        %v870 = vmul.f32 %v862, 0.001953125
        %v871 = vmul.f32 %v863, 0.001953125
        %v872 = vmul.f32 %v864, 0.001953125
        %v873 = vmul.f32 %v865, 0.001953125
        %v874 = vmul.f32 %v866, 0.001953125
        %v875 = vmul.f32 %v867, 0.001953125
        %v876 = vmul.f32 %v852, %v852
        %v877 = vmul.f32 %v853, %v853
        %v878 = vmul.f32 %v854, %v854
        %v879 = vmul.f32 %v855, %v855
        %v880 = vmul.f32 %v856, %v856
        %v881 = vmul.f32 %v857, %v857
        %v882 = vmul.f32 %v858, %v858
        %v883 = vmul.f32 %v859, %v859
        %v884 = vsub.f32 %v868, %v876
        %v885 = vsub.f32 %v869, %v877
        %v886 = vsub.f32 %v870, %v878
        %v887 = vsub.f32 %v871, %v879
        %v888 = vsub.f32 %v872, %v880
        %v889 = vsub.f32 %v873, %v881
        %v890 = vsub.f32 %v874, %v882
        %v891 = vsub.f32 %v875, %v883
        %v892 = vld [vmem:[%s2] sm:$0xff]
        %v893 = vld [vmem:[%s2 + $0x8] sm:$0xff]
        %v894 = vld [vmem:[%s2 + $0x10] sm:$0xff]
        %v895 = vld [vmem:[%s2 + $0x18] sm:$0xff]
        %v896 = vld [vmem:[%s2 + $0x20] sm:$0xff]
        %v897 = vld [vmem:[%s2 + $0x28] sm:$0xff]
        %v898 = vld [vmem:[%s2 + $0x30] sm:$0xff]
        %v899 = vld [vmem:[%s2 + $0x38] sm:$0xff]
        %v900 = vadd.f32 %v884, 1e-05
        %v901 = vadd.f32 %v885, 1e-05
        %v902 = vadd.f32 %v886, 1e-05
        %v903 = vadd.f32 %v887, 1e-05
        %v904 = vadd.f32 %v888, 1e-05
        %v905 = vadd.f32 %v889, 1e-05
        %v906 = vadd.f32 %v890, 1e-05
        %v907 = vadd.f32 %v891, 1e-05
        %v908 = vrsqrt.pop %v900
        %v909 = vrsqrt.pop %v901
        %v910 = vrsqrt.pop %v902
        %v911 = vrsqrt.pop %v903
        %v912 = vrsqrt.pop %v904
        %v913 = vrsqrt.pop %v905
        %v914 = vrsqrt.pop %v906
        %v915 = vrsqrt.pop %v907
        %v916 = vmul.f32 %v892, %v908
        %v917 = vmul.f32 %v893, %v909
        %v918 = vmul.f32 %v894, %v910
        %v919 = vmul.f32 %v895, %v911
        %v920 = vmul.f32 %v896, %v912
        %v921 = vmul.f32 %v897, %v913
        %v922 = vmul.f32 %v898, %v914
        %v923 = vmul.f32 %v899, %v915
        %924 = vst.msk [vmem:[%s9] sm:$0xff] %vm753, %v916
        %925 = vst.msk [vmem:[%s9 + $0x8] sm:$0xff] %vm753, %v917
        %926 = vst.msk [vmem:[%s9 + $0x10] sm:$0xff] %vm753, %v918
        %927 = vst.msk [vmem:[%s9 + $0x18] sm:$0xff] %vm753, %v919
        %928 = vst.msk [vmem:[%s9 + $0x20] sm:$0xff] %vm753, %v920
        %929 = vst.msk [vmem:[%s9 + $0x28] sm:$0xff] %vm753, %v921
        %930 = vst.msk [vmem:[%s9 + $0x30] sm:$0xff] %vm753, %v922
        %931 = vst.msk [vmem:[%s9 + $0x38] sm:$0xff] %vm753, %v923
        %v932 = vld [vmem:[%s3] sm:$0xff]
        %v933 = vld [vmem:[%s3 + $0x8] sm:$0xff]
        %v934 = vld [vmem:[%s3 + $0x10] sm:$0xff]
        %v935 = vld [vmem:[%s3 + $0x18] sm:$0xff]
        %v936 = vld [vmem:[%s3 + $0x20] sm:$0xff]
        %v937 = vld [vmem:[%s3 + $0x28] sm:$0xff]
        %v938 = vld [vmem:[%s3 + $0x30] sm:$0xff]
        %v939 = vld [vmem:[%s3 + $0x38] sm:$0xff]
        %v940 = vmul.f32 %v852, %v916
        %v941 = vmul.f32 %v853, %v917
        %v942 = vmul.f32 %v854, %v918
        %v943 = vmul.f32 %v855, %v919
        %v944 = vmul.f32 %v856, %v920
        %v945 = vmul.f32 %v857, %v921
        %v946 = vmul.f32 %v858, %v922
        %v947 = vmul.f32 %v859, %v923
        %v948 = vsub.f32 %v932, %v940
        %v949 = vsub.f32 %v933, %v941
        %v950 = vsub.f32 %v934, %v942
        %v951 = vsub.f32 %v935, %v943
        %v952 = vsub.f32 %v936, %v944
        %v953 = vsub.f32 %v937, %v945
        %v954 = vsub.f32 %v938, %v946
        %v955 = vsub.f32 %v939, %v947
        %956 = vst.msk [vmem:[%s10] sm:$0xff] %vm753, %v948
        %957 = vst.msk [vmem:[%s10 + $0x8] sm:$0xff] %vm753, %v949
        %958 = vst.msk [vmem:[%s10 + $0x10] sm:$0xff] %vm753, %v950
        %959 = vst.msk [vmem:[%s10 + $0x18] sm:$0xff] %vm753, %v951
        %960 = vst.msk [vmem:[%s10 + $0x20] sm:$0xff] %vm753, %v952
        %961 = vst.msk [vmem:[%s10 + $0x28] sm:$0xff] %vm753, %v953
        %962 = vst.msk [vmem:[%s10 + $0x30] sm:$0xff] %vm753, %v954
        %963 = vst.msk [vmem:[%s10 + $0x38] sm:$0xff] %vm753, %v955
        %v964 = vld [vmem:[#allocation4] sm:$0xff]
        %v965 = vmul.f32 %v964, 0.001953125
        %v966 = vld [vmem:[#allocation5] sm:$0xff]
        %v967 = vmul.f32 %v966, 0.001953125
        %v968 = vmul.f32 %v965, %v965
        %v969 = vsub.f32 %v967, %v968
        %v970 = vld [vmem:[%s4] sm:$0xff]
        %v971 = vadd.f32 %v969, 1e-05
        %v972 = vrsqrt.pop %v971
        %v973 = vmul.f32 %v970, %v972
        %974 = vst.msk [vmem:[%s11] sm:$0xff] %vm753, %v973
        %v975 = vld [vmem:[%s5] sm:$0xff]
        %v976 = vmul.f32 %v965, %v973
        %v977 = vsub.f32 %v975, %v976
        %978 = vst.msk [vmem:[%s12] sm:$0xff] %vm753, %v977
      $region52: #{lambda_layer_forward.2} parent=43 // pred_fallthru
        _
      %p979 = scmp.lt.s32.totalorder %s24, 1
      %s980 = scalar_select %p979, %s24, 1
      %s981 = smul.addr %s980, 16
      %s982 = smul.addr %s981, 4
      %s983 = scalar_lea.vmem %s6, %s982
      %p984 = scmp.lt.s32.totalorder %s24, 1
      %s985 = scalar_select %p984, %s24, 1
      %s986 = smul.addr %s985, 4
      %s987 = smul.addr %s986, 4
      %s988 = scalar_lea.vmem %s7, %s987
      %p989 = scmp.lt.s32.totalorder %s24, 1
      %s990 = scalar_select %p989, %s24, 1
      %s991 = smul.addr %s990, 2
      %s992 = smul.addr %s991, 4
      %s993 = scalar_lea.vmem %s8, %s992
      // Predicated region
      $region53: #{lambda_layer_forward.2} parent=43 // pred_check
        %p994 = pneg %p173
      $region54: #{lambda_layer_forward.2} parent=43 // pred_check_branch
        %996 = sbr.rel (%p994) target = $region56
      $region55: #{lambda_layer_forward.2} parent=43 // pred_region
        _
      $region56: #{lambda_layer_forward.2} parent=43 // pred_fallthru
        _
      // Predicated region
      $region57: #{lambda_layer_forward.2} parent=43 // pred_check
        %p997 = pneg %p199
      $region58: #{lambda_layer_forward.2} parent=43 // pred_check_branch
        %999 = sbr.rel (%p997) target = $region60
      $region59: #{lambda_layer_forward.2} parent=43 // pred_region
        _
      $region60: #{lambda_layer_forward.2} parent=43 // pred_fallthru
        _
      // Predicated region
      $region61: #{lambda_layer_forward.2} parent=43 // pred_check
        %p1000 = pneg %p225
      $region62: #{lambda_layer_forward.2} parent=43 // pred_check_branch
        %1002 = sbr.rel (%p1000) target = $region64
      $region63: #{lambda_layer_forward.2} parent=43 // pred_region
        _
      $region64: #{lambda_layer_forward.2} parent=43 // pred_fallthru
        _
      // Predicated region
      $region65: #{lambda_layer_forward.2} parent=43 // pred_check
        %p1003 = pneg %p246
      $region66: #{lambda_layer_forward.2} parent=43 // pred_check_branch
        %1005 = sbr.rel (%p1003) target = $region68
      $region67: #{lambda_layer_forward.2} parent=43 // pred_region
        _
      $region68: #{lambda_layer_forward.2} parent=43 // pred_fallthru
        _
      // Predicated region
      $region69: #{lambda_layer_forward.2} parent=43 // pred_check
        %p1006 = pneg %p267
      $region70: #{lambda_layer_forward.2} parent=43 // pred_check_branch
        %1008 = sbr.rel (%p1006) target = $region72
      $region71: #{lambda_layer_forward.2} parent=43 // pred_region
        _
      $region72: #{lambda_layer_forward.2} parent=43 // pred_fallthru
        _
      // Predicated region
      $region73: #{lambda_layer_forward.2} parent=43 // pred_check
        %p1009 = pneg %p288
      $region74: #{lambda_layer_forward.2} parent=43 // pred_check_branch
        %1011 = sbr.rel (%p1009) target = $region76
      $region75: #{lambda_layer_forward.2} parent=43 // pred_region
        _
      $region76: #{lambda_layer_forward.2} parent=43 // pred_fallthru
        _
      // Predicated region
      $region77: #{lambda_layer_forward.2} parent=43 // pred_check
        %p1012 = pneg %p309
      $region78: #{lambda_layer_forward.2} parent=43 // pred_check_branch
        %1014 = sbr.rel (%p1012) target = $region80
      $region79: #{lambda_layer_forward.2} parent=43 // pred_region
        _
      $region80: #{lambda_layer_forward.2} parent=43 // pred_fallthru
        _
      // Predicated region
      $region81: #{lambda_layer_forward.2} parent=43 // pred_check
        %p1015 = pneg %p246
      $region82: #{lambda_layer_forward.2} parent=43 // pred_check_branch
        %1017 = sbr.rel (%p1015) target = $region84
      $region83: #{lambda_layer_forward.2} parent=43 // pred_region
        _
      $region84: #{lambda_layer_forward.2} parent=43 // pred_fallthru
        _
      // Predicated region
      $region85: #{lambda_layer_forward.2} parent=43 // pred_check
        %p1018 = pneg %p267
      $region86: #{lambda_layer_forward.2} parent=43 // pred_check_branch
        %1020 = sbr.rel (%p1018) target = $region88
      $region87: #{lambda_layer_forward.2} parent=43 // pred_region
        _
      $region88: #{lambda_layer_forward.2} parent=43 // pred_fallthru
        _
      // Predicated region
      $region89: #{lambda_layer_forward.2} parent=43 // pred_check
        %p1021 = pneg %p288
      $region90: #{lambda_layer_forward.2} parent=43 // pred_check_branch
        %1023 = sbr.rel (%p1021) target = $region92
      $region91: #{lambda_layer_forward.2} parent=43 // pred_region
        _
      $region92: #{lambda_layer_forward.2} parent=43 // pred_fallthru
        _
      // Predicated region
      $region93: #{lambda_layer_forward.2} parent=43 // pred_check
        %p1024 = pneg %p309
      $region94: #{lambda_layer_forward.2} parent=43 // pred_check_branch
        %1026 = sbr.rel (%p1024) target = $region96
      $region95: #{lambda_layer_forward.2} parent=43 // pred_region
        _
      $region96: #{lambda_layer_forward.2} parent=43 // pred_fallthru
        _
    $region44: #{lambda_layer_forward.2} parent=5 // pred_fallthru
      _
    %p1027 = scmp.le.s32.totalorder 2, %s19
    // Predicated region
    $region97: #{lambda_layer_forward.2} parent=5 // pred_check
      %p1028 = pneg %p1027
    $region98: #{lambda_layer_forward.2} parent=5 // pred_check_branch
      %1030 = sbr.rel (%p1028) target = $region100
    $region99: #{lambda_layer_forward.2} parent=5 // pred_region
      %s1031 = ssub.s32 %s19, 2
      // Predicated region
      $region101: #{lambda_layer_forward.2} parent=99 // pred_check
        %p1032 = pneg %p179
      $region102: #{lambda_layer_forward.2} parent=99 // pred_check_branch
        %1034 = sbr.rel (%p1032) target = $region104
      $region103: #{lambda_layer_forward.2} parent=99 // pred_region
        %p1035 = scmp.lt.s32.totalorder %s25, 1
        %s1036 = scalar_select %p1035, %s25, 1
        %s1037 = smul.addr %s1036, 16
        %s1038 = smul.addr %s1037, 4
        %s1039 = scalar_lea.vmem %s6, %s1038
      $region104: #{lambda_layer_forward.2} parent=99 // pred_fallthru
        _
      // Predicated region
      $region105: #{lambda_layer_forward.2} parent=99 // pred_check
        %p1040 = pneg %p205
      $region106: #{lambda_layer_forward.2} parent=99 // pred_check_branch
        %1042 = sbr.rel (%p1040) target = $region108
      $region107: #{lambda_layer_forward.2} parent=99 // pred_region
        %p1043 = scmp.lt.s32.totalorder %s25, 1
        %s1044 = scalar_select %p1043, %s25, 1
        %s1045 = smul.addr %s1044, 4
        %s1046 = smul.addr %s1045, 4
        %s1047 = scalar_lea.vmem %s7, %s1046
      $region108: #{lambda_layer_forward.2} parent=99 // pred_fallthru
        _
      // Predicated region
      $region109: #{lambda_layer_forward.2} parent=99 // pred_check
        %p1048 = pneg %p231
      $region110: #{lambda_layer_forward.2} parent=99 // pred_check_branch
        %1050 = sbr.rel (%p1048) target = $region112
      $region111: #{lambda_layer_forward.2} parent=99 // pred_region
        %p1051 = scmp.lt.s32.totalorder %s25, 1
        %s1052 = scalar_select %p1051, %s25, 1
        %s1053 = smul.addr %s1052, 2
        %s1054 = smul.addr %s1053, 4
        %s1055 = scalar_lea.vmem %s8, %s1054
      $region112: #{lambda_layer_forward.2} parent=99 // pred_fallthru
        _
    $region100: #{lambda_layer_forward.2} parent=5 // pred_fallthru
      _
  $region6: #{lambda_layer_forward.2} parent=0 // loop_footer
    %s23 = sadd.s32 1, %s19
  $region7: #{lambda_layer_forward.2} parent=0 // loop_footer_branch
    %18 = sbr.rel target = $region3
  $region8: #{lambda_layer_forward.2} parent=0 // loop_exit
    _

// kernel: lambda_layer_forward.3
$region0: #{lambda_layer_forward.3}
  #allocation0 [shape = 'u32[]', space=smem, size = 0x4, offset = 0x4, fixed_abs, tag = 'smem constant byte address 0x4 - core index']
  #allocation1 [shape = 'u32[144,128]{1,0:T(1,128)}', space=vmem, size = 0x12000, scoped, tag = 'internal scratch']
  #allocation2 [shape = 'f32[2,8,16]{2,1,0:T(8,128)}', space=vmem, size = 0x2000, scoped, tag = 'scratch operand']
  %s0 = inlined_call_operand.vmem [shape: bf16[2,64,256], index: 0, kind: input, shape index: {}]
  %s1 = inlined_call_operand.vmem [shape: bf16[2,16,256], index: 1, kind: input, shape index: {}]
  %s2 = inlined_call_operand.vmem [shape: bf16[2,8,256], index: 2, kind: input, shape index: {}]
  %s3 = inlined_call_operand.vmem [shape: f32[64,1], index: 3, kind: input, shape index: {}]
  %s4 = inlined_call_operand.vmem [shape: f32[64,1], index: 4, kind: input, shape index: {}]
  %s5 = inlined_call_operand.vmem [shape: f32[8,1], index: 5, kind: input, shape index: {}]
  %s6 = inlined_call_operand.vmem [shape: f32[8,1], index: 6, kind: input, shape index: {}]
  %s7 = inlined_call_operand.hbm [shape: bf16[1,16,256,256], index: 7, kind: input, shape index: {}]
  %s8 = inlined_call_operand.vmem [shape: f32[2,32,256], index: 8, kind: output, shape index: {}]
  %s9 = sld [smem:[#allocation0]]
  $region148: #{lambda_layer_forward.3} parent=0
    _
  %s11 = ssub.s32 1, %s9
  %s12 = scalar_select 0, %s11, %s9
  $region1: #{lambda_layer_forward.3} parent=0
    #allocation3 [shape = 'u8[32768]{0}', space=vmem, size = 0x8000, scoped, tag = 'input window, operand 0']
    #allocation4 [shape = 'u8[2097152]{0}', space=vmem, size = 0x200000, scoped, tag = 'input window, operand 7']
    #allocation5 [shape = 's32[2]{0}', space=sflag, size = 0x8, scoped, tag = 'scoped memory for lambda_layer_forward.3']
    #allocation6 [shape = 'u8[32768]{0}', space=vmem, size = 0x8000, scoped, tag = 'output window, operand 0']
    %13 = vsyncpa [#allocation5], 0
    %s14 = scalar_lea.sflag [#allocation5], 1
    %15 = vsyncpa %s14, 0
    loop: start=0, step=1, limit=6
    $region2: #{lambda_layer_forward.3} parent=1 // loop_pre_header
      _
    $region3: #{lambda_layer_forward.3} parent=1 // loop_header
      %s17 = sphi 0, %s21
      %p18 = scmp.ge.s32.totalorder %s17, 6
      %s24 = sphi 0, %s36
      %s25 = sphi 0, %s32
      %s26 = sphi 0, %s24
      %s27 = sphi 0, %s25
      %s28 = sphi 0, %s26
      %s29 = sphi 0, %s27
      %s41 = sphi 0, %s43
      %s44 = sphi 0, %s41
      %s45 = sphi 0, %s44
      %s61 = sphi 0, %s45
      %s67 = sphi 0, %s69
      %s70 = sphi 0, %s67
      %s71 = sphi 0, %s70
      %s87 = sphi 0, %s71
      %s93 = sphi 0, %s95
      %s96 = sphi 0, %s93
      %s97 = sphi 0, %s96
      %s113 = sphi 0, %s97
      %s117 = sphi 0, %s117
      %s119 = sphi 0, %s117
      %s120 = sphi 0, %s119
      %s134 = sphi 0, %s120
      %s138 = sphi 0, %s138
      %s140 = sphi 0, %s138
      %s141 = sphi 0, %s140
      %s155 = sphi 0, %s141
      %s159 = sphi 0, %s159
      %s161 = sphi 0, %s159
      %s162 = sphi 0, %s161
      %s176 = sphi 0, %s162
      %s180 = sphi 0, %s180
      %s182 = sphi 0, %s180
      %s183 = sphi 0, %s182
      %s197 = sphi 0, %s183
      %s203 = sphi 0, %s205
      %s206 = sphi 0, %s203
      %s207 = sphi 0, %s206
      %s223 = sphi 0, %s207
      %s231 = sphi 0, %s233
      %s234 = sphi 0, %s231
      %s235 = sphi 0, %s234
      %s251 = sphi 0, %s235
    $region4: #{lambda_layer_forward.3} parent=1 // loop_header_branch
      %20 = sbr.rel (%p18) target = $region8
    $region5: #{lambda_layer_forward.3} parent=1 // loop_body
      %s22 = ssub.s32 %s17, 1
      %s23 = ssub.s32 %s17, 2
      %s30 = sadd.s32 1, %s25
      %p31 = scmp.ge.s32.totalorder %s30, 2
      %s32 = scalar_select %p31, 0, %s30
      %s33 = sadd.s32 1, %s24
      %s34 = scalar_select %p31, %s33, %s24
      %p35 = scmp.ge.s32.totalorder %s34, 2
      %s36 = scalar_select %p35, 0, %s34
      %s37 = ssub.s32 %s25, %s32
      %s38 = ssub.s32 %s24, %s36
      %s39 = sor.u32 %s37, %s38
      %p40 = scmp.eq.s32.totalorder %s39, 0
      %s42 = sadd.s32 %s41, 1
      %s43 = scalar_select %p40, %s41, %s42
      %p46 = pneg %p40
      %p47 = scmp.eq.s32.totalorder %s17, 3
      %p48 = por %p46, %p47
      %p49 = scmp.ne.s32.totalorder %s41, %s44
      %p50 = scmp.eq.s32.totalorder %s17, 0
      %p51 = por %p49, %p50
      %p52 = scmp.ne.s32.totalorder %s41, %s44
      %p53 = scmp.eq.s32.totalorder %s22, 3
      %p54 = por %p52, %p53
      %p55 = scmp.ne.s32.totalorder %s44, %s45
      %p56 = scmp.eq.s32.totalorder %s22, 0
      %p57 = por %p55, %p56
      %p58 = scmp.ne.s32.totalorder %s44, %s45
      %p59 = scmp.eq.s32.totalorder %s23, 3
      %p60 = por %p58, %p59
      %p62 = scmp.ne.s32.totalorder %s45, %s61
      %p63 = scmp.eq.s32.totalorder %s23, 0
      %p64 = por %p62, %p63
      %s65 = ssub.s32 %s25, %s32
      %p66 = scmp.eq.s32.totalorder %s65, 0
      %s68 = sadd.s32 %s67, 1
      %s69 = scalar_select %p66, %s67, %s68
      %p72 = pneg %p66
      %p73 = scmp.eq.s32.totalorder %s17, 3
      %p74 = por %p72, %p73
      %p75 = scmp.ne.s32.totalorder %s67, %s70
      %p76 = scmp.eq.s32.totalorder %s17, 0
      %p77 = por %p75, %p76
      %p78 = scmp.ne.s32.totalorder %s67, %s70
      %p79 = scmp.eq.s32.totalorder %s22, 3
      %p80 = por %p78, %p79
      %p81 = scmp.ne.s32.totalorder %s70, %s71
      %p82 = scmp.eq.s32.totalorder %s22, 0
      %p83 = por %p81, %p82
      %p84 = scmp.ne.s32.totalorder %s70, %s71
      %p85 = scmp.eq.s32.totalorder %s23, 3
      %p86 = por %p84, %p85
      %p88 = scmp.ne.s32.totalorder %s71, %s87
      %p89 = scmp.eq.s32.totalorder %s23, 0
      %p90 = por %p88, %p89
      %s91 = ssub.s32 %s25, %s32
      %p92 = scmp.eq.s32.totalorder %s91, 0
      %s94 = sadd.s32 %s93, 1
      %s95 = scalar_select %p92, %s93, %s94
      %p98 = pneg %p92
      %p99 = scmp.eq.s32.totalorder %s17, 3
      %p100 = por %p98, %p99
      %p101 = scmp.ne.s32.totalorder %s93, %s96
      %p102 = scmp.eq.s32.totalorder %s17, 0
      %p103 = por %p101, %p102
      %p104 = scmp.ne.s32.totalorder %s93, %s96
      %p105 = scmp.eq.s32.totalorder %s22, 3
      %p106 = por %p104, %p105
      %p107 = scmp.ne.s32.totalorder %s96, %s97
      %p108 = scmp.eq.s32.totalorder %s22, 0
      %p109 = por %p107, %p108
      %p110 = scmp.ne.s32.totalorder %s96, %s97
      %p111 = scmp.eq.s32.totalorder %s23, 3
      %p112 = por %p110, %p111
      %p114 = scmp.ne.s32.totalorder %s97, %s113
      %p115 = scmp.eq.s32.totalorder %s23, 0
      %p116 = por %p114, %p115
      %s118 = sadd.s32 %s117, 1
      %p121 = scmp.eq.s32.totalorder %s17, 3
      %p122 = scmp.ne.s32.totalorder %s117, %s119
      %p123 = scmp.eq.s32.totalorder %s17, 0
      %p124 = por %p122, %p123
      %p125 = scmp.ne.s32.totalorder %s117, %s119
      %p126 = scmp.eq.s32.totalorder %s22, 3
      %p127 = por %p125, %p126
      %p128 = scmp.ne.s32.totalorder %s119, %s120
      %p129 = scmp.eq.s32.totalorder %s22, 0
      %p130 = por %p128, %p129
      %p131 = scmp.ne.s32.totalorder %s119, %s120
      %p132 = scmp.eq.s32.totalorder %s23, 3
      %p133 = por %p131, %p132
      %p135 = scmp.ne.s32.totalorder %s120, %s134
      %p136 = scmp.eq.s32.totalorder %s23, 0
      %p137 = por %p135, %p136
      %s139 = sadd.s32 %s138, 1
      %p142 = scmp.eq.s32.totalorder %s17, 3
      %p143 = scmp.ne.s32.totalorder %s138, %s140
      %p144 = scmp.eq.s32.totalorder %s17, 0
      %p145 = por %p143, %p144
      %p146 = scmp.ne.s32.totalorder %s138, %s140
      %p147 = scmp.eq.s32.totalorder %s22, 3
      %p148 = por %p146, %p147
      %p149 = scmp.ne.s32.totalorder %s140, %s141
      %p150 = scmp.eq.s32.totalorder %s22, 0
      %p151 = por %p149, %p150
      %p152 = scmp.ne.s32.totalorder %s140, %s141
      %p153 = scmp.eq.s32.totalorder %s23, 3
      %p154 = por %p152, %p153
      %p156 = scmp.ne.s32.totalorder %s141, %s155
      %p157 = scmp.eq.s32.totalorder %s23, 0
      %p158 = por %p156, %p157
      %s160 = sadd.s32 %s159, 1
      %p163 = scmp.eq.s32.totalorder %s17, 3
      %p164 = scmp.ne.s32.totalorder %s159, %s161
      %p165 = scmp.eq.s32.totalorder %s17, 0
      %p166 = por %p164, %p165
      %p167 = scmp.ne.s32.totalorder %s159, %s161
      %p168 = scmp.eq.s32.totalorder %s22, 3
      %p169 = por %p167, %p168
      %p170 = scmp.ne.s32.totalorder %s161, %s162
      %p171 = scmp.eq.s32.totalorder %s22, 0
      %p172 = por %p170, %p171
      %p173 = scmp.ne.s32.totalorder %s161, %s162
      %p174 = scmp.eq.s32.totalorder %s23, 3
      %p175 = por %p173, %p174
      %p177 = scmp.ne.s32.totalorder %s162, %s176
      %p178 = scmp.eq.s32.totalorder %s23, 0
      %p179 = por %p177, %p178
      %s181 = sadd.s32 %s180, 1
      %p184 = scmp.eq.s32.totalorder %s17, 3
      %p185 = scmp.ne.s32.totalorder %s180, %s182
      %p186 = scmp.eq.s32.totalorder %s17, 0
      %p187 = por %p185, %p186
      %p188 = scmp.ne.s32.totalorder %s180, %s182
      %p189 = scmp.eq.s32.totalorder %s22, 3
      %p190 = por %p188, %p189
      %p191 = scmp.ne.s32.totalorder %s182, %s183
      %p192 = scmp.eq.s32.totalorder %s22, 0
      %p193 = por %p191, %p192
      %p194 = scmp.ne.s32.totalorder %s182, %s183
      %p195 = scmp.eq.s32.totalorder %s23, 3
      %p196 = por %p194, %p195
      %p198 = scmp.ne.s32.totalorder %s183, %s197
      %p199 = scmp.eq.s32.totalorder %s23, 0
      %p200 = por %p198, %p199
      %s201 = ssub.s32 %s24, %s36
      %p202 = scmp.eq.s32.totalorder %s201, 0
      %s204 = sadd.s32 %s203, 1
      %s205 = scalar_select %p202, %s203, %s204
      %p208 = pneg %p202
      %p209 = scmp.eq.s32.totalorder %s17, 3
      %p210 = por %p208, %p209
      %p211 = scmp.ne.s32.totalorder %s203, %s206
      %p212 = scmp.eq.s32.totalorder %s17, 0
      %p213 = por %p211, %p212
      %p214 = scmp.ne.s32.totalorder %s203, %s206
      %p215 = scmp.eq.s32.totalorder %s22, 3
      %p216 = por %p214, %p215
      %p217 = scmp.ne.s32.totalorder %s206, %s207
      %p218 = scmp.eq.s32.totalorder %s22, 0
      %p219 = por %p217, %p218
      %p220 = scmp.ne.s32.totalorder %s206, %s207
      %p221 = scmp.eq.s32.totalorder %s23, 3
      %p222 = por %p220, %p221
      %p224 = scmp.ne.s32.totalorder %s207, %s223
      %p225 = scmp.eq.s32.totalorder %s23, 0
      %p226 = por %p224, %p225
      %s227 = ssub.s32 %s25, %s32
      %s228 = ssub.s32 %s24, %s36
      %s229 = sor.u32 %s227, %s228
      %p230 = scmp.eq.s32.totalorder %s229, 0
      %s232 = sadd.s32 %s231, 1
      %s233 = scalar_select %p230, %s231, %s232
      %p236 = pneg %p230
      %p237 = scmp.eq.s32.totalorder %s17, 3
      %p238 = por %p236, %p237
      %p239 = scmp.ne.s32.totalorder %s231, %s234
      %p240 = scmp.eq.s32.totalorder %s17, 0
      %p241 = por %p239, %p240
      %p242 = scmp.ne.s32.totalorder %s231, %s234
      %p243 = scmp.eq.s32.totalorder %s22, 3
      %p244 = por %p242, %p243
      %p245 = scmp.ne.s32.totalorder %s234, %s235
      %p246 = scmp.eq.s32.totalorder %s22, 0
      %p247 = por %p245, %p246
      %p248 = scmp.ne.s32.totalorder %s234, %s235
      %p249 = scmp.eq.s32.totalorder %s23, 3
      %p250 = por %p248, %p249
      %p252 = scmp.ne.s32.totalorder %s235, %s251
      %p253 = scmp.eq.s32.totalorder %s23, 0
      %p254 = por %p252, %p253
      %p255 = scmp.le.s32.totalorder 1, %s17
      %p256 = scmp.lt.s32.totalorder %s17, 5
      %p257 = pnand %p255, %p256
      %p258 = pneg %p257
      // Predicated region
      $region9: #{lambda_layer_forward.3} parent=5 // pred_check
        _
      $region10: #{lambda_layer_forward.3} parent=5 // pred_check_branch
        %260 = sbr.rel (%p257) target = $region12
      $region11: #{lambda_layer_forward.3} parent=5 // pred_region
        %s261 = ssub.s32 %s17, 1
        // Predicated region
        $region13: #{lambda_layer_forward.3} parent=11 // pred_check
          %p262 = pneg %p130
        $region14: #{lambda_layer_forward.3} parent=11 // pred_check_branch
          %264 = sbr.rel (%p262) target = $region16
        $region15: #{lambda_layer_forward.3} parent=11 // pred_region
          _
        $region16: #{lambda_layer_forward.3} parent=11 // pred_fallthru
          _
        // Predicated region
        $region17: #{lambda_layer_forward.3} parent=11 // pred_check
          %p265 = pneg %p151
        $region18: #{lambda_layer_forward.3} parent=11 // pred_check_branch
          %267 = sbr.rel (%p265) target = $region20
        $region19: #{lambda_layer_forward.3} parent=11 // pred_region
          _
        $region20: #{lambda_layer_forward.3} parent=11 // pred_fallthru
          _
        // Predicated region
        $region21: #{lambda_layer_forward.3} parent=11 // pred_check
          %p268 = pneg %p172
        $region22: #{lambda_layer_forward.3} parent=11 // pred_check_branch
          %270 = sbr.rel (%p268) target = $region24
        $region23: #{lambda_layer_forward.3} parent=11 // pred_region
          _
        $region24: #{lambda_layer_forward.3} parent=11 // pred_fallthru
          _
        // Predicated region
        $region25: #{lambda_layer_forward.3} parent=11 // pred_check
          %p271 = pneg %p193
        $region26: #{lambda_layer_forward.3} parent=11 // pred_check_branch
          %273 = sbr.rel (%p271) target = $region28
        $region27: #{lambda_layer_forward.3} parent=11 // pred_region
          _
        $region28: #{lambda_layer_forward.3} parent=11 // pred_fallthru
          _
      $region12: #{lambda_layer_forward.3} parent=5 // pred_fallthru
        _
      %p274 = scmp.lt.s32.totalorder %s17, 4
      // Predicated region
      $region29: #{lambda_layer_forward.3} parent=5 // pred_check
        %p275 = pneg %p274
      $region30: #{lambda_layer_forward.3} parent=5 // pred_check_branch
        %277 = sbr.rel (%p275) target = $region32
      $region31: #{lambda_layer_forward.3} parent=5 // pred_region
        // Predicated region
        $region33: #{lambda_layer_forward.3} parent=31 // pred_check
          %p278 = pneg %p51
        $region34: #{lambda_layer_forward.3} parent=31 // pred_check_branch
          %280 = sbr.rel (%p278) target = $region36
        $region35: #{lambda_layer_forward.3} parent=31 // pred_region
          %s281 = sand.u32 %s41, 1
          %s282 = sand.u32 %s41, 1
          %s283 = smul.addr %s282, 32
          %s284 = scalar_lea.vmem [#allocation3], %s283
          %s285 = smul.addr %s25, 16
          %s286 = sadd.s32 %s24, %s285
          %s287 = smul.addr %s286, 4
          %s288 = scalar_lea.vmem %s0, %s287
          // Predicated region
          $region37: #{lambda_layer_forward.3} parent=35 // pred_check
            _
          $region38: #{lambda_layer_forward.3} parent=35 // pred_check_branch
            %290 = sbr.rel (0) target = $region40
          $region39: #{lambda_layer_forward.3} parent=35 // pred_region
            // Predicated region
            $region41: #{lambda_layer_forward.3} parent=39 // pred_check
              _
            $region42: #{lambda_layer_forward.3} parent=39 // pred_check_branch
              %292 = sbr.rel target = $region44
            $region43: #{lambda_layer_forward.3} parent=39 // pred_region
              // Predicated region
              $region56: #{lambda_layer_forward.3} parent=43 // pred_check
                _
              $region57: #{lambda_layer_forward.3} parent=43 // pred_check_branch
                %321 = sbr.rel (0) target = $region59
              $region58: #{lambda_layer_forward.3} parent=43 // pred_region
                loop: start=0, step=1, limit=1
                $region60: #{lambda_layer_forward.3} parent=58 // loop_pre_header
                  _
                $region61: #{lambda_layer_forward.3} parent=58 // loop_header
                  %s323 = sphi 0, %s327
                  %p324 = scmp.ge.s32.totalorder %s323, 1
                  %s328 = sphi %s288, %s288
                  %s329 = sphi %s284, %s284
                $region62: #{lambda_layer_forward.3} parent=58 // loop_header_branch
                  %326 = sbr.rel (%p324) target = $region66
                $region63: #{lambda_layer_forward.3} parent=58 // loop_body
                  _
                $region64: #{lambda_layer_forward.3} parent=58 // loop_footer
                  %s327 = sadd.s32 1, %s323
                $region65: #{lambda_layer_forward.3} parent=58 // loop_footer_branch
                  %322 = sbr.rel target = $region61
                $region66: #{lambda_layer_forward.3} parent=58 // loop_exit
                  _
                loop: start=0, step=1, limit=1
                $region67: #{lambda_layer_forward.3} parent=58 // loop_pre_header
                  _
                $region68: #{lambda_layer_forward.3} parent=58 // loop_header
                  %s332 = sphi 0, %s336
                  %p333 = scmp.ge.s32.totalorder %s332, 1
                  %s337 = sphi %s288, %s288
                  %s338 = sphi %s284, %s284
                $region69: #{lambda_layer_forward.3} parent=58 // loop_header_branch
                  %335 = sbr.rel (%p333) target = $region73
                $region70: #{lambda_layer_forward.3} parent=58 // loop_body
                  %v339 = vld [vmem:[%s337] sm:$0xf]
                  %340 = vst [vmem:[%s338] sm:$0xf] %v339
                  %v341 = vld [vmem:[%s337 + $0x8] sm:$0xf]
                  %342 = vst [vmem:[%s338 + $0x4] sm:$0xf] %v341
                  %v343 = vld [vmem:[%s337 + $0x10] sm:$0xf]
                  %344 = vst [vmem:[%s338 + $0x8] sm:$0xf] %v343
                  %v345 = vld [vmem:[%s337 + $0x18] sm:$0xf]
                  %346 = vst [vmem:[%s338 + $0xc] sm:$0xf] %v345
                  %v347 = vld [vmem:[%s337 + $0x20] sm:$0xf]
                  %348 = vst [vmem:[%s338 + $0x10] sm:$0xf] %v347
                  %v349 = vld [vmem:[%s337 + $0x28] sm:$0xf]
                  %350 = vst [vmem:[%s338 + $0x14] sm:$0xf] %v349
                  %v351 = vld [vmem:[%s337 + $0x30] sm:$0xf]
                  %352 = vst [vmem:[%s338 + $0x18] sm:$0xf] %v351
                  %v353 = vld [vmem:[%s337 + $0x38] sm:$0xf]
                  %354 = vst [vmem:[%s338 + $0x1c] sm:$0xf] %v353
                $region71: #{lambda_layer_forward.3} parent=58 // loop_footer
                  %s336 = sadd.s32 1, %s332
                $region72: #{lambda_layer_forward.3} parent=58 // loop_footer_branch
                  %331 = sbr.rel target = $region68
                $region73: #{lambda_layer_forward.3} parent=58 // loop_exit
                  _
              $region59: #{lambda_layer_forward.3} parent=43 // pred_fallthru
                _
            $region44: #{lambda_layer_forward.3} parent=39 // pred_fallthru
              _
            // Predicated region
            $region45: #{lambda_layer_forward.3} parent=39 // pred_check
              _
            $region46: #{lambda_layer_forward.3} parent=39 // pred_check_branch
              %294 = sbr.rel (0) target = $region48
            $region47: #{lambda_layer_forward.3} parent=39 // pred_region
              loop: start=0, step=1, limit=1
              $region49: #{lambda_layer_forward.3} parent=47 // loop_pre_header
                _
              $region50: #{lambda_layer_forward.3} parent=47 // loop_header
                %s297 = sphi 0, %s301
                %p298 = scmp.ge.s32.totalorder %s297, 1
                %s302 = sphi %s288, %s288
                %s303 = sphi %s284, %s284
              $region51: #{lambda_layer_forward.3} parent=47 // loop_header_branch
                %300 = sbr.rel (%p298) target = $region55
              $region52: #{lambda_layer_forward.3} parent=47 // loop_body
                %v304 = vld [vmem:[%s302] sm:$0xf]
                %305 = vst [vmem:[%s303] sm:$0xf] %v304
                %v306 = vld [vmem:[%s302 + $0x8] sm:$0xf]
                %307 = vst [vmem:[%s303 + $0x4] sm:$0xf] %v306
                %v308 = vld [vmem:[%s302 + $0x10] sm:$0xf]
                %309 = vst [vmem:[%s303 + $0x8] sm:$0xf] %v308
                %v310 = vld [vmem:[%s302 + $0x18] sm:$0xf]
                %311 = vst [vmem:[%s303 + $0xc] sm:$0xf] %v310
                %v312 = vld [vmem:[%s302 + $0x20] sm:$0xf]
                %313 = vst [vmem:[%s303 + $0x10] sm:$0xf] %v312
                %v314 = vld [vmem:[%s302 + $0x28] sm:$0xf]
                %315 = vst [vmem:[%s303 + $0x14] sm:$0xf] %v314
                %v316 = vld [vmem:[%s302 + $0x30] sm:$0xf]
                %317 = vst [vmem:[%s303 + $0x18] sm:$0xf] %v316
                %v318 = vld [vmem:[%s302 + $0x38] sm:$0xf]
                %319 = vst [vmem:[%s303 + $0x1c] sm:$0xf] %v318
              $region53: #{lambda_layer_forward.3} parent=47 // loop_footer
                %s301 = sadd.s32 1, %s297
              $region54: #{lambda_layer_forward.3} parent=47 // loop_footer_branch
                %296 = sbr.rel target = $region50
              $region55: #{lambda_layer_forward.3} parent=47 // loop_exit
                _
            $region48: #{lambda_layer_forward.3} parent=39 // pred_fallthru
              _
          $region40: #{lambda_layer_forward.3} parent=35 // pred_fallthru
            _
          %355 = vnop
        $region36: #{lambda_layer_forward.3} parent=31 // pred_fallthru
          _
        // Predicated region
        $region74: #{lambda_layer_forward.3} parent=31 // pred_check
          %p356 = pneg %p77
        $region75: #{lambda_layer_forward.3} parent=31 // pred_check_branch
          %358 = sbr.rel (%p356) target = $region77
        $region76: #{lambda_layer_forward.3} parent=31 // pred_region
          %p359 = scmp.lt.s32.totalorder %s25, 1
          %s360 = scalar_select %p359, %s25, 1
          %s361 = smul.addr %s360, 4
          %s362 = smul.addr %s361, 4
          %s363 = scalar_lea.vmem %s1, %s362
        $region77: #{lambda_layer_forward.3} parent=31 // pred_fallthru
          _
        // Predicated region
        $region78: #{lambda_layer_forward.3} parent=31 // pred_check
          %p364 = pneg %p103
        $region79: #{lambda_layer_forward.3} parent=31 // pred_check_branch
          %366 = sbr.rel (%p364) target = $region81
        $region80: #{lambda_layer_forward.3} parent=31 // pred_region
          %p367 = scmp.lt.s32.totalorder %s25, 1
          %s368 = scalar_select %p367, %s25, 1
          %s369 = smul.addr %s368, 2
          %s370 = smul.addr %s369, 4
          %s371 = scalar_lea.vmem %s2, %s370
        $region81: #{lambda_layer_forward.3} parent=31 // pred_fallthru
          _
        // Predicated region
        $region82: #{lambda_layer_forward.3} parent=31 // pred_check
          %p372 = pneg %p213
        $region83: #{lambda_layer_forward.3} parent=31 // pred_check_branch
          %374 = sbr.rel (%p372) target = $region85
        $region84: #{lambda_layer_forward.3} parent=31 // pred_region
          %s375 = sand.u32 %s203, 1
          %s376 = scalar_lea.sflag [#allocation5], %s375
          %s377 = sand.u32 %s203, 1
          %s378 = smul.addr %s377, 2048
          %s379 = scalar_lea.vmem [#allocation4], %s378
          %s381 = ssub.s32 32768, 32768
          %382 = vsyncadd %s376, %s381
          %s383 = smul.addr %s24, 64
          %s384 = scalar_lea.hbm %s7, %s383
          %s385 = sshll.u32 %s379, 4
          %s386 = int_to_ptr.vmem [resolvable:$true] %s385
          %391 = dma.hbm_to_vmem [thread:$0]  %s384, 32768, %s386, %s376, 128, 64, 4
        $region85: #{lambda_layer_forward.3} parent=31 // pred_fallthru
          _
      $region32: #{lambda_layer_forward.3} parent=5 // pred_fallthru
        _
      %p392 = scmp.le.s32.totalorder 1, %s17
      %p393 = scmp.lt.s32.totalorder %s17, 5
      %p394 = pnand %p392, %p393
      %p395 = pneg %p394
      // Predicated region
      $region86: #{lambda_layer_forward.3} parent=5 // pred_check
        _
      $region87: #{lambda_layer_forward.3} parent=5 // pred_check_branch
        %397 = sbr.rel (%p394) target = $region89
      $region88: #{lambda_layer_forward.3} parent=5 // pred_region
        %s398 = ssub.s32 %s17, 1
        %s399 = sand.u32 %s44, 1
        %s400 = sand.u32 %s44, 1
        %s401 = smul.addr %s400, 32
        %s402 = scalar_lea.vmem [#allocation3], %s401
        // Predicated region
        $region90: #{lambda_layer_forward.3} parent=88 // pred_check
          %p403 = pneg %p57
        $region91: #{lambda_layer_forward.3} parent=88 // pred_check_branch
          %405 = sbr.rel (%p403) target = $region93
        $region92: #{lambda_layer_forward.3} parent=88 // pred_region
          _
        $region93: #{lambda_layer_forward.3} parent=88 // pred_fallthru
          _
        %s406 = sand.u32 %s206, 1
        %s407 = scalar_lea.sflag [#allocation5], %s406
        %s408 = sand.u32 %s206, 1
        %s409 = smul.addr %s408, 2048
        %s410 = scalar_lea.vmem [#allocation4], %s409
        // Predicated region
        $region94: #{lambda_layer_forward.3} parent=88 // pred_check
          %p411 = pneg %p219
        $region95: #{lambda_layer_forward.3} parent=88 // pred_check_branch
          %413 = sbr.rel (%p411) target = $region97
        $region96: #{lambda_layer_forward.3} parent=88 // pred_region
          %414 = dma.done %s407, 32768
        $region97: #{lambda_layer_forward.3} parent=88 // pred_fallthru
          _
        %s415 = sand.u32 %s44, 1
        %s416 = sand.u32 %s44, 1
        %s417 = smul.addr %s416, 32
        %s418 = scalar_lea.vmem [#allocation3], %s417
        %p419 = pneg %p57
        %p420 = pneg %p54
        %p421 = scmp.lt.s32.totalorder %s27, 1
        %s422 = scalar_select %p421, %s27, 1
        %s423 = smul.addr %s422, 4
        %s424 = smul.addr %s423, 4
        %s425 = scalar_lea.vmem %s1, %s424
        %p426 = pneg %p83
        %p427 = pneg %p80
        %p428 = scmp.lt.s32.totalorder %s27, 1
        %s429 = scalar_select %p428, %s27, 1
        %s430 = smul.addr %s429, 2
        %s431 = smul.addr %s430, 4
        %s432 = scalar_lea.vmem %s2, %s431
        %p433 = pneg %p109
        %p434 = pneg %p106
        %p435 = pneg %p130
        %p436 = pneg %p127
        %p437 = pneg %p151
        %p438 = pneg %p148
        %p439 = pneg %p172
        %p440 = pneg %p169
        %p441 = pneg %p193
        %p442 = pneg %p190
        %s443 = sand.u32 %s206, 1
        %s444 = scalar_lea.sflag [#allocation5], %s443
        %s445 = sand.u32 %s206, 1
        %s446 = smul.addr %s445, 2048
        %s447 = scalar_lea.vmem [#allocation4], %s446
        %p448 = pneg %p219
        %p449 = pneg %p216
        %p450 = pneg %p247
        %p451 = pneg %p244
        %s452 = sand.u32 %s234, 1
        %s453 = sand.u32 %s234, 1
        %s454 = smul.addr %s453, 32
        %s455 = scalar_lea.vmem [#allocation6], %s454
        %p456 = scmp.lt.s32.totalorder %s27, 1
        %s457 = scalar_select %p456, %s27, 1
        %s458 = smul.addr %s457, 4
        %s459 = smul.addr %s458, 4
        %s460 = scalar_lea.vmem %s1, %s459
        %p461 = scmp.lt.s32.totalorder %s27, 1
        %s462 = scalar_select %p461, %s27, 1
        %s463 = smul.addr %s462, 2
        %s464 = smul.addr %s463, 4
        %s465 = scalar_lea.vmem %s2, %s464
        %v467 = vld [vmem:[%s465] sm:$0xff]
        %v468 = vunpack.c.l.bf16 %v467
        %v469 = vunpack.c.h.bf16 %v467
        %v470 = vld [vmem:[%s5] sm:$0xff]
        %472 = vset.pattern.permute.xlu0 0
        %473 = vperm.xlu0 %472, %v470
        %v474 = vpop.permute.xlu0 %473
        %v476 = vmul.f32 %v468, %v474
        %v477 = vmul.f32 %v469, %v474
        %v478 = vld [vmem:[%s6] sm:$0xff]
        %480 = vset.pattern.permute.xlu0 0
        %481 = vperm.xlu0 %480, %v478
        %v482 = vpop.permute.xlu0 %481
        %v484 = vadd.f32 %v476, %v482
        %v485 = vadd.f32 %v477, %v482
        %v486 = vpack.c.bf16 %v484, %v484
        %v487 = vpack.c.bf16 %v485, %v485
        %p488 = scmp.eq.s32.totalorder %s26, 0
        // Predicated region
        $region98: #{lambda_layer_forward.3} parent=88 // pred_check
          %p489 = pneg %p488
        $region99: #{lambda_layer_forward.3} parent=88 // pred_check_branch
          %491 = sbr.rel (%p489) target = $region101
        $region100: #{lambda_layer_forward.3} parent=88 // pred_region
          %v492 = vld [vmem:[%s460] sm:$0xff]
          %v493 = vld [vmem:[%s460 + $0x8] sm:$0xff]
          %v494 = vunpack.c.l.bf16 %v492
          %v495 = vunpack.c.h.bf16 %v492
          %v496 = vunpack.c.l.bf16 %v493
          %v497 = vunpack.c.h.bf16 %v493
          %v498 = vmax.f32 %v494, %v495
          %499 = vmax.xlane.f32.xlu0 %v498
          %v500 = vpop.xlane.xlu0 %499
          %v501 = vmax.f32 %v496, %v497
          %502 = vmax.xlane.f32.xlu0 %v501
          %v503 = vpop.xlane.xlu0 %502
          %v504 = vsub.f32 %v494, %v500
          %v505 = vsub.f32 %v495, %v500
          %v506 = vsub.f32 %v496, %v503
          %v507 = vsub.f32 %v497, %v503
          %v508 = vmul.f32 %v504, 1.442695
          %v509 = vpow.pop %v508
          %v510 = vmul.f32 %v505, 1.442695
          %v511 = vpow.pop %v510
          %v512 = vmul.f32 %v506, 1.442695
          %v513 = vpow.pop %v512
          %v514 = vmul.f32 %v507, 1.442695
          %v515 = vpow.pop %v514
          %v516 = vadd.f32 %v509, %v511
          %517 = vadd.xlane.f32.xlu0 %v516
          %v518 = vpop.xlane.xlu0 %517
          %v519 = vadd.f32 %v513, %v515
          %520 = vadd.xlane.f32.xlu0 %v519
          %v521 = vpop.xlane.xlu0 %520
          %v522 = vrcp.pop %v518
          %v523 = vrcp.pop %v521
          %v524 = vmul.f32 %v509, %v522
          %v525 = vmul.f32 %v511, %v522
          %v526 = vmul.f32 %v513, %v523
          %v527 = vmul.f32 %v515, %v523
          %v528 = vpack.c.bf16 %v526, %v524
          %v529 = vpack.c.bf16 %v527, %v525
          %530 = vmatprep.subr.bf16.mxu0 %v529
          %531 = vmatpush1.bf16.xpose.msra.mxu0 %v528
          %532 = vmatprep.subr.bf16.mxu0 0
          %533 = vmatpush1.bf16.xpose.msra.mxu0 0
          %534 = vmatprep.subr.bf16.mxu0 0
          %535 = vmatpush1.bf16.xpose.msra.mxu0 0
          %536 = vmatprep.subr.bf16.mxu0 0
          %537 = vmatpush1.bf16.xpose.msra.mxu0 0
          %538 = vmatprep.subr.bf16.mxu0 0
          %539 = vmatpush1.bf16.xpose.msra.mxu0 0
          %540 = vmatprep.subr.bf16.mxu0 0
          %541 = vmatpush1.bf16.xpose.msra.mxu0 0
          %542 = vmatprep.subr.bf16.mxu0 0
          %543 = vmatpush1.bf16.xpose.msra.mxu0 0
          %544 = vmatprep.subr.bf16.mxu0 0
          %545 = vmatpush1.bf16.xpose.msra.mxu0 0
          %546 = vmatprep.subr.bf16.mxu0 0
          %547 = vmatpush1.bf16.xpose.msra.mxu0 0
          %548 = vmatprep.subr.bf16.mxu0 0
          %549 = vmatpush1.bf16.xpose.msra.mxu0 0
          %550 = vmatprep.subr.bf16.mxu0 0
          %551 = vmatpush1.bf16.xpose.msra.mxu0 0
          %552 = vmatprep.subr.bf16.mxu0 0
          %553 = vmatpush1.bf16.xpose.msra.mxu0 0
          %554 = vmatprep.subr.bf16.mxu0 0
          %555 = vmatpush1.bf16.xpose.msra.mxu0 0
          %556 = vmatprep.subr.bf16.mxu0 0
          %557 = vmatpush1.bf16.xpose.msra.mxu0 0
          %558 = vmatprep.subr.bf16.mxu0 0
          %559 = vmatpush1.bf16.xpose.msra.mxu0 0
          %560 = vmatprep.subr.bf16.mxu0 0
          %561 = vmatpush1.bf16.xpose.msra.mxu0 0
          %562 = vmatprep.mubr.bf16.mxu0 %v487
          %563 = vmatmul.mubr.bf16.gmra.mrb[0].mxu0 %v486
          %v564 = vpop.f32.mrb[0].mxu0
          %v565 = vadd.f32 0.0, %v564
          %v566 = vpop.f32.mrb[0].mxu0
          %v567 = vpop.f32.mrb[0].mxu0
          %v568 = vpop.f32.mrb[0].mxu0
          %569 = vdwg.mxu0
          %s570 = smul.u32 %s27, 8
          %s571 = scalar_lea.vmem [#allocation2], %s570
          %vm572 = vcmask 130048
          %573 = vst.msk [vmem:[%s571] sm:$0xff] %vm572, %v565
        $region101: #{lambda_layer_forward.3} parent=88 // pred_fallthru
          _
        %s574 = smul.u32 %s27, 8
        %s575 = scalar_lea.vmem [#allocation2], %s574
        %v576 = vld [vmem:[%s575] sm:$0xff]
        %v577 = vld [vmem:[%s402] sm:$0xf]
        %v578 = vld [vmem:[%s402 + $0x4] sm:$0xf]
        %v579 = vld [vmem:[%s402 + $0x8] sm:$0xf]
        %v580 = vld [vmem:[%s402 + $0xc] sm:$0xf]
        %v581 = vld [vmem:[%s402 + $0x10] sm:$0xf]
        %v582 = vld [vmem:[%s402 + $0x14] sm:$0xf]
        %v583 = vld [vmem:[%s402 + $0x18] sm:$0xf]
        %v584 = vld [vmem:[%s402 + $0x1c] sm:$0xf]
        %v585 = vunpack.c.l.bf16 %v577
        %v586 = vunpack.c.l.bf16 %v578
        %v587 = vunpack.c.l.bf16 %v579
        %v588 = vunpack.c.l.bf16 %v580
        %v589 = vunpack.c.l.bf16 %v581
        %v590 = vunpack.c.l.bf16 %v582
        %v591 = vunpack.c.l.bf16 %v583
        %v592 = vunpack.c.l.bf16 %v584
        %v593 = vld [vmem:[%s3] sm:$0xff]
        %v594 = vld [vmem:[%s3 + $0x8] sm:$0xff]
        %v595 = vld [vmem:[%s3 + $0x10] sm:$0xff]
        %v596 = vld [vmem:[%s3 + $0x18] sm:$0xff]
        %v597 = vld [vmem:[%s3 + $0x20] sm:$0xff]
        %v598 = vld [vmem:[%s3 + $0x28] sm:$0xff]
        %v599 = vld [vmem:[%s3 + $0x30] sm:$0xff]
        %v600 = vld [vmem:[%s3 + $0x38] sm:$0xff]
        %602 = vset.pattern.permute.xlu0 0
        %603 = vperm.xlu0 %602, %v593
        %v604 = vpop.permute.xlu0 %603
        %607 = vset.pattern.permute.xlu0 0
        %608 = vperm.xlu0 %607, %v594
        %v609 = vpop.permute.xlu0 %608
        %612 = vset.pattern.permute.xlu0 0
        %613 = vperm.xlu0 %612, %v595
        %v614 = vpop.permute.xlu0 %613
        %617 = vset.pattern.permute.xlu0 0
        %618 = vperm.xlu0 %617, %v596
        %v619 = vpop.permute.xlu0 %618
        %622 = vset.pattern.permute.xlu0 0
        %623 = vperm.xlu0 %622, %v597
        %v624 = vpop.permute.xlu0 %623
        %627 = vset.pattern.permute.xlu0 0
        %628 = vperm.xlu0 %627, %v598
        %v629 = vpop.permute.xlu0 %628
        %632 = vset.pattern.permute.xlu0 0
        %633 = vperm.xlu0 %632, %v599
        %v634 = vpop.permute.xlu0 %633
        %637 = vset.pattern.permute.xlu0 0
        %638 = vperm.xlu0 %637, %v600
        %v639 = vpop.permute.xlu0 %638
        %v641 = vmul.f32 %v585, %v604
        %v642 = vmul.f32 %v586, %v609
        %v643 = vmul.f32 %v587, %v614
        %v644 = vmul.f32 %v588, %v619
        %v645 = vmul.f32 %v589, %v624
        %v646 = vmul.f32 %v590, %v629
        %v647 = vmul.f32 %v591, %v634
        %v648 = vmul.f32 %v592, %v639
        %v649 = vld [vmem:[%s4] sm:$0xff]
        %v650 = vld [vmem:[%s4 + $0x8] sm:$0xff]
        %v651 = vld [vmem:[%s4 + $0x10] sm:$0xff]
        %v652 = vld [vmem:[%s4 + $0x18] sm:$0xff]
        %v653 = vld [vmem:[%s4 + $0x20] sm:$0xff]
        %v654 = vld [vmem:[%s4 + $0x28] sm:$0xff]
        %v655 = vld [vmem:[%s4 + $0x30] sm:$0xff]
        %v656 = vld [vmem:[%s4 + $0x38] sm:$0xff]
        %658 = vset.pattern.permute.xlu0 0
        %659 = vperm.xlu0 %658, %v649
        %v660 = vpop.permute.xlu0 %659
        %663 = vset.pattern.permute.xlu0 0
        %664 = vperm.xlu0 %663, %v650
        %v665 = vpop.permute.xlu0 %664
        %668 = vset.pattern.permute.xlu0 0
        %669 = vperm.xlu0 %668, %v651
        %v670 = vpop.permute.xlu0 %669
        %673 = vset.pattern.permute.xlu0 0
        %674 = vperm.xlu0 %673, %v652
        %v675 = vpop.permute.xlu0 %674
        %678 = vset.pattern.permute.xlu0 0
        %679 = vperm.xlu0 %678, %v653
        %v680 = vpop.permute.xlu0 %679
        %683 = vset.pattern.permute.xlu0 0
        %684 = vperm.xlu0 %683, %v654
        %v685 = vpop.permute.xlu0 %684
        %688 = vset.pattern.permute.xlu0 0
        %689 = vperm.xlu0 %688, %v655
        %v690 = vpop.permute.xlu0 %689
        %693 = vset.pattern.permute.xlu0 0
        %694 = vperm.xlu0 %693, %v656
        %v695 = vpop.permute.xlu0 %694
        %v697 = vadd.f32 %v641, %v660
        %v698 = vadd.f32 %v642, %v665
        %v699 = vadd.f32 %v643, %v670
        %v700 = vadd.f32 %v644, %v675
        %v701 = vadd.f32 %v645, %v680
        %v702 = vadd.f32 %v646, %v685
        %v703 = vadd.f32 %v647, %v690
        %v704 = vadd.f32 %v648, %v695
        %v705 = vld [vmem:[%s410] sm:$0xf]
        %v706 = vld [vmem:[%s410 + $0x4] sm:$0xf]
        %v707 = vld [vmem:[%s410 + $0x8] sm:$0xf]
        %v708 = vld [vmem:[%s410 + $0xc] sm:$0xf]
        %v709 = vld [vmem:[%s410 + $0x10] sm:$0xf]
        %v710 = vld [vmem:[%s410 + $0x14] sm:$0xf]
        %v711 = vld [vmem:[%s410 + $0x18] sm:$0xf]
        %v712 = vld [vmem:[%s410 + $0x1c] sm:$0xf]
        %v713 = vld [vmem:[%s410 + $0x20] sm:$0xf]
        %v714 = vld [vmem:[%s410 + $0x24] sm:$0xf]
        %v715 = vld [vmem:[%s410 + $0x28] sm:$0xf]
        %v716 = vld [vmem:[%s410 + $0x2c] sm:$0xf]
        %v717 = vld [vmem:[%s410 + $0x30] sm:$0xf]
        %v718 = vld [vmem:[%s410 + $0x34] sm:$0xf]
        %v719 = vld [vmem:[%s410 + $0x38] sm:$0xf]
        %v720 = vld [vmem:[%s410 + $0x3c] sm:$0xf]
        %v721 = vld [vmem:[%s410 + $0x40] sm:$0xf]
        %v722 = vld [vmem:[%s410 + $0x44] sm:$0xf]
        %v723 = vld [vmem:[%s410 + $0x48] sm:$0xf]
        %v724 = vld [vmem:[%s410 + $0x4c] sm:$0xf]
        %v725 = vld [vmem:[%s410 + $0x50] sm:$0xf]
        %v726 = vld [vmem:[%s410 + $0x54] sm:$0xf]
        %v727 = vld [vmem:[%s410 + $0x58] sm:$0xf]
        %v728 = vld [vmem:[%s410 + $0x5c] sm:$0xf]
        %v729 = vld [vmem:[%s410 + $0x60] sm:$0xf]
        %v730 = vld [vmem:[%s410 + $0x64] sm:$0xf]
        %v731 = vld [vmem:[%s410 + $0x68] sm:$0xf]
        %v732 = vld [vmem:[%s410 + $0x6c] sm:$0xf]
        %v733 = vld [vmem:[%s410 + $0x70] sm:$0xf]
        %v734 = vld [vmem:[%s410 + $0x74] sm:$0xf]
        %v735 = vld [vmem:[%s410 + $0x78] sm:$0xf]
        %v736 = vld [vmem:[%s410 + $0x7c] sm:$0xf]
        %738 = vset.pattern.permute.xlu0 0
        %739 = vperm.xlu0 %738, %v576
        %v740 = vpop.permute.xlu0 %739
        %v774 = vunpack.c.l.b16 %v705
        %v775 = vunpack.c.l.b16 %v706
        %v776 = vunpack.c.l.b16 %v707
        %v777 = vunpack.c.l.b16 %v708
        %v778 = vunpack.c.l.b16 %v709
        %v779 = vunpack.c.l.b16 %v710
        %v780 = vunpack.c.l.b16 %v711
        %v781 = vunpack.c.l.b16 %v712
        %v782 = vunpack.c.l.b16 %v713
        %v783 = vunpack.c.l.b16 %v714
        %v784 = vunpack.c.l.b16 %v715
        %v785 = vunpack.c.l.b16 %v716
        %v786 = vunpack.c.l.b16 %v717
        %v787 = vunpack.c.l.b16 %v718
        %v788 = vunpack.c.l.b16 %v719
        %v789 = vunpack.c.l.b16 %v720
        %v790 = vunpack.c.l.b16 %v721
        %v791 = vunpack.c.l.b16 %v722
        %v792 = vunpack.c.l.b16 %v723
        %v793 = vunpack.c.l.b16 %v724
        %v794 = vunpack.c.l.b16 %v725
        %v795 = vunpack.c.l.b16 %v726
        %v796 = vunpack.c.l.b16 %v727
        %v797 = vunpack.c.l.b16 %v728
        %v798 = vunpack.c.l.b16 %v729
        %v799 = vunpack.c.l.b16 %v730
        %v800 = vunpack.c.l.b16 %v731
        %v801 = vunpack.c.l.b16 %v732
        %v802 = vunpack.c.l.b16 %v733
        %v803 = vunpack.c.l.b16 %v734
        %v804 = vunpack.c.l.b16 %v735
        %v805 = vunpack.c.l.b16 %v736
        %v806 = vpack.c.b16 %v775, %v774
        %v807 = vpack.c.b16 %v777, %v776
        %v808 = vpack.c.b16 %v779, %v778
        %v809 = vpack.c.b16 %v781, %v780
        %v810 = vpack.c.b16 %v783, %v782
        %v811 = vpack.c.b16 %v785, %v784
        %v812 = vpack.c.b16 %v787, %v786
        %v813 = vpack.c.b16 %v789, %v788
        %v814 = vpack.c.b16 %v791, %v790
        %v815 = vpack.c.b16 %v793, %v792
        %v816 = vpack.c.b16 %v795, %v794
        %v817 = vpack.c.b16 %v797, %v796
        %v818 = vpack.c.b16 %v799, %v798
        %v819 = vpack.c.b16 %v801, %v800
        %v820 = vpack.c.b16 %v803, %v802
        %v821 = vpack.c.b16 %v805, %v804
        %838 = vmatprep.subr.bf16.mxu0 0
        %839 = vmatpush1.bf16.msra.mxu0 %v806
        %840 = vmatprep.subr.bf16.mxu0 0
        %841 = vmatpush1.bf16.msra.mxu0 %v807
        %842 = vmatprep.subr.bf16.mxu0 0
        %843 = vmatpush1.bf16.msra.mxu0 %v808
        %844 = vmatprep.subr.bf16.mxu0 0
        %845 = vmatpush1.bf16.msra.mxu0 %v809
        %846 = vmatprep.subr.bf16.mxu0 0
        %847 = vmatpush1.bf16.msra.mxu0 %v810
        %848 = vmatprep.subr.bf16.mxu0 0
        %849 = vmatpush1.bf16.msra.mxu0 %v811
        %850 = vmatprep.subr.bf16.mxu0 0
        %851 = vmatpush1.bf16.msra.mxu0 %v812
        %852 = vmatprep.subr.bf16.mxu0 0
        %853 = vmatpush1.bf16.msra.mxu0 %v813
        %854 = vmatprep.subr.bf16.mxu0 0
        %855 = vmatpush1.bf16.msra.mxu0 %v814
        %856 = vmatprep.subr.bf16.mxu0 0
        %857 = vmatpush1.bf16.msra.mxu0 %v815
        %858 = vmatprep.subr.bf16.mxu0 0
        %859 = vmatpush1.bf16.msra.mxu0 %v816
        %860 = vmatprep.subr.bf16.mxu0 0
        %861 = vmatpush1.bf16.msra.mxu0 %v817
        %862 = vmatprep.subr.bf16.mxu0 0
        %863 = vmatpush1.bf16.msra.mxu0 %v818
        %864 = vmatprep.subr.bf16.mxu0 0
        %865 = vmatpush1.bf16.msra.mxu0 %v819
        %866 = vmatprep.subr.bf16.mxu0 0
        %867 = vmatpush1.bf16.msra.mxu0 %v820
        %868 = vmatprep.subr.bf16.mxu0 0
        %869 = vmatpush1.bf16.msra.mxu0 %v821
        %870 = vmatprep.mubr.bf16.mxu0 %v487
        %871 = vmatmul.mubr.bf16.gmra.mrb[0].mxu0 %v486
        %v872 = vpop.f32.mrb[0].mxu0
        %v873 = vadd.f32 %v740, %v872
        %v874 = vpop.f32.mrb[0].mxu0
        %v875 = vpop.f32.mrb[0].mxu0
        %v876 = vpop.f32.mrb[0].mxu0
        %877 = vdwg.mxu0
        %v878 = vlaneseq
        %v879 = vshrl.u32 %v878, 7
        %v880 = vsub.s32 0, %v879
        %v881 = vrot.slane %v697, %v880
        %v882 = vmul.f32 %v881, %v873
        %v883 = vadd.f32 %v882, 0.0
        %v884 = vlaneseq
        %v885 = vshrl.u32 %v884, 7
        %v886 = vsub.s32 0, %v885
        %v887 = vrot.slane %v699, %v886
        %v888 = vmul.f32 %v887, %v873
        %v889 = vadd.f32 %v888, 0.0
        %v890 = vlaneseq
        %v891 = vshrl.u32 %v890, 7
        %v892 = vsub.s32 0, %v891
        %v893 = vrot.slane %v701, %v892
        %v894 = vmul.f32 %v893, %v873
        %v895 = vadd.f32 %v894, 0.0
        %v896 = vlaneseq
        %v897 = vshrl.u32 %v896, 7
        %v898 = vsub.s32 0, %v897
        %v899 = vrot.slane %v703, %v898
        %v900 = vmul.f32 %v899, %v873
        %v901 = vadd.f32 %v900, 0.0
        %s902 = scalar_lea.vmem %s410, 128 [#allocation4]
        %v903 = vld [vmem:[%s902] sm:$0xf]
        %v904 = vld [vmem:[%s902 + $0x4] sm:$0xf]
        %v905 = vld [vmem:[%s902 + $0x8] sm:$0xf]
        %v906 = vld [vmem:[%s902 + $0xc] sm:$0xf]
        %v907 = vld [vmem:[%s902 + $0x10] sm:$0xf]
        %v908 = vld [vmem:[%s902 + $0x14] sm:$0xf]
        %v909 = vld [vmem:[%s902 + $0x18] sm:$0xf]
        %v910 = vld [vmem:[%s902 + $0x1c] sm:$0xf]
        %v911 = vld [vmem:[%s902 + $0x20] sm:$0xf]
        %v912 = vld [vmem:[%s902 + $0x24] sm:$0xf]
        %v913 = vld [vmem:[%s902 + $0x28] sm:$0xf]
        %v914 = vld [vmem:[%s902 + $0x2c] sm:$0xf]
        %v915 = vld [vmem:[%s902 + $0x30] sm:$0xf]
        %v916 = vld [vmem:[%s902 + $0x34] sm:$0xf]
        %v917 = vld [vmem:[%s902 + $0x38] sm:$0xf]
        %v918 = vld [vmem:[%s902 + $0x3c] sm:$0xf]
        %v919 = vld [vmem:[%s902 + $0x40] sm:$0xf]
        %v920 = vld [vmem:[%s902 + $0x44] sm:$0xf]
        %v921 = vld [vmem:[%s902 + $0x48] sm:$0xf]
        %v922 = vld [vmem:[%s902 + $0x4c] sm:$0xf]
        %v923 = vld [vmem:[%s902 + $0x50] sm:$0xf]
        %v924 = vld [vmem:[%s902 + $0x54] sm:$0xf]
        %v925 = vld [vmem:[%s902 + $0x58] sm:$0xf]
        %v926 = vld [vmem:[%s902 + $0x5c] sm:$0xf]
        %v927 = vld [vmem:[%s902 + $0x60] sm:$0xf]
        %v928 = vld [vmem:[%s902 + $0x64] sm:$0xf]
        %v929 = vld [vmem:[%s902 + $0x68] sm:$0xf]
        %v930 = vld [vmem:[%s902 + $0x6c] sm:$0xf]
        %v931 = vld [vmem:[%s902 + $0x70] sm:$0xf]
        %v932 = vld [vmem:[%s902 + $0x74] sm:$0xf]
        %v933 = vld [vmem:[%s902 + $0x78] sm:$0xf]
        %v934 = vld [vmem:[%s902 + $0x7c] sm:$0xf]
        %935 = vset.pattern.permute.xlu0 1
        %936 = vperm.xlu0 %935, %v576
        %v937 = vpop.permute.xlu0 %936
        %v971 = vunpack.c.l.b16 %v903
        %v972 = vunpack.c.l.b16 %v904
        %v973 = vunpack.c.l.b16 %v905
        %v974 = vunpack.c.l.b16 %v906
        %v975 = vunpack.c.l.b16 %v907
        %v976 = vunpack.c.l.b16 %v908
        %v977 = vunpack.c.l.b16 %v909
        %v978 = vunpack.c.l.b16 %v910
        %v979 = vunpack.c.l.b16 %v911
        %v980 = vunpack.c.l.b16 %v912
        %v981 = vunpack.c.l.b16 %v913
        %v982 = vunpack.c.l.b16 %v914
        %v983 = vunpack.c.l.b16 %v915
        %v984 = vunpack.c.l.b16 %v916
        %v985 = vunpack.c.l.b16 %v917
        %v986 = vunpack.c.l.b16 %v918
        %v987 = vunpack.c.l.b16 %v919
        %v988 = vunpack.c.l.b16 %v920
        %v989 = vunpack.c.l.b16 %v921
        %v990 = vunpack.c.l.b16 %v922
        %v991 = vunpack.c.l.b16 %v923
        %v992 = vunpack.c.l.b16 %v924
        %v993 = vunpack.c.l.b16 %v925
        %v994 = vunpack.c.l.b16 %v926
        %v995 = vunpack.c.l.b16 %v927
        %v996 = vunpack.c.l.b16 %v928
        %v997 = vunpack.c.l.b16 %v929
        %v998 = vunpack.c.l.b16 %v930
        %v999 = vunpack.c.l.b16 %v931
        %v1000 = vunpack.c.l.b16 %v932
        %v1001 = vunpack.c.l.b16 %v933
        %v1002 = vunpack.c.l.b16 %v934
        %v1003 = vpack.c.b16 %v972, %v971
        %v1004 = vpack.c.b16 %v974, %v973
        %v1005 = vpack.c.b16 %v976, %v975
        %v1006 = vpack.c.b16 %v978, %v977
        %v1007 = vpack.c.b16 %v980, %v979
        %v1008 = vpack.c.b16 %v982, %v981
        %v1009 = vpack.c.b16 %v984, %v983
        %v1010 = vpack.c.b16 %v986, %v985
        %v1011 = vpack.c.b16 %v988, %v987
        %v1012 = vpack.c.b16 %v990, %v989
        %v1013 = vpack.c.b16 %v992, %v991
        %v1014 = vpack.c.b16 %v994, %v993
        %v1015 = vpack.c.b16 %v996, %v995
        %v1016 = vpack.c.b16 %v998, %v997
        %v1017 = vpack.c.b16 %v1000, %v999
        %v1018 = vpack.c.b16 %v1002, %v1001
        %1035 = vmatprep.subr.bf16.mxu0 0
        %1036 = vmatpush1.bf16.msra.mxu0 %v1003
        %1037 = vmatprep.subr.bf16.mxu0 0
        %1038 = vmatpush1.bf16.msra.mxu0 %v1004
        %1039 = vmatprep.subr.bf16.mxu0 0
        %1040 = vmatpush1.bf16.msra.mxu0 %v1005
        %1041 = vmatprep.subr.bf16.mxu0 0
        %1042 = vmatpush1.bf16.msra.mxu0 %v1006
        %1043 = vmatprep.subr.bf16.mxu0 0
        %1044 = vmatpush1.bf16.msra.mxu0 %v1007
        %1045 = vmatprep.subr.bf16.mxu0 0
        %1046 = vmatpush1.bf16.msra.mxu0 %v1008
        %1047 = vmatprep.subr.bf16.mxu0 0
        %1048 = vmatpush1.bf16.msra.mxu0 %v1009
        %1049 = vmatprep.subr.bf16.mxu0 0
        %1050 = vmatpush1.bf16.msra.mxu0 %v1010
        %1051 = vmatprep.subr.bf16.mxu0 0
        %1052 = vmatpush1.bf16.msra.mxu0 %v1011
        %1053 = vmatprep.subr.bf16.mxu0 0
        %1054 = vmatpush1.bf16.msra.mxu0 %v1012
        %1055 = vmatprep.subr.bf16.mxu0 0
        %1056 = vmatpush1.bf16.msra.mxu0 %v1013
        %1057 = vmatprep.subr.bf16.mxu0 0
        %1058 = vmatpush1.bf16.msra.mxu0 %v1014
        %1059 = vmatprep.subr.bf16.mxu0 0
        %1060 = vmatpush1.bf16.msra.mxu0 %v1015
        %1061 = vmatprep.subr.bf16.mxu0 0
        %1062 = vmatpush1.bf16.msra.mxu0 %v1016
        %1063 = vmatprep.subr.bf16.mxu0 0
        %1064 = vmatpush1.bf16.msra.mxu0 %v1017
        %1065 = vmatprep.subr.bf16.mxu0 0
        %1066 = vmatpush1.bf16.msra.mxu0 %v1018
        %1067 = vmatprep.mubr.bf16.mxu0 %v487
        %1068 = vmatmul.mubr.bf16.gmra.mrb[0].mxu0 %v486
        %v1069 = vpop.f32.mrb[0].mxu0
        %v1070 = vadd.f32 %v937, %v1069
        %v1071 = vpop.f32.mrb[0].mxu0
        %v1072 = vpop.f32.mrb[0].mxu0
        %v1073 = vpop.f32.mrb[0].mxu0
        %1074 = vdwg.mxu0
        %v1075 = vlaneseq
        %v1076 = vshrl.u32 %v1075, 7
        %v1077 = vsub.s32 1, %v1076
        %v1078 = vrot.slane %v697, %v1077
        %v1079 = vmul.f32 %v1078, %v1070
        %v1080 = vadd.f32 %v883, %v1079
        %v1081 = vlaneseq
        %v1082 = vshrl.u32 %v1081, 7
        %v1083 = vsub.s32 1, %v1082
        %v1084 = vrot.slane %v699, %v1083
        %v1085 = vmul.f32 %v1084, %v1070
        %v1086 = vadd.f32 %v889, %v1085
        %v1087 = vlaneseq
        %v1088 = vshrl.u32 %v1087, 7
        %v1089 = vsub.s32 1, %v1088
        %v1090 = vrot.slane %v701, %v1089
        %v1091 = vmul.f32 %v1090, %v1070
        %v1092 = vadd.f32 %v895, %v1091
        %v1093 = vlaneseq
        %v1094 = vshrl.u32 %v1093, 7
        %v1095 = vsub.s32 1, %v1094
        %v1096 = vrot.slane %v703, %v1095
        %v1097 = vmul.f32 %v1096, %v1070
        %v1098 = vadd.f32 %v901, %v1097
        %s1099 = scalar_lea.vmem %s410, 256 [#allocation4]
        %v1100 = vld [vmem:[%s1099] sm:$0xf]
        %v1101 = vld [vmem:[%s1099 + $0x4] sm:$0xf]
        %v1102 = vld [vmem:[%s1099 + $0x8] sm:$0xf]
        %v1103 = vld [vmem:[%s1099 + $0xc] sm:$0xf]
        %v1104 = vld [vmem:[%s1099 + $0x10] sm:$0xf]
        %v1105 = vld [vmem:[%s1099 + $0x14] sm:$0xf]
        %v1106 = vld [vmem:[%s1099 + $0x18] sm:$0xf]
        %v1107 = vld [vmem:[%s1099 + $0x1c] sm:$0xf]
        %v1108 = vld [vmem:[%s1099 + $0x20] sm:$0xf]
        %v1109 = vld [vmem:[%s1099 + $0x24] sm:$0xf]
        %v1110 = vld [vmem:[%s1099 + $0x28] sm:$0xf]
        %v1111 = vld [vmem:[%s1099 + $0x2c] sm:$0xf]
        %v1112 = vld [vmem:[%s1099 + $0x30] sm:$0xf]
        %v1113 = vld [vmem:[%s1099 + $0x34] sm:$0xf]
        %v1114 = vld [vmem:[%s1099 + $0x38] sm:$0xf]
        %v1115 = vld [vmem:[%s1099 + $0x3c] sm:$0xf]
        %v1116 = vld [vmem:[%s1099 + $0x40] sm:$0xf]
        %v1117 = vld [vmem:[%s1099 + $0x44] sm:$0xf]
        %v1118 = vld [vmem:[%s1099 + $0x48] sm:$0xf]
        %v1119 = vld [vmem:[%s1099 + $0x4c] sm:$0xf]
        %v1120 = vld [vmem:[%s1099 + $0x50] sm:$0xf]
        %v1121 = vld [vmem:[%s1099 + $0x54] sm:$0xf]
        %v1122 = vld [vmem:[%s1099 + $0x58] sm:$0xf]
        %v1123 = vld [vmem:[%s1099 + $0x5c] sm:$0xf]
        %v1124 = vld [vmem:[%s1099 + $0x60] sm:$0xf]
        %v1125 = vld [vmem:[%s1099 + $0x64] sm:$0xf]
        %v1126 = vld [vmem:[%s1099 + $0x68] sm:$0xf]
        %v1127 = vld [vmem:[%s1099 + $0x6c] sm:$0xf]
        %v1128 = vld [vmem:[%s1099 + $0x70] sm:$0xf]
        %v1129 = vld [vmem:[%s1099 + $0x74] sm:$0xf]
        %v1130 = vld [vmem:[%s1099 + $0x78] sm:$0xf]
        %v1131 = vld [vmem:[%s1099 + $0x7c] sm:$0xf]
        %1132 = vset.pattern.permute.xlu0 2
        %1133 = vperm.xlu0 %1132, %v576
        %v1134 = vpop.permute.xlu0 %1133
        %v1168 = vunpack.c.l.b16 %v1100
        %v1169 = vunpack.c.l.b16 %v1101
        %v1170 = vunpack.c.l.b16 %v1102
        %v1171 = vunpack.c.l.b16 %v1103
        %v1172 = vunpack.c.l.b16 %v1104
        %v1173 = vunpack.c.l.b16 %v1105
        %v1174 = vunpack.c.l.b16 %v1106
        %v1175 = vunpack.c.l.b16 %v1107
        %v1176 = vunpack.c.l.b16 %v1108
        %v1177 = vunpack.c.l.b16 %v1109
        %v1178 = vunpack.c.l.b16 %v1110
        %v1179 = vunpack.c.l.b16 %v1111
        %v1180 = vunpack.c.l.b16 %v1112
        %v1181 = vunpack.c.l.b16 %v1113
        %v1182 = vunpack.c.l.b16 %v1114
        %v1183 = vunpack.c.l.b16 %v1115
        %v1184 = vunpack.c.l.b16 %v1116
        %v1185 = vunpack.c.l.b16 %v1117
        %v1186 = vunpack.c.l.b16 %v1118
        %v1187 = vunpack.c.l.b16 %v1119
        %v1188 = vunpack.c.l.b16 %v1120
        %v1189 = vunpack.c.l.b16 %v1121
        %v1190 = vunpack.c.l.b16 %v1122
        %v1191 = vunpack.c.l.b16 %v1123
        %v1192 = vunpack.c.l.b16 %v1124
        %v1193 = vunpack.c.l.b16 %v1125
        %v1194 = vunpack.c.l.b16 %v1126
        %v1195 = vunpack.c.l.b16 %v1127
        %v1196 = vunpack.c.l.b16 %v1128
        %v1197 = vunpack.c.l.b16 %v1129
        %v1198 = vunpack.c.l.b16 %v1130
        %v1199 = vunpack.c.l.b16 %v1131
        %v1200 = vpack.c.b16 %v1169, %v1168
        %v1201 = vpack.c.b16 %v1171, %v1170
        %v1202 = vpack.c.b16 %v1173, %v1172
        %v1203 = vpack.c.b16 %v1175, %v1174
        %v1204 = vpack.c.b16 %v1177, %v1176
        %v1205 = vpack.c.b16 %v1179, %v1178
        %v1206 = vpack.c.b16 %v1181, %v1180
        %v1207 = vpack.c.b16 %v1183, %v1182
        %v1208 = vpack.c.b16 %v1185, %v1184
        %v1209 = vpack.c.b16 %v1187, %v1186
        %v1210 = vpack.c.b16 %v1189, %v1188
        %v1211 = vpack.c.b16 %v1191, %v1190
        %v1212 = vpack.c.b16 %v1193, %v1192
        %v1213 = vpack.c.b16 %v1195, %v1194
        %v1214 = vpack.c.b16 %v1197, %v1196
        %v1215 = vpack.c.b16 %v1199, %v1198
        %1232 = vmatprep.subr.bf16.mxu0 0
        %1233 = vmatpush1.bf16.msra.mxu0 %v1200
        %1234 = vmatprep.subr.bf16.mxu0 0
        %1235 = vmatpush1.bf16.msra.mxu0 %v1201
        %1236 = vmatprep.subr.bf16.mxu0 0
        %1237 = vmatpush1.bf16.msra.mxu0 %v1202
        %1238 = vmatprep.subr.bf16.mxu0 0
        %1239 = vmatpush1.bf16.msra.mxu0 %v1203
        %1240 = vmatprep.subr.bf16.mxu0 0
        %1241 = vmatpush1.bf16.msra.mxu0 %v1204
        %1242 = vmatprep.subr.bf16.mxu0 0
        %1243 = vmatpush1.bf16.msra.mxu0 %v1205
        %1244 = vmatprep.subr.bf16.mxu0 0
        %1245 = vmatpush1.bf16.msra.mxu0 %v1206
        %1246 = vmatprep.subr.bf16.mxu0 0
        %1247 = vmatpush1.bf16.msra.mxu0 %v1207
        %1248 = vmatprep.subr.bf16.mxu0 0
        %1249 = vmatpush1.bf16.msra.mxu0 %v1208
        %1250 = vmatprep.subr.bf16.mxu0 0
        %1251 = vmatpush1.bf16.msra.mxu0 %v1209
        %1252 = vmatprep.subr.bf16.mxu0 0
        %1253 = vmatpush1.bf16.msra.mxu0 %v1210
        %1254 = vmatprep.subr.bf16.mxu0 0
        %1255 = vmatpush1.bf16.msra.mxu0 %v1211
        %1256 = vmatprep.subr.bf16.mxu0 0
        %1257 = vmatpush1.bf16.msra.mxu0 %v1212
        %1258 = vmatprep.subr.bf16.mxu0 0
        %1259 = vmatpush1.bf16.msra.mxu0 %v1213
        %1260 = vmatprep.subr.bf16.mxu0 0
        %1261 = vmatpush1.bf16.msra.mxu0 %v1214
        %1262 = vmatprep.subr.bf16.mxu0 0
        %1263 = vmatpush1.bf16.msra.mxu0 %v1215
        %1264 = vmatprep.mubr.bf16.mxu0 %v487
        %1265 = vmatmul.mubr.bf16.gmra.mrb[0].mxu0 %v486
        %v1266 = vpop.f32.mrb[0].mxu0
        %v1267 = vadd.f32 %v1134, %v1266
        %v1268 = vpop.f32.mrb[0].mxu0
        %v1269 = vpop.f32.mrb[0].mxu0
        %v1270 = vpop.f32.mrb[0].mxu0
        %1271 = vdwg.mxu0
        %v1272 = vlaneseq
        %v1273 = vshrl.u32 %v1272, 7
        %v1274 = vsub.s32 2, %v1273
        %v1275 = vrot.slane %v697, %v1274
        %v1276 = vmul.f32 %v1275, %v1267
        %v1277 = vadd.f32 %v1080, %v1276
        %v1278 = vlaneseq
        %v1279 = vshrl.u32 %v1278, 7
        %v1280 = vsub.s32 2, %v1279
        %v1281 = vrot.slane %v699, %v1280
        %v1282 = vmul.f32 %v1281, %v1267
        %v1283 = vadd.f32 %v1086, %v1282
        %v1284 = vlaneseq
        %v1285 = vshrl.u32 %v1284, 7
        %v1286 = vsub.s32 2, %v1285
        %v1287 = vrot.slane %v701, %v1286
        %v1288 = vmul.f32 %v1287, %v1267
        %v1289 = vadd.f32 %v1092, %v1288
        %v1290 = vlaneseq
        %v1291 = vshrl.u32 %v1290, 7
        %v1292 = vsub.s32 2, %v1291
        %v1293 = vrot.slane %v703, %v1292
        %v1294 = vmul.f32 %v1293, %v1267
        %v1295 = vadd.f32 %v1098, %v1294
        %s1296 = scalar_lea.vmem %s410, 384 [#allocation4]
        %v1297 = vld [vmem:[%s1296] sm:$0xf]
        %v1298 = vld [vmem:[%s1296 + $0x4] sm:$0xf]
        %v1299 = vld [vmem:[%s1296 + $0x8] sm:$0xf]
        %v1300 = vld [vmem:[%s1296 + $0xc] sm:$0xf]
        %v1301 = vld [vmem:[%s1296 + $0x10] sm:$0xf]
        %v1302 = vld [vmem:[%s1296 + $0x14] sm:$0xf]
        %v1303 = vld [vmem:[%s1296 + $0x18] sm:$0xf]
        %v1304 = vld [vmem:[%s1296 + $0x1c] sm:$0xf]
        %v1305 = vld [vmem:[%s1296 + $0x20] sm:$0xf]
        %v1306 = vld [vmem:[%s1296 + $0x24] sm:$0xf]
        %v1307 = vld [vmem:[%s1296 + $0x28] sm:$0xf]
        %v1308 = vld [vmem:[%s1296 + $0x2c] sm:$0xf]
        %v1309 = vld [vmem:[%s1296 + $0x30] sm:$0xf]
        %v1310 = vld [vmem:[%s1296 + $0x34] sm:$0xf]
        %v1311 = vld [vmem:[%s1296 + $0x38] sm:$0xf]
        %v1312 = vld [vmem:[%s1296 + $0x3c] sm:$0xf]
        %v1313 = vld [vmem:[%s1296 + $0x40] sm:$0xf]
        %v1314 = vld [vmem:[%s1296 + $0x44] sm:$0xf]
        %v1315 = vld [vmem:[%s1296 + $0x48] sm:$0xf]
        %v1316 = vld [vmem:[%s1296 + $0x4c] sm:$0xf]
        %v1317 = vld [vmem:[%s1296 + $0x50] sm:$0xf]
        %v1318 = vld [vmem:[%s1296 + $0x54] sm:$0xf]
        %v1319 = vld [vmem:[%s1296 + $0x58] sm:$0xf]
        %v1320 = vld [vmem:[%s1296 + $0x5c] sm:$0xf]
        %v1321 = vld [vmem:[%s1296 + $0x60] sm:$0xf]
        %v1322 = vld [vmem:[%s1296 + $0x64] sm:$0xf]
        %v1323 = vld [vmem:[%s1296 + $0x68] sm:$0xf]
        %v1324 = vld [vmem:[%s1296 + $0x6c] sm:$0xf]
        %v1325 = vld [vmem:[%s1296 + $0x70] sm:$0xf]
        %v1326 = vld [vmem:[%s1296 + $0x74] sm:$0xf]
        %v1327 = vld [vmem:[%s1296 + $0x78] sm:$0xf]
        %v1328 = vld [vmem:[%s1296 + $0x7c] sm:$0xf]
        %1329 = vset.pattern.permute.xlu0 3
        %1330 = vperm.xlu0 %1329, %v576
        %v1331 = vpop.permute.xlu0 %1330
        %v1365 = vunpack.c.l.b16 %v1297
        %v1366 = vunpack.c.l.b16 %v1298
        %v1367 = vunpack.c.l.b16 %v1299
        %v1368 = vunpack.c.l.b16 %v1300
        %v1369 = vunpack.c.l.b16 %v1301
        %v1370 = vunpack.c.l.b16 %v1302
        %v1371 = vunpack.c.l.b16 %v1303
        %v1372 = vunpack.c.l.b16 %v1304
        %v1373 = vunpack.c.l.b16 %v1305
        %v1374 = vunpack.c.l.b16 %v1306
        %v1375 = vunpack.c.l.b16 %v1307
        %v1376 = vunpack.c.l.b16 %v1308
        %v1377 = vunpack.c.l.b16 %v1309
        %v1378 = vunpack.c.l.b16 %v1310
        %v1379 = vunpack.c.l.b16 %v1311
        %v1380 = vunpack.c.l.b16 %v1312
        %v1381 = vunpack.c.l.b16 %v1313
        %v1382 = vunpack.c.l.b16 %v1314
        %v1383 = vunpack.c.l.b16 %v1315
        %v1384 = vunpack.c.l.b16 %v1316
        %v1385 = vunpack.c.l.b16 %v1317
        %v1386 = vunpack.c.l.b16 %v1318
        %v1387 = vunpack.c.l.b16 %v1319
        %v1388 = vunpack.c.l.b16 %v1320
        %v1389 = vunpack.c.l.b16 %v1321
        %v1390 = vunpack.c.l.b16 %v1322
        %v1391 = vunpack.c.l.b16 %v1323
        %v1392 = vunpack.c.l.b16 %v1324
        %v1393 = vunpack.c.l.b16 %v1325
        %v1394 = vunpack.c.l.b16 %v1326
        %v1395 = vunpack.c.l.b16 %v1327
        %v1396 = vunpack.c.l.b16 %v1328
        %v1397 = vpack.c.b16 %v1366, %v1365
        %v1398 = vpack.c.b16 %v1368, %v1367
        %v1399 = vpack.c.b16 %v1370, %v1369
        %v1400 = vpack.c.b16 %v1372, %v1371
        %v1401 = vpack.c.b16 %v1374, %v1373
        %v1402 = vpack.c.b16 %v1376, %v1375
        %v1403 = vpack.c.b16 %v1378, %v1377
        %v1404 = vpack.c.b16 %v1380, %v1379
        %v1405 = vpack.c.b16 %v1382, %v1381
        %v1406 = vpack.c.b16 %v1384, %v1383
        %v1407 = vpack.c.b16 %v1386, %v1385
        %v1408 = vpack.c.b16 %v1388, %v1387
        %v1409 = vpack.c.b16 %v1390, %v1389
        %v1410 = vpack.c.b16 %v1392, %v1391
        %v1411 = vpack.c.b16 %v1394, %v1393
        %v1412 = vpack.c.b16 %v1396, %v1395
        %1429 = vmatprep.subr.bf16.mxu0 0
        %1430 = vmatpush1.bf16.msra.mxu0 %v1397
        %1431 = vmatprep.subr.bf16.mxu0 0
        %1432 = vmatpush1.bf16.msra.mxu0 %v1398
        %1433 = vmatprep.subr.bf16.mxu0 0
        %1434 = vmatpush1.bf16.msra.mxu0 %v1399
        %1435 = vmatprep.subr.bf16.mxu0 0
        %1436 = vmatpush1.bf16.msra.mxu0 %v1400
        %1437 = vmatprep.subr.bf16.mxu0 0
        %1438 = vmatpush1.bf16.msra.mxu0 %v1401
        %1439 = vmatprep.subr.bf16.mxu0 0
        %1440 = vmatpush1.bf16.msra.mxu0 %v1402
        %1441 = vmatprep.subr.bf16.mxu0 0
        %1442 = vmatpush1.bf16.msra.mxu0 %v1403
        %1443 = vmatprep.subr.bf16.mxu0 0
        %1444 = vmatpush1.bf16.msra.mxu0 %v1404
        %1445 = vmatprep.subr.bf16.mxu0 0
        %1446 = vmatpush1.bf16.msra.mxu0 %v1405
        %1447 = vmatprep.subr.bf16.mxu0 0
        %1448 = vmatpush1.bf16.msra.mxu0 %v1406
        %1449 = vmatprep.subr.bf16.mxu0 0
        %1450 = vmatpush1.bf16.msra.mxu0 %v1407
        %1451 = vmatprep.subr.bf16.mxu0 0
        %1452 = vmatpush1.bf16.msra.mxu0 %v1408
        %1453 = vmatprep.subr.bf16.mxu0 0
        %1454 = vmatpush1.bf16.msra.mxu0 %v1409
        %1455 = vmatprep.subr.bf16.mxu0 0
        %1456 = vmatpush1.bf16.msra.mxu0 %v1410
        %1457 = vmatprep.subr.bf16.mxu0 0
        %1458 = vmatpush1.bf16.msra.mxu0 %v1411
        %1459 = vmatprep.subr.bf16.mxu0 0
        %1460 = vmatpush1.bf16.msra.mxu0 %v1412
        %1461 = vmatprep.mubr.bf16.mxu0 %v487
        %1462 = vmatmul.mubr.bf16.gmra.mrb[0].mxu0 %v486
        %v1463 = vpop.f32.mrb[0].mxu0
        %v1464 = vadd.f32 %v1331, %v1463
        %v1465 = vpop.f32.mrb[0].mxu0
        %v1466 = vpop.f32.mrb[0].mxu0
        %v1467 = vpop.f32.mrb[0].mxu0
        %1468 = vdwg.mxu0
        %v1469 = vlaneseq
        %v1470 = vshrl.u32 %v1469, 7
        %v1471 = vsub.s32 3, %v1470
        %v1472 = vrot.slane %v697, %v1471
        %v1473 = vmul.f32 %v1472, %v1464
        %v1474 = vadd.f32 %v1277, %v1473
        %v1475 = vlaneseq
        %v1476 = vshrl.u32 %v1475, 7
        %v1477 = vsub.s32 3, %v1476
        %v1478 = vrot.slane %v699, %v1477
        %v1479 = vmul.f32 %v1478, %v1464
        %v1480 = vadd.f32 %v1283, %v1479
        %v1481 = vlaneseq
        %v1482 = vshrl.u32 %v1481, 7
        %v1483 = vsub.s32 3, %v1482
        %v1484 = vrot.slane %v701, %v1483
        %v1485 = vmul.f32 %v1484, %v1464
        %v1486 = vadd.f32 %v1289, %v1485
        %v1487 = vlaneseq
        %v1488 = vshrl.u32 %v1487, 7
        %v1489 = vsub.s32 3, %v1488
        %v1490 = vrot.slane %v703, %v1489
        %v1491 = vmul.f32 %v1490, %v1464
        %v1492 = vadd.f32 %v1295, %v1491
        %s1493 = scalar_lea.vmem %s410, 512 [#allocation4]
        %v1494 = vld [vmem:[%s1493] sm:$0xf]
        %v1495 = vld [vmem:[%s1493 + $0x4] sm:$0xf]
        %v1496 = vld [vmem:[%s1493 + $0x8] sm:$0xf]
        %v1497 = vld [vmem:[%s1493 + $0xc] sm:$0xf]
        %v1498 = vld [vmem:[%s1493 + $0x10] sm:$0xf]
        %v1499 = vld [vmem:[%s1493 + $0x14] sm:$0xf]
        %v1500 = vld [vmem:[%s1493 + $0x18] sm:$0xf]
        %v1501 = vld [vmem:[%s1493 + $0x1c] sm:$0xf]
        %v1502 = vld [vmem:[%s1493 + $0x20] sm:$0xf]
        %v1503 = vld [vmem:[%s1493 + $0x24] sm:$0xf]
        %v1504 = vld [vmem:[%s1493 + $0x28] sm:$0xf]
        %v1505 = vld [vmem:[%s1493 + $0x2c] sm:$0xf]
        %v1506 = vld [vmem:[%s1493 + $0x30] sm:$0xf]
        %v1507 = vld [vmem:[%s1493 + $0x34] sm:$0xf]
        %v1508 = vld [vmem:[%s1493 + $0x38] sm:$0xf]
        %v1509 = vld [vmem:[%s1493 + $0x3c] sm:$0xf]
        %v1510 = vld [vmem:[%s1493 + $0x40] sm:$0xf]
        %v1511 = vld [vmem:[%s1493 + $0x44] sm:$0xf]
        %v1512 = vld [vmem:[%s1493 + $0x48] sm:$0xf]
        %v1513 = vld [vmem:[%s1493 + $0x4c] sm:$0xf]
        %v1514 = vld [vmem:[%s1493 + $0x50] sm:$0xf]
        %v1515 = vld [vmem:[%s1493 + $0x54] sm:$0xf]
        %v1516 = vld [vmem:[%s1493 + $0x58] sm:$0xf]
        %v1517 = vld [vmem:[%s1493 + $0x5c] sm:$0xf]
        %v1518 = vld [vmem:[%s1493 + $0x60] sm:$0xf]
        %v1519 = vld [vmem:[%s1493 + $0x64] sm:$0xf]
        %v1520 = vld [vmem:[%s1493 + $0x68] sm:$0xf]
        %v1521 = vld [vmem:[%s1493 + $0x6c] sm:$0xf]
        %v1522 = vld [vmem:[%s1493 + $0x70] sm:$0xf]
        %v1523 = vld [vmem:[%s1493 + $0x74] sm:$0xf]
        %v1524 = vld [vmem:[%s1493 + $0x78] sm:$0xf]
        %v1525 = vld [vmem:[%s1493 + $0x7c] sm:$0xf]
        %1526 = vset.pattern.permute.xlu0 4
        %1527 = vperm.xlu0 %1526, %v576
        %v1528 = vpop.permute.xlu0 %1527
        %v1562 = vunpack.c.l.b16 %v1494
        %v1563 = vunpack.c.l.b16 %v1495
        %v1564 = vunpack.c.l.b16 %v1496
        %v1565 = vunpack.c.l.b16 %v1497
        %v1566 = vunpack.c.l.b16 %v1498
        %v1567 = vunpack.c.l.b16 %v1499
        %v1568 = vunpack.c.l.b16 %v1500
        %v1569 = vunpack.c.l.b16 %v1501
        %v1570 = vunpack.c.l.b16 %v1502
        %v1571 = vunpack.c.l.b16 %v1503
        %v1572 = vunpack.c.l.b16 %v1504
        %v1573 = vunpack.c.l.b16 %v1505
        %v1574 = vunpack.c.l.b16 %v1506
        %v1575 = vunpack.c.l.b16 %v1507
        %v1576 = vunpack.c.l.b16 %v1508
        %v1577 = vunpack.c.l.b16 %v1509
        %v1578 = vunpack.c.l.b16 %v1510
        %v1579 = vunpack.c.l.b16 %v1511
        %v1580 = vunpack.c.l.b16 %v1512
        %v1581 = vunpack.c.l.b16 %v1513
        %v1582 = vunpack.c.l.b16 %v1514
        %v1583 = vunpack.c.l.b16 %v1515
        %v1584 = vunpack.c.l.b16 %v1516
        %v1585 = vunpack.c.l.b16 %v1517
        %v1586 = vunpack.c.l.b16 %v1518
        %v1587 = vunpack.c.l.b16 %v1519
        %v1588 = vunpack.c.l.b16 %v1520
        %v1589 = vunpack.c.l.b16 %v1521
        %v1590 = vunpack.c.l.b16 %v1522
        %v1591 = vunpack.c.l.b16 %v1523
        %v1592 = vunpack.c.l.b16 %v1524
        %v1593 = vunpack.c.l.b16 %v1525
        %v1594 = vpack.c.b16 %v1563, %v1562
        %v1595 = vpack.c.b16 %v1565, %v1564
        %v1596 = vpack.c.b16 %v1567, %v1566
        %v1597 = vpack.c.b16 %v1569, %v1568
        %v1598 = vpack.c.b16 %v1571, %v1570
        %v1599 = vpack.c.b16 %v1573, %v1572
        %v1600 = vpack.c.b16 %v1575, %v1574
        %v1601 = vpack.c.b16 %v1577, %v1576
        %v1602 = vpack.c.b16 %v1579, %v1578
        %v1603 = vpack.c.b16 %v1581, %v1580
        %v1604 = vpack.c.b16 %v1583, %v1582
        %v1605 = vpack.c.b16 %v1585, %v1584
        %v1606 = vpack.c.b16 %v1587, %v1586
        %v1607 = vpack.c.b16 %v1589, %v1588
        %v1608 = vpack.c.b16 %v1591, %v1590
        %v1609 = vpack.c.b16 %v1593, %v1592
        %1626 = vmatprep.subr.bf16.mxu0 0
        %1627 = vmatpush1.bf16.msra.mxu0 %v1594
        %1628 = vmatprep.subr.bf16.mxu0 0
        %1629 = vmatpush1.bf16.msra.mxu0 %v1595
        %1630 = vmatprep.subr.bf16.mxu0 0
        %1631 = vmatpush1.bf16.msra.mxu0 %v1596
        %1632 = vmatprep.subr.bf16.mxu0 0
        %1633 = vmatpush1.bf16.msra.mxu0 %v1597
        %1634 = vmatprep.subr.bf16.mxu0 0
        %1635 = vmatpush1.bf16.msra.mxu0 %v1598
        %1636 = vmatprep.subr.bf16.mxu0 0
        %1637 = vmatpush1.bf16.msra.mxu0 %v1599
        %1638 = vmatprep.subr.bf16.mxu0 0
        %1639 = vmatpush1.bf16.msra.mxu0 %v1600
        %1640 = vmatprep.subr.bf16.mxu0 0
        %1641 = vmatpush1.bf16.msra.mxu0 %v1601
        %1642 = vmatprep.subr.bf16.mxu0 0
        %1643 = vmatpush1.bf16.msra.mxu0 %v1602
        %1644 = vmatprep.subr.bf16.mxu0 0
        %1645 = vmatpush1.bf16.msra.mxu0 %v1603
        %1646 = vmatprep.subr.bf16.mxu0 0
        %1647 = vmatpush1.bf16.msra.mxu0 %v1604
        %1648 = vmatprep.subr.bf16.mxu0 0
        %1649 = vmatpush1.bf16.msra.mxu0 %v1605
        %1650 = vmatprep.subr.bf16.mxu0 0
        %1651 = vmatpush1.bf16.msra.mxu0 %v1606
        %1652 = vmatprep.subr.bf16.mxu0 0
        %1653 = vmatpush1.bf16.msra.mxu0 %v1607
        %1654 = vmatprep.subr.bf16.mxu0 0
        %1655 = vmatpush1.bf16.msra.mxu0 %v1608
        %1656 = vmatprep.subr.bf16.mxu0 0
        %1657 = vmatpush1.bf16.msra.mxu0 %v1609
        %1658 = vmatprep.mubr.bf16.mxu0 %v487
        %1659 = vmatmul.mubr.bf16.gmra.mrb[0].mxu0 %v486
        %v1660 = vpop.f32.mrb[0].mxu0
        %v1661 = vadd.f32 %v1528, %v1660
        %v1662 = vpop.f32.mrb[0].mxu0
        %v1663 = vpop.f32.mrb[0].mxu0
        %v1664 = vpop.f32.mrb[0].mxu0
        %1665 = vdwg.mxu0
        %v1666 = vlaneseq
        %v1667 = vshrl.u32 %v1666, 7
        %v1668 = vsub.s32 4, %v1667
        %v1669 = vrot.slane %v697, %v1668
        %v1670 = vmul.f32 %v1669, %v1661
        %v1671 = vadd.f32 %v1474, %v1670
        %v1672 = vlaneseq
        %v1673 = vshrl.u32 %v1672, 7
        %v1674 = vsub.s32 4, %v1673
        %v1675 = vrot.slane %v699, %v1674
        %v1676 = vmul.f32 %v1675, %v1661
        %v1677 = vadd.f32 %v1480, %v1676
        %v1678 = vlaneseq
        %v1679 = vshrl.u32 %v1678, 7
        %v1680 = vsub.s32 4, %v1679
        %v1681 = vrot.slane %v701, %v1680
        %v1682 = vmul.f32 %v1681, %v1661
        %v1683 = vadd.f32 %v1486, %v1682
        %v1684 = vlaneseq
        %v1685 = vshrl.u32 %v1684, 7
        %v1686 = vsub.s32 4, %v1685
        %v1687 = vrot.slane %v703, %v1686
        %v1688 = vmul.f32 %v1687, %v1661
        %v1689 = vadd.f32 %v1492, %v1688
        %s1690 = scalar_lea.vmem %s410, 640 [#allocation4]
        %v1691 = vld [vmem:[%s1690] sm:$0xf]
        %v1692 = vld [vmem:[%s1690 + $0x4] sm:$0xf]
        %v1693 = vld [vmem:[%s1690 + $0x8] sm:$0xf]
        %v1694 = vld [vmem:[%s1690 + $0xc] sm:$0xf]
        %v1695 = vld [vmem:[%s1690 + $0x10] sm:$0xf]
        %v1696 = vld [vmem:[%s1690 + $0x14] sm:$0xf]
        %v1697 = vld [vmem:[%s1690 + $0x18] sm:$0xf]
        %v1698 = vld [vmem:[%s1690 + $0x1c] sm:$0xf]
        %v1699 = vld [vmem:[%s1690 + $0x20] sm:$0xf]
        %v1700 = vld [vmem:[%s1690 + $0x24] sm:$0xf]
        %v1701 = vld [vmem:[%s1690 + $0x28] sm:$0xf]
        %v1702 = vld [vmem:[%s1690 + $0x2c] sm:$0xf]
        %v1703 = vld [vmem:[%s1690 + $0x30] sm:$0xf]
        %v1704 = vld [vmem:[%s1690 + $0x34] sm:$0xf]
        %v1705 = vld [vmem:[%s1690 + $0x38] sm:$0xf]
        %v1706 = vld [vmem:[%s1690 + $0x3c] sm:$0xf]
        %v1707 = vld [vmem:[%s1690 + $0x40] sm:$0xf]
        %v1708 = vld [vmem:[%s1690 + $0x44] sm:$0xf]
        %v1709 = vld [vmem:[%s1690 + $0x48] sm:$0xf]
        %v1710 = vld [vmem:[%s1690 + $0x4c] sm:$0xf]
        %v1711 = vld [vmem:[%s1690 + $0x50] sm:$0xf]
        %v1712 = vld [vmem:[%s1690 + $0x54] sm:$0xf]
        %v1713 = vld [vmem:[%s1690 + $0x58] sm:$0xf]
        %v1714 = vld [vmem:[%s1690 + $0x5c] sm:$0xf]
        %v1715 = vld [vmem:[%s1690 + $0x60] sm:$0xf]
        %v1716 = vld [vmem:[%s1690 + $0x64] sm:$0xf]
        %v1717 = vld [vmem:[%s1690 + $0x68] sm:$0xf]
        %v1718 = vld [vmem:[%s1690 + $0x6c] sm:$0xf]
        %v1719 = vld [vmem:[%s1690 + $0x70] sm:$0xf]
        %v1720 = vld [vmem:[%s1690 + $0x74] sm:$0xf]
        %v1721 = vld [vmem:[%s1690 + $0x78] sm:$0xf]
        %v1722 = vld [vmem:[%s1690 + $0x7c] sm:$0xf]
        %1723 = vset.pattern.permute.xlu0 5
        %1724 = vperm.xlu0 %1723, %v576
        %v1725 = vpop.permute.xlu0 %1724
        %v1759 = vunpack.c.l.b16 %v1691
        %v1760 = vunpack.c.l.b16 %v1692
        %v1761 = vunpack.c.l.b16 %v1693
        %v1762 = vunpack.c.l.b16 %v1694
        %v1763 = vunpack.c.l.b16 %v1695
        %v1764 = vunpack.c.l.b16 %v1696
        %v1765 = vunpack.c.l.b16 %v1697
        %v1766 = vunpack.c.l.b16 %v1698
        %v1767 = vunpack.c.l.b16 %v1699
        %v1768 = vunpack.c.l.b16 %v1700
        %v1769 = vunpack.c.l.b16 %v1701
        %v1770 = vunpack.c.l.b16 %v1702
        %v1771 = vunpack.c.l.b16 %v1703
        %v1772 = vunpack.c.l.b16 %v1704
        %v1773 = vunpack.c.l.b16 %v1705
        %v1774 = vunpack.c.l.b16 %v1706
        %v1775 = vunpack.c.l.b16 %v1707
        %v1776 = vunpack.c.l.b16 %v1708
        %v1777 = vunpack.c.l.b16 %v1709
        %v1778 = vunpack.c.l.b16 %v1710
        %v1779 = vunpack.c.l.b16 %v1711
        %v1780 = vunpack.c.l.b16 %v1712
        %v1781 = vunpack.c.l.b16 %v1713
        %v1782 = vunpack.c.l.b16 %v1714
        %v1783 = vunpack.c.l.b16 %v1715
        %v1784 = vunpack.c.l.b16 %v1716
        %v1785 = vunpack.c.l.b16 %v1717
        %v1786 = vunpack.c.l.b16 %v1718
        %v1787 = vunpack.c.l.b16 %v1719
        %v1788 = vunpack.c.l.b16 %v1720
        %v1789 = vunpack.c.l.b16 %v1721
        %v1790 = vunpack.c.l.b16 %v1722
        %v1791 = vpack.c.b16 %v1760, %v1759
        %v1792 = vpack.c.b16 %v1762, %v1761
        %v1793 = vpack.c.b16 %v1764, %v1763
        %v1794 = vpack.c.b16 %v1766, %v1765
        %v1795 = vpack.c.b16 %v1768, %v1767
        %v1796 = vpack.c.b16 %v1770, %v1769
        %v1797 = vpack.c.b16 %v1772, %v1771
        %v1798 = vpack.c.b16 %v1774, %v1773
        %v1799 = vpack.c.b16 %v1776, %v1775
        %v1800 = vpack.c.b16 %v1778, %v1777
        %v1801 = vpack.c.b16 %v1780, %v1779
        %v1802 = vpack.c.b16 %v1782, %v1781
        %v1803 = vpack.c.b16 %v1784, %v1783
        %v1804 = vpack.c.b16 %v1786, %v1785
        %v1805 = vpack.c.b16 %v1788, %v1787
        %v1806 = vpack.c.b16 %v1790, %v1789
        %1823 = vmatprep.subr.bf16.mxu0 0
        %1824 = vmatpush1.bf16.msra.mxu0 %v1791
        %1825 = vmatprep.subr.bf16.mxu0 0
        %1826 = vmatpush1.bf16.msra.mxu0 %v1792
        %1827 = vmatprep.subr.bf16.mxu0 0
        %1828 = vmatpush1.bf16.msra.mxu0 %v1793
        %1829 = vmatprep.subr.bf16.mxu0 0
        %1830 = vmatpush1.bf16.msra.mxu0 %v1794
        %1831 = vmatprep.subr.bf16.mxu0 0
        %1832 = vmatpush1.bf16.msra.mxu0 %v1795
        %1833 = vmatprep.subr.bf16.mxu0 0
        %1834 = vmatpush1.bf16.msra.mxu0 %v1796
        %1835 = vmatprep.subr.bf16.mxu0 0
        %1836 = vmatpush1.bf16.msra.mxu0 %v1797
        %1837 = vmatprep.subr.bf16.mxu0 0
        %1838 = vmatpush1.bf16.msra.mxu0 %v1798
        %1839 = vmatprep.subr.bf16.mxu0 0
        %1840 = vmatpush1.bf16.msra.mxu0 %v1799
        %1841 = vmatprep.subr.bf16.mxu0 0
        %1842 = vmatpush1.bf16.msra.mxu0 %v1800
        %1843 = vmatprep.subr.bf16.mxu0 0
        %1844 = vmatpush1.bf16.msra.mxu0 %v1801
        %1845 = vmatprep.subr.bf16.mxu0 0
        %1846 = vmatpush1.bf16.msra.mxu0 %v1802
        %1847 = vmatprep.subr.bf16.mxu0 0
        %1848 = vmatpush1.bf16.msra.mxu0 %v1803
        %1849 = vmatprep.subr.bf16.mxu0 0
        %1850 = vmatpush1.bf16.msra.mxu0 %v1804
        %1851 = vmatprep.subr.bf16.mxu0 0
        %1852 = vmatpush1.bf16.msra.mxu0 %v1805
        %1853 = vmatprep.subr.bf16.mxu0 0
        %1854 = vmatpush1.bf16.msra.mxu0 %v1806
        %1855 = vmatprep.mubr.bf16.mxu0 %v487
        %1856 = vmatmul.mubr.bf16.gmra.mrb[0].mxu0 %v486
        %v1857 = vpop.f32.mrb[0].mxu0
        %v1858 = vadd.f32 %v1725, %v1857
        %v1859 = vpop.f32.mrb[0].mxu0
        %v1860 = vpop.f32.mrb[0].mxu0
        %v1861 = vpop.f32.mrb[0].mxu0
        %1862 = vdwg.mxu0
        %v1863 = vlaneseq
        %v1864 = vshrl.u32 %v1863, 7
        %v1865 = vsub.s32 5, %v1864
        %v1866 = vrot.slane %v697, %v1865
        %v1867 = vmul.f32 %v1866, %v1858
        %v1868 = vadd.f32 %v1671, %v1867
        %v1869 = vlaneseq
        %v1870 = vshrl.u32 %v1869, 7
        %v1871 = vsub.s32 5, %v1870
        %v1872 = vrot.slane %v699, %v1871
        %v1873 = vmul.f32 %v1872, %v1858
        %v1874 = vadd.f32 %v1677, %v1873
        %v1875 = vlaneseq
        %v1876 = vshrl.u32 %v1875, 7
        %v1877 = vsub.s32 5, %v1876
        %v1878 = vrot.slane %v701, %v1877
        %v1879 = vmul.f32 %v1878, %v1858
        %v1880 = vadd.f32 %v1683, %v1879
        %v1881 = vlaneseq
        %v1882 = vshrl.u32 %v1881, 7
        %v1883 = vsub.s32 5, %v1882
        %v1884 = vrot.slane %v703, %v1883
        %v1885 = vmul.f32 %v1884, %v1858
        %v1886 = vadd.f32 %v1689, %v1885
        %s1887 = scalar_lea.vmem %s410, 768 [#allocation4]
        %v1888 = vld [vmem:[%s1887] sm:$0xf]
        %v1889 = vld [vmem:[%s1887 + $0x4] sm:$0xf]
        %v1890 = vld [vmem:[%s1887 + $0x8] sm:$0xf]
        %v1891 = vld [vmem:[%s1887 + $0xc] sm:$0xf]
        %v1892 = vld [vmem:[%s1887 + $0x10] sm:$0xf]
        %v1893 = vld [vmem:[%s1887 + $0x14] sm:$0xf]
        %v1894 = vld [vmem:[%s1887 + $0x18] sm:$0xf]
        %v1895 = vld [vmem:[%s1887 + $0x1c] sm:$0xf]
        %v1896 = vld [vmem:[%s1887 + $0x20] sm:$0xf]
        %v1897 = vld [vmem:[%s1887 + $0x24] sm:$0xf]
        %v1898 = vld [vmem:[%s1887 + $0x28] sm:$0xf]
        %v1899 = vld [vmem:[%s1887 + $0x2c] sm:$0xf]
        %v1900 = vld [vmem:[%s1887 + $0x30] sm:$0xf]
        %v1901 = vld [vmem:[%s1887 + $0x34] sm:$0xf]
        %v1902 = vld [vmem:[%s1887 + $0x38] sm:$0xf]
        %v1903 = vld [vmem:[%s1887 + $0x3c] sm:$0xf]
        %v1904 = vld [vmem:[%s1887 + $0x40] sm:$0xf]
        %v1905 = vld [vmem:[%s1887 + $0x44] sm:$0xf]
        %v1906 = vld [vmem:[%s1887 + $0x48] sm:$0xf]
        %v1907 = vld [vmem:[%s1887 + $0x4c] sm:$0xf]
        %v1908 = vld [vmem:[%s1887 + $0x50] sm:$0xf]
        %v1909 = vld [vmem:[%s1887 + $0x54] sm:$0xf]
        %v1910 = vld [vmem:[%s1887 + $0x58] sm:$0xf]
        %v1911 = vld [vmem:[%s1887 + $0x5c] sm:$0xf]
        %v1912 = vld [vmem:[%s1887 + $0x60] sm:$0xf]
        %v1913 = vld [vmem:[%s1887 + $0x64] sm:$0xf]
        %v1914 = vld [vmem:[%s1887 + $0x68] sm:$0xf]
        %v1915 = vld [vmem:[%s1887 + $0x6c] sm:$0xf]
        %v1916 = vld [vmem:[%s1887 + $0x70] sm:$0xf]
        %v1917 = vld [vmem:[%s1887 + $0x74] sm:$0xf]
        %v1918 = vld [vmem:[%s1887 + $0x78] sm:$0xf]
        %v1919 = vld [vmem:[%s1887 + $0x7c] sm:$0xf]
        %1920 = vset.pattern.permute.xlu0 6
        %1921 = vperm.xlu0 %1920, %v576
        %v1922 = vpop.permute.xlu0 %1921
        %v1956 = vunpack.c.l.b16 %v1888
        %v1957 = vunpack.c.l.b16 %v1889
        %v1958 = vunpack.c.l.b16 %v1890
        %v1959 = vunpack.c.l.b16 %v1891
        %v1960 = vunpack.c.l.b16 %v1892
        %v1961 = vunpack.c.l.b16 %v1893
        %v1962 = vunpack.c.l.b16 %v1894
        %v1963 = vunpack.c.l.b16 %v1895
        %v1964 = vunpack.c.l.b16 %v1896
        %v1965 = vunpack.c.l.b16 %v1897
        %v1966 = vunpack.c.l.b16 %v1898
        %v1967 = vunpack.c.l.b16 %v1899
        %v1968 = vunpack.c.l.b16 %v1900
        %v1969 = vunpack.c.l.b16 %v1901
        %v1970 = vunpack.c.l.b16 %v1902
        %v1971 = vunpack.c.l.b16 %v1903
        %v1972 = vunpack.c.l.b16 %v1904
        %v1973 = vunpack.c.l.b16 %v1905
        %v1974 = vunpack.c.l.b16 %v1906
        %v1975 = vunpack.c.l.b16 %v1907
        %v1976 = vunpack.c.l.b16 %v1908
        %v1977 = vunpack.c.l.b16 %v1909
        %v1978 = vunpack.c.l.b16 %v1910
        %v1979 = vunpack.c.l.b16 %v1911
        %v1980 = vunpack.c.l.b16 %v1912
        %v1981 = vunpack.c.l.b16 %v1913
        %v1982 = vunpack.c.l.b16 %v1914
        %v1983 = vunpack.c.l.b16 %v1915
        %v1984 = vunpack.c.l.b16 %v1916
        %v1985 = vunpack.c.l.b16 %v1917
        %v1986 = vunpack.c.l.b16 %v1918
        %v1987 = vunpack.c.l.b16 %v1919
        %v1988 = vpack.c.b16 %v1957, %v1956
        %v1989 = vpack.c.b16 %v1959, %v1958
        %v1990 = vpack.c.b16 %v1961, %v1960
        %v1991 = vpack.c.b16 %v1963, %v1962
        %v1992 = vpack.c.b16 %v1965, %v1964
        %v1993 = vpack.c.b16 %v1967, %v1966
        %v1994 = vpack.c.b16 %v1969, %v1968
        %v1995 = vpack.c.b16 %v1971, %v1970
        %v1996 = vpack.c.b16 %v1973, %v1972
        %v1997 = vpack.c.b16 %v1975, %v1974
        %v1998 = vpack.c.b16 %v1977, %v1976
        %v1999 = vpack.c.b16 %v1979, %v1978
        %v2000 = vpack.c.b16 %v1981, %v1980
        %v2001 = vpack.c.b16 %v1983, %v1982
        %v2002 = vpack.c.b16 %v1985, %v1984
        %v2003 = vpack.c.b16 %v1987, %v1986
        %2020 = vmatprep.subr.bf16.mxu0 0
        %2021 = vmatpush1.bf16.msra.mxu0 %v1988
        %2022 = vmatprep.subr.bf16.mxu0 0
        %2023 = vmatpush1.bf16.msra.mxu0 %v1989
        %2024 = vmatprep.subr.bf16.mxu0 0
        %2025 = vmatpush1.bf16.msra.mxu0 %v1990
        %2026 = vmatprep.subr.bf16.mxu0 0
        %2027 = vmatpush1.bf16.msra.mxu0 %v1991
        %2028 = vmatprep.subr.bf16.mxu0 0
        %2029 = vmatpush1.bf16.msra.mxu0 %v1992
        %2030 = vmatprep.subr.bf16.mxu0 0
        %2031 = vmatpush1.bf16.msra.mxu0 %v1993
        %2032 = vmatprep.subr.bf16.mxu0 0
        %2033 = vmatpush1.bf16.msra.mxu0 %v1994
        %2034 = vmatprep.subr.bf16.mxu0 0
        %2035 = vmatpush1.bf16.msra.mxu0 %v1995
        %2036 = vmatprep.subr.bf16.mxu0 0
        %2037 = vmatpush1.bf16.msra.mxu0 %v1996
        %2038 = vmatprep.subr.bf16.mxu0 0
        %2039 = vmatpush1.bf16.msra.mxu0 %v1997
        %2040 = vmatprep.subr.bf16.mxu0 0
        %2041 = vmatpush1.bf16.msra.mxu0 %v1998
        %2042 = vmatprep.subr.bf16.mxu0 0
        %2043 = vmatpush1.bf16.msra.mxu0 %v1999
        %2044 = vmatprep.subr.bf16.mxu0 0
        %2045 = vmatpush1.bf16.msra.mxu0 %v2000
        %2046 = vmatprep.subr.bf16.mxu0 0
        %2047 = vmatpush1.bf16.msra.mxu0 %v2001
        %2048 = vmatprep.subr.bf16.mxu0 0
        %2049 = vmatpush1.bf16.msra.mxu0 %v2002
        %2050 = vmatprep.subr.bf16.mxu0 0
        %2051 = vmatpush1.bf16.msra.mxu0 %v2003
        %2052 = vmatprep.mubr.bf16.mxu0 %v487
        %2053 = vmatmul.mubr.bf16.gmra.mrb[0].mxu0 %v486
        %v2054 = vpop.f32.mrb[0].mxu0
        %v2055 = vadd.f32 %v1922, %v2054
        %v2056 = vpop.f32.mrb[0].mxu0
        %v2057 = vpop.f32.mrb[0].mxu0
        %v2058 = vpop.f32.mrb[0].mxu0
        %2059 = vdwg.mxu0
        %v2060 = vlaneseq
        %v2061 = vshrl.u32 %v2060, 7
        %v2062 = vsub.s32 6, %v2061
        %v2063 = vrot.slane %v697, %v2062
        %v2064 = vmul.f32 %v2063, %v2055
        %v2065 = vadd.f32 %v1868, %v2064
        %v2066 = vlaneseq
        %v2067 = vshrl.u32 %v2066, 7
        %v2068 = vsub.s32 6, %v2067
        %v2069 = vrot.slane %v699, %v2068
        %v2070 = vmul.f32 %v2069, %v2055
        %v2071 = vadd.f32 %v1874, %v2070
        %v2072 = vlaneseq
        %v2073 = vshrl.u32 %v2072, 7
        %v2074 = vsub.s32 6, %v2073
        %v2075 = vrot.slane %v701, %v2074
        %v2076 = vmul.f32 %v2075, %v2055
        %v2077 = vadd.f32 %v1880, %v2076
        %v2078 = vlaneseq
        %v2079 = vshrl.u32 %v2078, 7
        %v2080 = vsub.s32 6, %v2079
        %v2081 = vrot.slane %v703, %v2080
        %v2082 = vmul.f32 %v2081, %v2055
        %v2083 = vadd.f32 %v1886, %v2082
        %s2084 = scalar_lea.vmem %s410, 896 [#allocation4]
        %v2085 = vld [vmem:[%s2084] sm:$0xf]
        %v2086 = vld [vmem:[%s2084 + $0x4] sm:$0xf]
        %v2087 = vld [vmem:[%s2084 + $0x8] sm:$0xf]
        %v2088 = vld [vmem:[%s2084 + $0xc] sm:$0xf]
        %v2089 = vld [vmem:[%s2084 + $0x10] sm:$0xf]
        %v2090 = vld [vmem:[%s2084 + $0x14] sm:$0xf]
        %v2091 = vld [vmem:[%s2084 + $0x18] sm:$0xf]
        %v2092 = vld [vmem:[%s2084 + $0x1c] sm:$0xf]
        %v2093 = vld [vmem:[%s2084 + $0x20] sm:$0xf]
        %v2094 = vld [vmem:[%s2084 + $0x24] sm:$0xf]
        %v2095 = vld [vmem:[%s2084 + $0x28] sm:$0xf]
        %v2096 = vld [vmem:[%s2084 + $0x2c] sm:$0xf]
        %v2097 = vld [vmem:[%s2084 + $0x30] sm:$0xf]
        %v2098 = vld [vmem:[%s2084 + $0x34] sm:$0xf]
        %v2099 = vld [vmem:[%s2084 + $0x38] sm:$0xf]
        %v2100 = vld [vmem:[%s2084 + $0x3c] sm:$0xf]
        %v2101 = vld [vmem:[%s2084 + $0x40] sm:$0xf]
        %v2102 = vld [vmem:[%s2084 + $0x44] sm:$0xf]
        %v2103 = vld [vmem:[%s2084 + $0x48] sm:$0xf]
        %v2104 = vld [vmem:[%s2084 + $0x4c] sm:$0xf]
        %v2105 = vld [vmem:[%s2084 + $0x50] sm:$0xf]
        %v2106 = vld [vmem:[%s2084 + $0x54] sm:$0xf]
        %v2107 = vld [vmem:[%s2084 + $0x58] sm:$0xf]
        %v2108 = vld [vmem:[%s2084 + $0x5c] sm:$0xf]
        %v2109 = vld [vmem:[%s2084 + $0x60] sm:$0xf]
        %v2110 = vld [vmem:[%s2084 + $0x64] sm:$0xf]
        %v2111 = vld [vmem:[%s2084 + $0x68] sm:$0xf]
        %v2112 = vld [vmem:[%s2084 + $0x6c] sm:$0xf]
        %v2113 = vld [vmem:[%s2084 + $0x70] sm:$0xf]
        %v2114 = vld [vmem:[%s2084 + $0x74] sm:$0xf]
        %v2115 = vld [vmem:[%s2084 + $0x78] sm:$0xf]
        %v2116 = vld [vmem:[%s2084 + $0x7c] sm:$0xf]
        %2117 = vset.pattern.permute.xlu0 7
        %2118 = vperm.xlu0 %2117, %v576
        %v2119 = vpop.permute.xlu0 %2118
        %v2153 = vunpack.c.l.b16 %v2085
        %v2154 = vunpack.c.l.b16 %v2086
        %v2155 = vunpack.c.l.b16 %v2087
        %v2156 = vunpack.c.l.b16 %v2088
        %v2157 = vunpack.c.l.b16 %v2089
        %v2158 = vunpack.c.l.b16 %v2090
        %v2159 = vunpack.c.l.b16 %v2091
        %v2160 = vunpack.c.l.b16 %v2092
        %v2161 = vunpack.c.l.b16 %v2093
        %v2162 = vunpack.c.l.b16 %v2094
        %v2163 = vunpack.c.l.b16 %v2095
        %v2164 = vunpack.c.l.b16 %v2096
        %v2165 = vunpack.c.l.b16 %v2097
        %v2166 = vunpack.c.l.b16 %v2098
        %v2167 = vunpack.c.l.b16 %v2099
        %v2168 = vunpack.c.l.b16 %v2100
        %v2169 = vunpack.c.l.b16 %v2101
        %v2170 = vunpack.c.l.b16 %v2102
        %v2171 = vunpack.c.l.b16 %v2103
        %v2172 = vunpack.c.l.b16 %v2104
        %v2173 = vunpack.c.l.b16 %v2105
        %v2174 = vunpack.c.l.b16 %v2106
        %v2175 = vunpack.c.l.b16 %v2107
        %v2176 = vunpack.c.l.b16 %v2108
        %v2177 = vunpack.c.l.b16 %v2109
        %v2178 = vunpack.c.l.b16 %v2110
        %v2179 = vunpack.c.l.b16 %v2111
        %v2180 = vunpack.c.l.b16 %v2112
        %v2181 = vunpack.c.l.b16 %v2113
        %v2182 = vunpack.c.l.b16 %v2114
        %v2183 = vunpack.c.l.b16 %v2115
        %v2184 = vunpack.c.l.b16 %v2116
        %v2185 = vpack.c.b16 %v2154, %v2153
        %v2186 = vpack.c.b16 %v2156, %v2155
        %v2187 = vpack.c.b16 %v2158, %v2157
        %v2188 = vpack.c.b16 %v2160, %v2159
        %v2189 = vpack.c.b16 %v2162, %v2161
        %v2190 = vpack.c.b16 %v2164, %v2163
        %v2191 = vpack.c.b16 %v2166, %v2165
        %v2192 = vpack.c.b16 %v2168, %v2167
        %v2193 = vpack.c.b16 %v2170, %v2169
        %v2194 = vpack.c.b16 %v2172, %v2171
        %v2195 = vpack.c.b16 %v2174, %v2173
        %v2196 = vpack.c.b16 %v2176, %v2175
        %v2197 = vpack.c.b16 %v2178, %v2177
        %v2198 = vpack.c.b16 %v2180, %v2179
        %v2199 = vpack.c.b16 %v2182, %v2181
        %v2200 = vpack.c.b16 %v2184, %v2183
        %2217 = vmatprep.subr.bf16.mxu0 0
        %2218 = vmatpush1.bf16.msra.mxu0 %v2185
        %2219 = vmatprep.subr.bf16.mxu0 0
        %2220 = vmatpush1.bf16.msra.mxu0 %v2186
        %2221 = vmatprep.subr.bf16.mxu0 0
        %2222 = vmatpush1.bf16.msra.mxu0 %v2187
        %2223 = vmatprep.subr.bf16.mxu0 0
        %2224 = vmatpush1.bf16.msra.mxu0 %v2188
        %2225 = vmatprep.subr.bf16.mxu0 0
        %2226 = vmatpush1.bf16.msra.mxu0 %v2189
        %2227 = vmatprep.subr.bf16.mxu0 0
        %2228 = vmatpush1.bf16.msra.mxu0 %v2190
        %2229 = vmatprep.subr.bf16.mxu0 0
        %2230 = vmatpush1.bf16.msra.mxu0 %v2191
        %2231 = vmatprep.subr.bf16.mxu0 0
        %2232 = vmatpush1.bf16.msra.mxu0 %v2192
        %2233 = vmatprep.subr.bf16.mxu0 0
        %2234 = vmatpush1.bf16.msra.mxu0 %v2193
        %2235 = vmatprep.subr.bf16.mxu0 0
        %2236 = vmatpush1.bf16.msra.mxu0 %v2194
        %2237 = vmatprep.subr.bf16.mxu0 0
        %2238 = vmatpush1.bf16.msra.mxu0 %v2195
        %2239 = vmatprep.subr.bf16.mxu0 0
        %2240 = vmatpush1.bf16.msra.mxu0 %v2196
        %2241 = vmatprep.subr.bf16.mxu0 0
        %2242 = vmatpush1.bf16.msra.mxu0 %v2197
        %2243 = vmatprep.subr.bf16.mxu0 0
        %2244 = vmatpush1.bf16.msra.mxu0 %v2198
        %2245 = vmatprep.subr.bf16.mxu0 0
        %2246 = vmatpush1.bf16.msra.mxu0 %v2199
        %2247 = vmatprep.subr.bf16.mxu0 0
        %2248 = vmatpush1.bf16.msra.mxu0 %v2200
        %2249 = vmatprep.mubr.bf16.mxu0 %v487
        %2250 = vmatmul.mubr.bf16.gmra.mrb[0].mxu0 %v486
        %v2251 = vpop.f32.mrb[0].mxu0
        %v2252 = vadd.f32 %v2119, %v2251
        %v2253 = vpop.f32.mrb[0].mxu0
        %v2254 = vpop.f32.mrb[0].mxu0
        %v2255 = vpop.f32.mrb[0].mxu0
        %2256 = vdwg.mxu0
        %v2257 = vlaneseq
        %v2258 = vshrl.u32 %v2257, 7
        %v2259 = vsub.s32 7, %v2258
        %v2260 = vrot.slane %v697, %v2259
        %v2261 = vmul.f32 %v2260, %v2252
        %v2262 = vadd.f32 %v2065, %v2261
        %v2263 = vlaneseq
        %v2264 = vshrl.u32 %v2263, 7
        %v2265 = vsub.s32 7, %v2264
        %v2266 = vrot.slane %v699, %v2265
        %v2267 = vmul.f32 %v2266, %v2252
        %v2268 = vadd.f32 %v2071, %v2267
        %v2269 = vlaneseq
        %v2270 = vshrl.u32 %v2269, 7
        %v2271 = vsub.s32 7, %v2270
        %v2272 = vrot.slane %v701, %v2271
        %v2273 = vmul.f32 %v2272, %v2252
        %v2274 = vadd.f32 %v2077, %v2273
        %v2275 = vlaneseq
        %v2276 = vshrl.u32 %v2275, 7
        %v2277 = vsub.s32 7, %v2276
        %v2278 = vrot.slane %v703, %v2277
        %v2279 = vmul.f32 %v2278, %v2252
        %v2280 = vadd.f32 %v2083, %v2279
        %s2281 = scalar_lea.vmem %s410, 1024 [#allocation4]
        %v2282 = vld [vmem:[%s2281] sm:$0xf]
        %v2283 = vld [vmem:[%s2281 + $0x4] sm:$0xf]
        %v2284 = vld [vmem:[%s2281 + $0x8] sm:$0xf]
        %v2285 = vld [vmem:[%s2281 + $0xc] sm:$0xf]
        %v2286 = vld [vmem:[%s2281 + $0x10] sm:$0xf]
        %v2287 = vld [vmem:[%s2281 + $0x14] sm:$0xf]
        %v2288 = vld [vmem:[%s2281 + $0x18] sm:$0xf]
        %v2289 = vld [vmem:[%s2281 + $0x1c] sm:$0xf]
        %v2290 = vld [vmem:[%s2281 + $0x20] sm:$0xf]
        %v2291 = vld [vmem:[%s2281 + $0x24] sm:$0xf]
        %v2292 = vld [vmem:[%s2281 + $0x28] sm:$0xf]
        %v2293 = vld [vmem:[%s2281 + $0x2c] sm:$0xf]
        %v2294 = vld [vmem:[%s2281 + $0x30] sm:$0xf]
        %v2295 = vld [vmem:[%s2281 + $0x34] sm:$0xf]
        %v2296 = vld [vmem:[%s2281 + $0x38] sm:$0xf]
        %v2297 = vld [vmem:[%s2281 + $0x3c] sm:$0xf]
        %v2298 = vld [vmem:[%s2281 + $0x40] sm:$0xf]
        %v2299 = vld [vmem:[%s2281 + $0x44] sm:$0xf]
        %v2300 = vld [vmem:[%s2281 + $0x48] sm:$0xf]
        %v2301 = vld [vmem:[%s2281 + $0x4c] sm:$0xf]
        %v2302 = vld [vmem:[%s2281 + $0x50] sm:$0xf]
        %v2303 = vld [vmem:[%s2281 + $0x54] sm:$0xf]
        %v2304 = vld [vmem:[%s2281 + $0x58] sm:$0xf]
        %v2305 = vld [vmem:[%s2281 + $0x5c] sm:$0xf]
        %v2306 = vld [vmem:[%s2281 + $0x60] sm:$0xf]
        %v2307 = vld [vmem:[%s2281 + $0x64] sm:$0xf]
        %v2308 = vld [vmem:[%s2281 + $0x68] sm:$0xf]
        %v2309 = vld [vmem:[%s2281 + $0x6c] sm:$0xf]
        %v2310 = vld [vmem:[%s2281 + $0x70] sm:$0xf]
        %v2311 = vld [vmem:[%s2281 + $0x74] sm:$0xf]
        %v2312 = vld [vmem:[%s2281 + $0x78] sm:$0xf]
        %v2313 = vld [vmem:[%s2281 + $0x7c] sm:$0xf]
        %2314 = vset.pattern.permute.xlu0 8
        %2315 = vperm.xlu0 %2314, %v576
        %v2316 = vpop.permute.xlu0 %2315
        %v2350 = vunpack.c.l.b16 %v2282
        %v2351 = vunpack.c.l.b16 %v2283
        %v2352 = vunpack.c.l.b16 %v2284
        %v2353 = vunpack.c.l.b16 %v2285
        %v2354 = vunpack.c.l.b16 %v2286
        %v2355 = vunpack.c.l.b16 %v2287
        %v2356 = vunpack.c.l.b16 %v2288
        %v2357 = vunpack.c.l.b16 %v2289
        %v2358 = vunpack.c.l.b16 %v2290
        %v2359 = vunpack.c.l.b16 %v2291
        %v2360 = vunpack.c.l.b16 %v2292
        %v2361 = vunpack.c.l.b16 %v2293
        %v2362 = vunpack.c.l.b16 %v2294
        %v2363 = vunpack.c.l.b16 %v2295
        %v2364 = vunpack.c.l.b16 %v2296
        %v2365 = vunpack.c.l.b16 %v2297
        %v2366 = vunpack.c.l.b16 %v2298
        %v2367 = vunpack.c.l.b16 %v2299
        %v2368 = vunpack.c.l.b16 %v2300
        %v2369 = vunpack.c.l.b16 %v2301
        %v2370 = vunpack.c.l.b16 %v2302
        %v2371 = vunpack.c.l.b16 %v2303
        %v2372 = vunpack.c.l.b16 %v2304
        %v2373 = vunpack.c.l.b16 %v2305
        %v2374 = vunpack.c.l.b16 %v2306
        %v2375 = vunpack.c.l.b16 %v2307
        %v2376 = vunpack.c.l.b16 %v2308
        %v2377 = vunpack.c.l.b16 %v2309
        %v2378 = vunpack.c.l.b16 %v2310
        %v2379 = vunpack.c.l.b16 %v2311
        %v2380 = vunpack.c.l.b16 %v2312
        %v2381 = vunpack.c.l.b16 %v2313
        %v2382 = vpack.c.b16 %v2351, %v2350
        %v2383 = vpack.c.b16 %v2353, %v2352
        %v2384 = vpack.c.b16 %v2355, %v2354
        %v2385 = vpack.c.b16 %v2357, %v2356
        %v2386 = vpack.c.b16 %v2359, %v2358
        %v2387 = vpack.c.b16 %v2361, %v2360
        %v2388 = vpack.c.b16 %v2363, %v2362
        %v2389 = vpack.c.b16 %v2365, %v2364
        %v2390 = vpack.c.b16 %v2367, %v2366
        %v2391 = vpack.c.b16 %v2369, %v2368
        %v2392 = vpack.c.b16 %v2371, %v2370
        %v2393 = vpack.c.b16 %v2373, %v2372
        %v2394 = vpack.c.b16 %v2375, %v2374
        %v2395 = vpack.c.b16 %v2377, %v2376
        %v2396 = vpack.c.b16 %v2379, %v2378
        %v2397 = vpack.c.b16 %v2381, %v2380
        %2414 = vmatprep.subr.bf16.mxu0 0
        %2415 = vmatpush1.bf16.msra.mxu0 %v2382
        %2416 = vmatprep.subr.bf16.mxu0 0
        %2417 = vmatpush1.bf16.msra.mxu0 %v2383
        %2418 = vmatprep.subr.bf16.mxu0 0
        %2419 = vmatpush1.bf16.msra.mxu0 %v2384
        %2420 = vmatprep.subr.bf16.mxu0 0
        %2421 = vmatpush1.bf16.msra.mxu0 %v2385
        %2422 = vmatprep.subr.bf16.mxu0 0
        %2423 = vmatpush1.bf16.msra.mxu0 %v2386
        %2424 = vmatprep.subr.bf16.mxu0 0
        %2425 = vmatpush1.bf16.msra.mxu0 %v2387
        %2426 = vmatprep.subr.bf16.mxu0 0
        %2427 = vmatpush1.bf16.msra.mxu0 %v2388
        %2428 = vmatprep.subr.bf16.mxu0 0
        %2429 = vmatpush1.bf16.msra.mxu0 %v2389
        %2430 = vmatprep.subr.bf16.mxu0 0
        %2431 = vmatpush1.bf16.msra.mxu0 %v2390
        %2432 = vmatprep.subr.bf16.mxu0 0
        %2433 = vmatpush1.bf16.msra.mxu0 %v2391
        %2434 = vmatprep.subr.bf16.mxu0 0
        %2435 = vmatpush1.bf16.msra.mxu0 %v2392
        %2436 = vmatprep.subr.bf16.mxu0 0
        %2437 = vmatpush1.bf16.msra.mxu0 %v2393
        %2438 = vmatprep.subr.bf16.mxu0 0
        %2439 = vmatpush1.bf16.msra.mxu0 %v2394
        %2440 = vmatprep.subr.bf16.mxu0 0
        %2441 = vmatpush1.bf16.msra.mxu0 %v2395
        %2442 = vmatprep.subr.bf16.mxu0 0
        %2443 = vmatpush1.bf16.msra.mxu0 %v2396
        %2444 = vmatprep.subr.bf16.mxu0 0
        %2445 = vmatpush1.bf16.msra.mxu0 %v2397
        %2446 = vmatprep.mubr.bf16.mxu0 %v487
        %2447 = vmatmul.mubr.bf16.gmra.mrb[0].mxu0 %v486
        %v2448 = vpop.f32.mrb[0].mxu0
        %v2449 = vadd.f32 %v2316, %v2448
        %v2450 = vpop.f32.mrb[0].mxu0
        %v2451 = vpop.f32.mrb[0].mxu0
        %v2452 = vpop.f32.mrb[0].mxu0
        %2453 = vdwg.mxu0
        %v2454 = vlaneseq
        %v2455 = vshrl.u32 %v2454, 7
        %v2456 = vsub.s32 0, %v2455
        %v2457 = vrot.slane %v698, %v2456
        %v2458 = vmul.f32 %v2457, %v2449
        %v2459 = vadd.f32 %v2262, %v2458
        %v2460 = vlaneseq
        %v2461 = vshrl.u32 %v2460, 7
        %v2462 = vsub.s32 0, %v2461
        %v2463 = vrot.slane %v700, %v2462
        %v2464 = vmul.f32 %v2463, %v2449
        %v2465 = vadd.f32 %v2268, %v2464
        %v2466 = vlaneseq
        %v2467 = vshrl.u32 %v2466, 7
        %v2468 = vsub.s32 0, %v2467
        %v2469 = vrot.slane %v702, %v2468
        %v2470 = vmul.f32 %v2469, %v2449
        %v2471 = vadd.f32 %v2274, %v2470
        %v2472 = vlaneseq
        %v2473 = vshrl.u32 %v2472, 7
        %v2474 = vsub.s32 0, %v2473
        %v2475 = vrot.slane %v704, %v2474
        %v2476 = vmul.f32 %v2475, %v2449
        %v2477 = vadd.f32 %v2280, %v2476
        %s2478 = scalar_lea.vmem %s410, 1152 [#allocation4]
        %v2479 = vld [vmem:[%s2478] sm:$0xf]
        %v2480 = vld [vmem:[%s2478 + $0x4] sm:$0xf]
        %v2481 = vld [vmem:[%s2478 + $0x8] sm:$0xf]
        %v2482 = vld [vmem:[%s2478 + $0xc] sm:$0xf]
        %v2483 = vld [vmem:[%s2478 + $0x10] sm:$0xf]
        %v2484 = vld [vmem:[%s2478 + $0x14] sm:$0xf]
        %v2485 = vld [vmem:[%s2478 + $0x18] sm:$0xf]
        %v2486 = vld [vmem:[%s2478 + $0x1c] sm:$0xf]
        %v2487 = vld [vmem:[%s2478 + $0x20] sm:$0xf]
        %v2488 = vld [vmem:[%s2478 + $0x24] sm:$0xf]
        %v2489 = vld [vmem:[%s2478 + $0x28] sm:$0xf]
        %v2490 = vld [vmem:[%s2478 + $0x2c] sm:$0xf]
        %v2491 = vld [vmem:[%s2478 + $0x30] sm:$0xf]
        %v2492 = vld [vmem:[%s2478 + $0x34] sm:$0xf]
        %v2493 = vld [vmem:[%s2478 + $0x38] sm:$0xf]
        %v2494 = vld [vmem:[%s2478 + $0x3c] sm:$0xf]
        %v2495 = vld [vmem:[%s2478 + $0x40] sm:$0xf]
        %v2496 = vld [vmem:[%s2478 + $0x44] sm:$0xf]
        %v2497 = vld [vmem:[%s2478 + $0x48] sm:$0xf]
        %v2498 = vld [vmem:[%s2478 + $0x4c] sm:$0xf]
        %v2499 = vld [vmem:[%s2478 + $0x50] sm:$0xf]
        %v2500 = vld [vmem:[%s2478 + $0x54] sm:$0xf]
        %v2501 = vld [vmem:[%s2478 + $0x58] sm:$0xf]
        %v2502 = vld [vmem:[%s2478 + $0x5c] sm:$0xf]
        %v2503 = vld [vmem:[%s2478 + $0x60] sm:$0xf]
        %v2504 = vld [vmem:[%s2478 + $0x64] sm:$0xf]
        %v2505 = vld [vmem:[%s2478 + $0x68] sm:$0xf]
        %v2506 = vld [vmem:[%s2478 + $0x6c] sm:$0xf]
        %v2507 = vld [vmem:[%s2478 + $0x70] sm:$0xf]
        %v2508 = vld [vmem:[%s2478 + $0x74] sm:$0xf]
        %v2509 = vld [vmem:[%s2478 + $0x78] sm:$0xf]
        %v2510 = vld [vmem:[%s2478 + $0x7c] sm:$0xf]
        %2511 = vset.pattern.permute.xlu0 9
        %2512 = vperm.xlu0 %2511, %v576
        %v2513 = vpop.permute.xlu0 %2512
        %v2547 = vunpack.c.l.b16 %v2479
        %v2548 = vunpack.c.l.b16 %v2480
        %v2549 = vunpack.c.l.b16 %v2481
        %v2550 = vunpack.c.l.b16 %v2482
        %v2551 = vunpack.c.l.b16 %v2483
        %v2552 = vunpack.c.l.b16 %v2484
        %v2553 = vunpack.c.l.b16 %v2485
        %v2554 = vunpack.c.l.b16 %v2486
        %v2555 = vunpack.c.l.b16 %v2487
        %v2556 = vunpack.c.l.b16 %v2488
        %v2557 = vunpack.c.l.b16 %v2489
        %v2558 = vunpack.c.l.b16 %v2490
        %v2559 = vunpack.c.l.b16 %v2491
        %v2560 = vunpack.c.l.b16 %v2492
        %v2561 = vunpack.c.l.b16 %v2493
        %v2562 = vunpack.c.l.b16 %v2494
        %v2563 = vunpack.c.l.b16 %v2495
        %v2564 = vunpack.c.l.b16 %v2496
        %v2565 = vunpack.c.l.b16 %v2497
        %v2566 = vunpack.c.l.b16 %v2498
        %v2567 = vunpack.c.l.b16 %v2499
        %v2568 = vunpack.c.l.b16 %v2500
        %v2569 = vunpack.c.l.b16 %v2501
        %v2570 = vunpack.c.l.b16 %v2502
        %v2571 = vunpack.c.l.b16 %v2503
        %v2572 = vunpack.c.l.b16 %v2504
        %v2573 = vunpack.c.l.b16 %v2505
        %v2574 = vunpack.c.l.b16 %v2506
        %v2575 = vunpack.c.l.b16 %v2507
        %v2576 = vunpack.c.l.b16 %v2508
        %v2577 = vunpack.c.l.b16 %v2509
        %v2578 = vunpack.c.l.b16 %v2510
        %v2579 = vpack.c.b16 %v2548, %v2547
        %v2580 = vpack.c.b16 %v2550, %v2549
        %v2581 = vpack.c.b16 %v2552, %v2551
        %v2582 = vpack.c.b16 %v2554, %v2553
        %v2583 = vpack.c.b16 %v2556, %v2555
        %v2584 = vpack.c.b16 %v2558, %v2557
        %v2585 = vpack.c.b16 %v2560, %v2559
        %v2586 = vpack.c.b16 %v2562, %v2561
        %v2587 = vpack.c.b16 %v2564, %v2563
        %v2588 = vpack.c.b16 %v2566, %v2565
        %v2589 = vpack.c.b16 %v2568, %v2567
        %v2590 = vpack.c.b16 %v2570, %v2569
        %v2591 = vpack.c.b16 %v2572, %v2571
        %v2592 = vpack.c.b16 %v2574, %v2573
        %v2593 = vpack.c.b16 %v2576, %v2575
        %v2594 = vpack.c.b16 %v2578, %v2577
        %2611 = vmatprep.subr.bf16.mxu0 0
        %2612 = vmatpush1.bf16.msra.mxu0 %v2579
        %2613 = vmatprep.subr.bf16.mxu0 0
        %2614 = vmatpush1.bf16.msra.mxu0 %v2580
        %2615 = vmatprep.subr.bf16.mxu0 0
        %2616 = vmatpush1.bf16.msra.mxu0 %v2581
        %2617 = vmatprep.subr.bf16.mxu0 0
        %2618 = vmatpush1.bf16.msra.mxu0 %v2582
        %2619 = vmatprep.subr.bf16.mxu0 0
        %2620 = vmatpush1.bf16.msra.mxu0 %v2583
        %2621 = vmatprep.subr.bf16.mxu0 0
        %2622 = vmatpush1.bf16.msra.mxu0 %v2584
        %2623 = vmatprep.subr.bf16.mxu0 0
        %2624 = vmatpush1.bf16.msra.mxu0 %v2585
        %2625 = vmatprep.subr.bf16.mxu0 0
        %2626 = vmatpush1.bf16.msra.mxu0 %v2586
        %2627 = vmatprep.subr.bf16.mxu0 0
        %2628 = vmatpush1.bf16.msra.mxu0 %v2587
        %2629 = vmatprep.subr.bf16.mxu0 0
        %2630 = vmatpush1.bf16.msra.mxu0 %v2588
        %2631 = vmatprep.subr.bf16.mxu0 0
        %2632 = vmatpush1.bf16.msra.mxu0 %v2589
        %2633 = vmatprep.subr.bf16.mxu0 0
        %2634 = vmatpush1.bf16.msra.mxu0 %v2590
        %2635 = vmatprep.subr.bf16.mxu0 0
        %2636 = vmatpush1.bf16.msra.mxu0 %v2591
        %2637 = vmatprep.subr.bf16.mxu0 0
        %2638 = vmatpush1.bf16.msra.mxu0 %v2592
        %2639 = vmatprep.subr.bf16.mxu0 0
        %2640 = vmatpush1.bf16.msra.mxu0 %v2593
        %2641 = vmatprep.subr.bf16.mxu0 0
        %2642 = vmatpush1.bf16.msra.mxu0 %v2594
        %2643 = vmatprep.mubr.bf16.mxu0 %v487
        %2644 = vmatmul.mubr.bf16.gmra.mrb[0].mxu0 %v486
        %v2645 = vpop.f32.mrb[0].mxu0
        %v2646 = vadd.f32 %v2513, %v2645
        %v2647 = vpop.f32.mrb[0].mxu0
        %v2648 = vpop.f32.mrb[0].mxu0
        %v2649 = vpop.f32.mrb[0].mxu0
        %2650 = vdwg.mxu0
        %v2651 = vlaneseq
        %v2652 = vshrl.u32 %v2651, 7
        %v2653 = vsub.s32 1, %v2652
        %v2654 = vrot.slane %v698, %v2653
        %v2655 = vmul.f32 %v2654, %v2646
        %v2656 = vadd.f32 %v2459, %v2655
        %v2657 = vlaneseq
        %v2658 = vshrl.u32 %v2657, 7
        %v2659 = vsub.s32 1, %v2658
        %v2660 = vrot.slane %v700, %v2659
        %v2661 = vmul.f32 %v2660, %v2646
        %v2662 = vadd.f32 %v2465, %v2661
        %v2663 = vlaneseq
        %v2664 = vshrl.u32 %v2663, 7
        %v2665 = vsub.s32 1, %v2664
        %v2666 = vrot.slane %v702, %v2665
        %v2667 = vmul.f32 %v2666, %v2646
        %v2668 = vadd.f32 %v2471, %v2667
        %v2669 = vlaneseq
        %v2670 = vshrl.u32 %v2669, 7
        %v2671 = vsub.s32 1, %v2670
        %v2672 = vrot.slane %v704, %v2671
        %v2673 = vmul.f32 %v2672, %v2646
        %v2674 = vadd.f32 %v2477, %v2673
        %s2675 = scalar_lea.vmem %s410, 1280 [#allocation4]
        %v2676 = vld [vmem:[%s2675] sm:$0xf]
        %v2677 = vld [vmem:[%s2675 + $0x4] sm:$0xf]
        %v2678 = vld [vmem:[%s2675 + $0x8] sm:$0xf]
        %v2679 = vld [vmem:[%s2675 + $0xc] sm:$0xf]
        %v2680 = vld [vmem:[%s2675 + $0x10] sm:$0xf]
        %v2681 = vld [vmem:[%s2675 + $0x14] sm:$0xf]
        %v2682 = vld [vmem:[%s2675 + $0x18] sm:$0xf]
        %v2683 = vld [vmem:[%s2675 + $0x1c] sm:$0xf]
        %v2684 = vld [vmem:[%s2675 + $0x20] sm:$0xf]
        %v2685 = vld [vmem:[%s2675 + $0x24] sm:$0xf]
        %v2686 = vld [vmem:[%s2675 + $0x28] sm:$0xf]
        %v2687 = vld [vmem:[%s2675 + $0x2c] sm:$0xf]
        %v2688 = vld [vmem:[%s2675 + $0x30] sm:$0xf]
        %v2689 = vld [vmem:[%s2675 + $0x34] sm:$0xf]
        %v2690 = vld [vmem:[%s2675 + $0x38] sm:$0xf]
        %v2691 = vld [vmem:[%s2675 + $0x3c] sm:$0xf]
        %v2692 = vld [vmem:[%s2675 + $0x40] sm:$0xf]
        %v2693 = vld [vmem:[%s2675 + $0x44] sm:$0xf]
        %v2694 = vld [vmem:[%s2675 + $0x48] sm:$0xf]
        %v2695 = vld [vmem:[%s2675 + $0x4c] sm:$0xf]
        %v2696 = vld [vmem:[%s2675 + $0x50] sm:$0xf]
        %v2697 = vld [vmem:[%s2675 + $0x54] sm:$0xf]
        %v2698 = vld [vmem:[%s2675 + $0x58] sm:$0xf]
        %v2699 = vld [vmem:[%s2675 + $0x5c] sm:$0xf]
        %v2700 = vld [vmem:[%s2675 + $0x60] sm:$0xf]
        %v2701 = vld [vmem:[%s2675 + $0x64] sm:$0xf]
        %v2702 = vld [vmem:[%s2675 + $0x68] sm:$0xf]
        %v2703 = vld [vmem:[%s2675 + $0x6c] sm:$0xf]
        %v2704 = vld [vmem:[%s2675 + $0x70] sm:$0xf]
        %v2705 = vld [vmem:[%s2675 + $0x74] sm:$0xf]
        %v2706 = vld [vmem:[%s2675 + $0x78] sm:$0xf]
        %v2707 = vld [vmem:[%s2675 + $0x7c] sm:$0xf]
        %2708 = vset.pattern.permute.xlu0 10
        %2709 = vperm.xlu0 %2708, %v576
        %v2710 = vpop.permute.xlu0 %2709
        %v2744 = vunpack.c.l.b16 %v2676
        %v2745 = vunpack.c.l.b16 %v2677
        %v2746 = vunpack.c.l.b16 %v2678
        %v2747 = vunpack.c.l.b16 %v2679
        %v2748 = vunpack.c.l.b16 %v2680
        %v2749 = vunpack.c.l.b16 %v2681
        %v2750 = vunpack.c.l.b16 %v2682
        %v2751 = vunpack.c.l.b16 %v2683
        %v2752 = vunpack.c.l.b16 %v2684
        %v2753 = vunpack.c.l.b16 %v2685
        %v2754 = vunpack.c.l.b16 %v2686
        %v2755 = vunpack.c.l.b16 %v2687
        %v2756 = vunpack.c.l.b16 %v2688
        %v2757 = vunpack.c.l.b16 %v2689
        %v2758 = vunpack.c.l.b16 %v2690
        %v2759 = vunpack.c.l.b16 %v2691
        %v2760 = vunpack.c.l.b16 %v2692
        %v2761 = vunpack.c.l.b16 %v2693
        %v2762 = vunpack.c.l.b16 %v2694
        %v2763 = vunpack.c.l.b16 %v2695
        %v2764 = vunpack.c.l.b16 %v2696
        %v2765 = vunpack.c.l.b16 %v2697
        %v2766 = vunpack.c.l.b16 %v2698
        %v2767 = vunpack.c.l.b16 %v2699
        %v2768 = vunpack.c.l.b16 %v2700
        %v2769 = vunpack.c.l.b16 %v2701
        %v2770 = vunpack.c.l.b16 %v2702
        %v2771 = vunpack.c.l.b16 %v2703
        %v2772 = vunpack.c.l.b16 %v2704
        %v2773 = vunpack.c.l.b16 %v2705
        %v2774 = vunpack.c.l.b16 %v2706
        %v2775 = vunpack.c.l.b16 %v2707
        %v2776 = vpack.c.b16 %v2745, %v2744
        %v2777 = vpack.c.b16 %v2747, %v2746
        %v2778 = vpack.c.b16 %v2749, %v2748
        %v2779 = vpack.c.b16 %v2751, %v2750
        %v2780 = vpack.c.b16 %v2753, %v2752
        %v2781 = vpack.c.b16 %v2755, %v2754
        %v2782 = vpack.c.b16 %v2757, %v2756
        %v2783 = vpack.c.b16 %v2759, %v2758
        %v2784 = vpack.c.b16 %v2761, %v2760
        %v2785 = vpack.c.b16 %v2763, %v2762
        %v2786 = vpack.c.b16 %v2765, %v2764
        %v2787 = vpack.c.b16 %v2767, %v2766
        %v2788 = vpack.c.b16 %v2769, %v2768
        %v2789 = vpack.c.b16 %v2771, %v2770
        %v2790 = vpack.c.b16 %v2773, %v2772
        %v2791 = vpack.c.b16 %v2775, %v2774
        %2808 = vmatprep.subr.bf16.mxu0 0
        %2809 = vmatpush1.bf16.msra.mxu0 %v2776
        %2810 = vmatprep.subr.bf16.mxu0 0
        %2811 = vmatpush1.bf16.msra.mxu0 %v2777
        %2812 = vmatprep.subr.bf16.mxu0 0
        %2813 = vmatpush1.bf16.msra.mxu0 %v2778
        %2814 = vmatprep.subr.bf16.mxu0 0
        %2815 = vmatpush1.bf16.msra.mxu0 %v2779
        %2816 = vmatprep.subr.bf16.mxu0 0
        %2817 = vmatpush1.bf16.msra.mxu0 %v2780
        %2818 = vmatprep.subr.bf16.mxu0 0
        %2819 = vmatpush1.bf16.msra.mxu0 %v2781
        %2820 = vmatprep.subr.bf16.mxu0 0
        %2821 = vmatpush1.bf16.msra.mxu0 %v2782
        %2822 = vmatprep.subr.bf16.mxu0 0
        %2823 = vmatpush1.bf16.msra.mxu0 %v2783
        %2824 = vmatprep.subr.bf16.mxu0 0
        %2825 = vmatpush1.bf16.msra.mxu0 %v2784
        %2826 = vmatprep.subr.bf16.mxu0 0
        %2827 = vmatpush1.bf16.msra.mxu0 %v2785
        %2828 = vmatprep.subr.bf16.mxu0 0
        %2829 = vmatpush1.bf16.msra.mxu0 %v2786
        %2830 = vmatprep.subr.bf16.mxu0 0
        %2831 = vmatpush1.bf16.msra.mxu0 %v2787
        %2832 = vmatprep.subr.bf16.mxu0 0
        %2833 = vmatpush1.bf16.msra.mxu0 %v2788
        %2834 = vmatprep.subr.bf16.mxu0 0
        %2835 = vmatpush1.bf16.msra.mxu0 %v2789
        %2836 = vmatprep.subr.bf16.mxu0 0
        %2837 = vmatpush1.bf16.msra.mxu0 %v2790
        %2838 = vmatprep.subr.bf16.mxu0 0
        %2839 = vmatpush1.bf16.msra.mxu0 %v2791
        %2840 = vmatprep.mubr.bf16.mxu0 %v487
        %2841 = vmatmul.mubr.bf16.gmra.mrb[0].mxu0 %v486
        %v2842 = vpop.f32.mrb[0].mxu0
        %v2843 = vadd.f32 %v2710, %v2842
        %v2844 = vpop.f32.mrb[0].mxu0
        %v2845 = vpop.f32.mrb[0].mxu0
        %v2846 = vpop.f32.mrb[0].mxu0
        %2847 = vdwg.mxu0
        %v2848 = vlaneseq
        %v2849 = vshrl.u32 %v2848, 7
        %v2850 = vsub.s32 2, %v2849
        %v2851 = vrot.slane %v698, %v2850
        %v2852 = vmul.f32 %v2851, %v2843
        %v2853 = vadd.f32 %v2656, %v2852
        %v2854 = vlaneseq
        %v2855 = vshrl.u32 %v2854, 7
        %v2856 = vsub.s32 2, %v2855
        %v2857 = vrot.slane %v700, %v2856
        %v2858 = vmul.f32 %v2857, %v2843
        %v2859 = vadd.f32 %v2662, %v2858
        %v2860 = vlaneseq
        %v2861 = vshrl.u32 %v2860, 7
        %v2862 = vsub.s32 2, %v2861
        %v2863 = vrot.slane %v702, %v2862
        %v2864 = vmul.f32 %v2863, %v2843
        %v2865 = vadd.f32 %v2668, %v2864
        %v2866 = vlaneseq
        %v2867 = vshrl.u32 %v2866, 7
        %v2868 = vsub.s32 2, %v2867
        %v2869 = vrot.slane %v704, %v2868
        %v2870 = vmul.f32 %v2869, %v2843
        %v2871 = vadd.f32 %v2674, %v2870
        %s2872 = scalar_lea.vmem %s410, 1408 [#allocation4]
        %v2873 = vld [vmem:[%s2872] sm:$0xf]
        %v2874 = vld [vmem:[%s2872 + $0x4] sm:$0xf]
        %v2875 = vld [vmem:[%s2872 + $0x8] sm:$0xf]
        %v2876 = vld [vmem:[%s2872 + $0xc] sm:$0xf]
        %v2877 = vld [vmem:[%s2872 + $0x10] sm:$0xf]
        %v2878 = vld [vmem:[%s2872 + $0x14] sm:$0xf]
        %v2879 = vld [vmem:[%s2872 + $0x18] sm:$0xf]
        %v2880 = vld [vmem:[%s2872 + $0x1c] sm:$0xf]
        %v2881 = vld [vmem:[%s2872 + $0x20] sm:$0xf]
        %v2882 = vld [vmem:[%s2872 + $0x24] sm:$0xf]
        %v2883 = vld [vmem:[%s2872 + $0x28] sm:$0xf]
        %v2884 = vld [vmem:[%s2872 + $0x2c] sm:$0xf]
        %v2885 = vld [vmem:[%s2872 + $0x30] sm:$0xf]
        %v2886 = vld [vmem:[%s2872 + $0x34] sm:$0xf]
        %v2887 = vld [vmem:[%s2872 + $0x38] sm:$0xf]
        %v2888 = vld [vmem:[%s2872 + $0x3c] sm:$0xf]
        %v2889 = vld [vmem:[%s2872 + $0x40] sm:$0xf]
        %v2890 = vld [vmem:[%s2872 + $0x44] sm:$0xf]
        %v2891 = vld [vmem:[%s2872 + $0x48] sm:$0xf]
        %v2892 = vld [vmem:[%s2872 + $0x4c] sm:$0xf]
        %v2893 = vld [vmem:[%s2872 + $0x50] sm:$0xf]
        %v2894 = vld [vmem:[%s2872 + $0x54] sm:$0xf]
        %v2895 = vld [vmem:[%s2872 + $0x58] sm:$0xf]
        %v2896 = vld [vmem:[%s2872 + $0x5c] sm:$0xf]
        %v2897 = vld [vmem:[%s2872 + $0x60] sm:$0xf]
        %v2898 = vld [vmem:[%s2872 + $0x64] sm:$0xf]
        %v2899 = vld [vmem:[%s2872 + $0x68] sm:$0xf]
        %v2900 = vld [vmem:[%s2872 + $0x6c] sm:$0xf]
        %v2901 = vld [vmem:[%s2872 + $0x70] sm:$0xf]
        %v2902 = vld [vmem:[%s2872 + $0x74] sm:$0xf]
        %v2903 = vld [vmem:[%s2872 + $0x78] sm:$0xf]
        %v2904 = vld [vmem:[%s2872 + $0x7c] sm:$0xf]
        %2905 = vset.pattern.permute.xlu0 11
        %2906 = vperm.xlu0 %2905, %v576
        %v2907 = vpop.permute.xlu0 %2906
        %v2941 = vunpack.c.l.b16 %v2873
        %v2942 = vunpack.c.l.b16 %v2874
        %v2943 = vunpack.c.l.b16 %v2875
        %v2944 = vunpack.c.l.b16 %v2876
        %v2945 = vunpack.c.l.b16 %v2877
        %v2946 = vunpack.c.l.b16 %v2878
        %v2947 = vunpack.c.l.b16 %v2879
        %v2948 = vunpack.c.l.b16 %v2880
        %v2949 = vunpack.c.l.b16 %v2881
        %v2950 = vunpack.c.l.b16 %v2882
        %v2951 = vunpack.c.l.b16 %v2883
        %v2952 = vunpack.c.l.b16 %v2884
        %v2953 = vunpack.c.l.b16 %v2885
        %v2954 = vunpack.c.l.b16 %v2886
        %v2955 = vunpack.c.l.b16 %v2887
        %v2956 = vunpack.c.l.b16 %v2888
        %v2957 = vunpack.c.l.b16 %v2889
        %v2958 = vunpack.c.l.b16 %v2890
        %v2959 = vunpack.c.l.b16 %v2891
        %v2960 = vunpack.c.l.b16 %v2892
        %v2961 = vunpack.c.l.b16 %v2893
        %v2962 = vunpack.c.l.b16 %v2894
        %v2963 = vunpack.c.l.b16 %v2895
        %v2964 = vunpack.c.l.b16 %v2896
        %v2965 = vunpack.c.l.b16 %v2897
        %v2966 = vunpack.c.l.b16 %v2898
        %v2967 = vunpack.c.l.b16 %v2899
        %v2968 = vunpack.c.l.b16 %v2900
        %v2969 = vunpack.c.l.b16 %v2901
        %v2970 = vunpack.c.l.b16 %v2902
        %v2971 = vunpack.c.l.b16 %v2903
        %v2972 = vunpack.c.l.b16 %v2904
        %v2973 = vpack.c.b16 %v2942, %v2941
        %v2974 = vpack.c.b16 %v2944, %v2943
        %v2975 = vpack.c.b16 %v2946, %v2945
        %v2976 = vpack.c.b16 %v2948, %v2947
        %v2977 = vpack.c.b16 %v2950, %v2949
        %v2978 = vpack.c.b16 %v2952, %v2951
        %v2979 = vpack.c.b16 %v2954, %v2953
        %v2980 = vpack.c.b16 %v2956, %v2955
        %v2981 = vpack.c.b16 %v2958, %v2957
        %v2982 = vpack.c.b16 %v2960, %v2959
        %v2983 = vpack.c.b16 %v2962, %v2961
        %v2984 = vpack.c.b16 %v2964, %v2963
        %v2985 = vpack.c.b16 %v2966, %v2965
        %v2986 = vpack.c.b16 %v2968, %v2967
        %v2987 = vpack.c.b16 %v2970, %v2969
        %v2988 = vpack.c.b16 %v2972, %v2971
        %3005 = vmatprep.subr.bf16.mxu0 0
        %3006 = vmatpush1.bf16.msra.mxu0 %v2973
        %3007 = vmatprep.subr.bf16.mxu0 0
        %3008 = vmatpush1.bf16.msra.mxu0 %v2974
        %3009 = vmatprep.subr.bf16.mxu0 0
        %3010 = vmatpush1.bf16.msra.mxu0 %v2975
        %3011 = vmatprep.subr.bf16.mxu0 0
        %3012 = vmatpush1.bf16.msra.mxu0 %v2976
        %3013 = vmatprep.subr.bf16.mxu0 0
        %3014 = vmatpush1.bf16.msra.mxu0 %v2977
        %3015 = vmatprep.subr.bf16.mxu0 0
        %3016 = vmatpush1.bf16.msra.mxu0 %v2978
        %3017 = vmatprep.subr.bf16.mxu0 0
        %3018 = vmatpush1.bf16.msra.mxu0 %v2979
        %3019 = vmatprep.subr.bf16.mxu0 0
        %3020 = vmatpush1.bf16.msra.mxu0 %v2980
        %3021 = vmatprep.subr.bf16.mxu0 0
        %3022 = vmatpush1.bf16.msra.mxu0 %v2981
        %3023 = vmatprep.subr.bf16.mxu0 0
        %3024 = vmatpush1.bf16.msra.mxu0 %v2982
        %3025 = vmatprep.subr.bf16.mxu0 0
        %3026 = vmatpush1.bf16.msra.mxu0 %v2983
        %3027 = vmatprep.subr.bf16.mxu0 0
        %3028 = vmatpush1.bf16.msra.mxu0 %v2984
        %3029 = vmatprep.subr.bf16.mxu0 0
        %3030 = vmatpush1.bf16.msra.mxu0 %v2985
        %3031 = vmatprep.subr.bf16.mxu0 0
        %3032 = vmatpush1.bf16.msra.mxu0 %v2986
        %3033 = vmatprep.subr.bf16.mxu0 0
        %3034 = vmatpush1.bf16.msra.mxu0 %v2987
        %3035 = vmatprep.subr.bf16.mxu0 0
        %3036 = vmatpush1.bf16.msra.mxu0 %v2988
        %3037 = vmatprep.mubr.bf16.mxu0 %v487
        %3038 = vmatmul.mubr.bf16.gmra.mrb[0].mxu0 %v486
        %v3039 = vpop.f32.mrb[0].mxu0
        %v3040 = vadd.f32 %v2907, %v3039
        %v3041 = vpop.f32.mrb[0].mxu0
        %v3042 = vpop.f32.mrb[0].mxu0
        %v3043 = vpop.f32.mrb[0].mxu0
        %3044 = vdwg.mxu0
        %v3045 = vlaneseq
        %v3046 = vshrl.u32 %v3045, 7
        %v3047 = vsub.s32 3, %v3046
        %v3048 = vrot.slane %v698, %v3047
        %v3049 = vmul.f32 %v3048, %v3040
        %v3050 = vadd.f32 %v2853, %v3049
        %v3051 = vlaneseq
        %v3052 = vshrl.u32 %v3051, 7
        %v3053 = vsub.s32 3, %v3052
        %v3054 = vrot.slane %v700, %v3053
        %v3055 = vmul.f32 %v3054, %v3040
        %v3056 = vadd.f32 %v2859, %v3055
        %v3057 = vlaneseq
        %v3058 = vshrl.u32 %v3057, 7
        %v3059 = vsub.s32 3, %v3058
        %v3060 = vrot.slane %v702, %v3059
        %v3061 = vmul.f32 %v3060, %v3040
        %v3062 = vadd.f32 %v2865, %v3061
        %v3063 = vlaneseq
        %v3064 = vshrl.u32 %v3063, 7
        %v3065 = vsub.s32 3, %v3064
        %v3066 = vrot.slane %v704, %v3065
        %v3067 = vmul.f32 %v3066, %v3040
        %v3068 = vadd.f32 %v2871, %v3067
        %s3069 = scalar_lea.vmem %s410, 1536 [#allocation4]
        %v3070 = vld [vmem:[%s3069] sm:$0xf]
        %v3071 = vld [vmem:[%s3069 + $0x4] sm:$0xf]
        %v3072 = vld [vmem:[%s3069 + $0x8] sm:$0xf]
        %v3073 = vld [vmem:[%s3069 + $0xc] sm:$0xf]
        %v3074 = vld [vmem:[%s3069 + $0x10] sm:$0xf]
        %v3075 = vld [vmem:[%s3069 + $0x14] sm:$0xf]
        %v3076 = vld [vmem:[%s3069 + $0x18] sm:$0xf]
        %v3077 = vld [vmem:[%s3069 + $0x1c] sm:$0xf]
        %v3078 = vld [vmem:[%s3069 + $0x20] sm:$0xf]
        %v3079 = vld [vmem:[%s3069 + $0x24] sm:$0xf]
        %v3080 = vld [vmem:[%s3069 + $0x28] sm:$0xf]
        %v3081 = vld [vmem:[%s3069 + $0x2c] sm:$0xf]
        %v3082 = vld [vmem:[%s3069 + $0x30] sm:$0xf]
        %v3083 = vld [vmem:[%s3069 + $0x34] sm:$0xf]
        %v3084 = vld [vmem:[%s3069 + $0x38] sm:$0xf]
        %v3085 = vld [vmem:[%s3069 + $0x3c] sm:$0xf]
        %v3086 = vld [vmem:[%s3069 + $0x40] sm:$0xf]
        %v3087 = vld [vmem:[%s3069 + $0x44] sm:$0xf]
        %v3088 = vld [vmem:[%s3069 + $0x48] sm:$0xf]
        %v3089 = vld [vmem:[%s3069 + $0x4c] sm:$0xf]
        %v3090 = vld [vmem:[%s3069 + $0x50] sm:$0xf]
        %v3091 = vld [vmem:[%s3069 + $0x54] sm:$0xf]
        %v3092 = vld [vmem:[%s3069 + $0x58] sm:$0xf]
        %v3093 = vld [vmem:[%s3069 + $0x5c] sm:$0xf]
        %v3094 = vld [vmem:[%s3069 + $0x60] sm:$0xf]
        %v3095 = vld [vmem:[%s3069 + $0x64] sm:$0xf]
        %v3096 = vld [vmem:[%s3069 + $0x68] sm:$0xf]
        %v3097 = vld [vmem:[%s3069 + $0x6c] sm:$0xf]
        %v3098 = vld [vmem:[%s3069 + $0x70] sm:$0xf]
        %v3099 = vld [vmem:[%s3069 + $0x74] sm:$0xf]
        %v3100 = vld [vmem:[%s3069 + $0x78] sm:$0xf]
        %v3101 = vld [vmem:[%s3069 + $0x7c] sm:$0xf]
        %3102 = vset.pattern.permute.xlu0 12
        %3103 = vperm.xlu0 %3102, %v576
        %v3104 = vpop.permute.xlu0 %3103
        %v3138 = vunpack.c.l.b16 %v3070
        %v3139 = vunpack.c.l.b16 %v3071
        %v3140 = vunpack.c.l.b16 %v3072
        %v3141 = vunpack.c.l.b16 %v3073
        %v3142 = vunpack.c.l.b16 %v3074
        %v3143 = vunpack.c.l.b16 %v3075
        %v3144 = vunpack.c.l.b16 %v3076
        %v3145 = vunpack.c.l.b16 %v3077
        %v3146 = vunpack.c.l.b16 %v3078
        %v3147 = vunpack.c.l.b16 %v3079
        %v3148 = vunpack.c.l.b16 %v3080
        %v3149 = vunpack.c.l.b16 %v3081
        %v3150 = vunpack.c.l.b16 %v3082
        %v3151 = vunpack.c.l.b16 %v3083
        %v3152 = vunpack.c.l.b16 %v3084
        %v3153 = vunpack.c.l.b16 %v3085
        %v3154 = vunpack.c.l.b16 %v3086
        %v3155 = vunpack.c.l.b16 %v3087
        %v3156 = vunpack.c.l.b16 %v3088
        %v3157 = vunpack.c.l.b16 %v3089
        %v3158 = vunpack.c.l.b16 %v3090
        %v3159 = vunpack.c.l.b16 %v3091
        %v3160 = vunpack.c.l.b16 %v3092
        %v3161 = vunpack.c.l.b16 %v3093
        %v3162 = vunpack.c.l.b16 %v3094
        %v3163 = vunpack.c.l.b16 %v3095
        %v3164 = vunpack.c.l.b16 %v3096
        %v3165 = vunpack.c.l.b16 %v3097
        %v3166 = vunpack.c.l.b16 %v3098
        %v3167 = vunpack.c.l.b16 %v3099
        %v3168 = vunpack.c.l.b16 %v3100
        %v3169 = vunpack.c.l.b16 %v3101
        %v3170 = vpack.c.b16 %v3139, %v3138
        %v3171 = vpack.c.b16 %v3141, %v3140
        %v3172 = vpack.c.b16 %v3143, %v3142
        %v3173 = vpack.c.b16 %v3145, %v3144
        %v3174 = vpack.c.b16 %v3147, %v3146
        %v3175 = vpack.c.b16 %v3149, %v3148
        %v3176 = vpack.c.b16 %v3151, %v3150
        %v3177 = vpack.c.b16 %v3153, %v3152
        %v3178 = vpack.c.b16 %v3155, %v3154
        %v3179 = vpack.c.b16 %v3157, %v3156
        %v3180 = vpack.c.b16 %v3159, %v3158
        %v3181 = vpack.c.b16 %v3161, %v3160
        %v3182 = vpack.c.b16 %v3163, %v3162
        %v3183 = vpack.c.b16 %v3165, %v3164
        %v3184 = vpack.c.b16 %v3167, %v3166
        %v3185 = vpack.c.b16 %v3169, %v3168
        %3202 = vmatprep.subr.bf16.mxu0 0
        %3203 = vmatpush1.bf16.msra.mxu0 %v3170
        %3204 = vmatprep.subr.bf16.mxu0 0
        %3205 = vmatpush1.bf16.msra.mxu0 %v3171
        %3206 = vmatprep.subr.bf16.mxu0 0
        %3207 = vmatpush1.bf16.msra.mxu0 %v3172
        %3208 = vmatprep.subr.bf16.mxu0 0
        %3209 = vmatpush1.bf16.msra.mxu0 %v3173
        %3210 = vmatprep.subr.bf16.mxu0 0
        %3211 = vmatpush1.bf16.msra.mxu0 %v3174
        %3212 = vmatprep.subr.bf16.mxu0 0
        %3213 = vmatpush1.bf16.msra.mxu0 %v3175
        %3214 = vmatprep.subr.bf16.mxu0 0
        %3215 = vmatpush1.bf16.msra.mxu0 %v3176
        %3216 = vmatprep.subr.bf16.mxu0 0
        %3217 = vmatpush1.bf16.msra.mxu0 %v3177
        %3218 = vmatprep.subr.bf16.mxu0 0
        %3219 = vmatpush1.bf16.msra.mxu0 %v3178
        %3220 = vmatprep.subr.bf16.mxu0 0
        %3221 = vmatpush1.bf16.msra.mxu0 %v3179
        %3222 = vmatprep.subr.bf16.mxu0 0
        %3223 = vmatpush1.bf16.msra.mxu0 %v3180
        %3224 = vmatprep.subr.bf16.mxu0 0
        %3225 = vmatpush1.bf16.msra.mxu0 %v3181
        %3226 = vmatprep.subr.bf16.mxu0 0
        %3227 = vmatpush1.bf16.msra.mxu0 %v3182
        %3228 = vmatprep.subr.bf16.mxu0 0
        %3229 = vmatpush1.bf16.msra.mxu0 %v3183
        %3230 = vmatprep.subr.bf16.mxu0 0
        %3231 = vmatpush1.bf16.msra.mxu0 %v3184
        %3232 = vmatprep.subr.bf16.mxu0 0
        %3233 = vmatpush1.bf16.msra.mxu0 %v3185
        %3234 = vmatprep.mubr.bf16.mxu0 %v487
        %3235 = vmatmul.mubr.bf16.gmra.mrb[0].mxu0 %v486
        %v3236 = vpop.f32.mrb[0].mxu0
        %v3237 = vadd.f32 %v3104, %v3236
        %v3238 = vpop.f32.mrb[0].mxu0
        %v3239 = vpop.f32.mrb[0].mxu0
        %v3240 = vpop.f32.mrb[0].mxu0
        %3241 = vdwg.mxu0
        %v3242 = vlaneseq
        %v3243 = vshrl.u32 %v3242, 7
        %v3244 = vsub.s32 4, %v3243
        %v3245 = vrot.slane %v698, %v3244
        %v3246 = vmul.f32 %v3245, %v3237
        %v3247 = vadd.f32 %v3050, %v3246
        %v3248 = vlaneseq
        %v3249 = vshrl.u32 %v3248, 7
        %v3250 = vsub.s32 4, %v3249
        %v3251 = vrot.slane %v700, %v3250
        %v3252 = vmul.f32 %v3251, %v3237
        %v3253 = vadd.f32 %v3056, %v3252
        %v3254 = vlaneseq
        %v3255 = vshrl.u32 %v3254, 7
        %v3256 = vsub.s32 4, %v3255
        %v3257 = vrot.slane %v702, %v3256
        %v3258 = vmul.f32 %v3257, %v3237
        %v3259 = vadd.f32 %v3062, %v3258
        %v3260 = vlaneseq
        %v3261 = vshrl.u32 %v3260, 7
        %v3262 = vsub.s32 4, %v3261
        %v3263 = vrot.slane %v704, %v3262
        %v3264 = vmul.f32 %v3263, %v3237
        %v3265 = vadd.f32 %v3068, %v3264
        %s3266 = scalar_lea.vmem %s410, 1664 [#allocation4]
        %v3267 = vld [vmem:[%s3266] sm:$0xf]
        %v3268 = vld [vmem:[%s3266 + $0x4] sm:$0xf]
        %v3269 = vld [vmem:[%s3266 + $0x8] sm:$0xf]
        %v3270 = vld [vmem:[%s3266 + $0xc] sm:$0xf]
        %v3271 = vld [vmem:[%s3266 + $0x10] sm:$0xf]
        %v3272 = vld [vmem:[%s3266 + $0x14] sm:$0xf]
        %v3273 = vld [vmem:[%s3266 + $0x18] sm:$0xf]
        %v3274 = vld [vmem:[%s3266 + $0x1c] sm:$0xf]
        %v3275 = vld [vmem:[%s3266 + $0x20] sm:$0xf]
        %v3276 = vld [vmem:[%s3266 + $0x24] sm:$0xf]
        %v3277 = vld [vmem:[%s3266 + $0x28] sm:$0xf]
        %v3278 = vld [vmem:[%s3266 + $0x2c] sm:$0xf]
        %v3279 = vld [vmem:[%s3266 + $0x30] sm:$0xf]
        %v3280 = vld [vmem:[%s3266 + $0x34] sm:$0xf]
        %v3281 = vld [vmem:[%s3266 + $0x38] sm:$0xf]
        %v3282 = vld [vmem:[%s3266 + $0x3c] sm:$0xf]
        %v3283 = vld [vmem:[%s3266 + $0x40] sm:$0xf]
        %v3284 = vld [vmem:[%s3266 + $0x44] sm:$0xf]
        %v3285 = vld [vmem:[%s3266 + $0x48] sm:$0xf]
        %v3286 = vld [vmem:[%s3266 + $0x4c] sm:$0xf]
        %v3287 = vld [vmem:[%s3266 + $0x50] sm:$0xf]
        %v3288 = vld [vmem:[%s3266 + $0x54] sm:$0xf]
        %v3289 = vld [vmem:[%s3266 + $0x58] sm:$0xf]
        %v3290 = vld [vmem:[%s3266 + $0x5c] sm:$0xf]
        %v3291 = vld [vmem:[%s3266 + $0x60] sm:$0xf]
        %v3292 = vld [vmem:[%s3266 + $0x64] sm:$0xf]
        %v3293 = vld [vmem:[%s3266 + $0x68] sm:$0xf]
        %v3294 = vld [vmem:[%s3266 + $0x6c] sm:$0xf]
        %v3295 = vld [vmem:[%s3266 + $0x70] sm:$0xf]
        %v3296 = vld [vmem:[%s3266 + $0x74] sm:$0xf]
        %v3297 = vld [vmem:[%s3266 + $0x78] sm:$0xf]
        %v3298 = vld [vmem:[%s3266 + $0x7c] sm:$0xf]
        %3299 = vset.pattern.permute.xlu0 13
        %3300 = vperm.xlu0 %3299, %v576
        %v3301 = vpop.permute.xlu0 %3300
        %v3335 = vunpack.c.l.b16 %v3267
        %v3336 = vunpack.c.l.b16 %v3268
        %v3337 = vunpack.c.l.b16 %v3269
        %v3338 = vunpack.c.l.b16 %v3270
        %v3339 = vunpack.c.l.b16 %v3271
        %v3340 = vunpack.c.l.b16 %v3272
        %v3341 = vunpack.c.l.b16 %v3273
        %v3342 = vunpack.c.l.b16 %v3274
        %v3343 = vunpack.c.l.b16 %v3275
        %v3344 = vunpack.c.l.b16 %v3276
        %v3345 = vunpack.c.l.b16 %v3277
        %v3346 = vunpack.c.l.b16 %v3278
        %v3347 = vunpack.c.l.b16 %v3279
        %v3348 = vunpack.c.l.b16 %v3280
        %v3349 = vunpack.c.l.b16 %v3281
        %v3350 = vunpack.c.l.b16 %v3282
        %v3351 = vunpack.c.l.b16 %v3283
        %v3352 = vunpack.c.l.b16 %v3284
        %v3353 = vunpack.c.l.b16 %v3285
        %v3354 = vunpack.c.l.b16 %v3286
        %v3355 = vunpack.c.l.b16 %v3287
        %v3356 = vunpack.c.l.b16 %v3288
        %v3357 = vunpack.c.l.b16 %v3289
        %v3358 = vunpack.c.l.b16 %v3290
        %v3359 = vunpack.c.l.b16 %v3291
        %v3360 = vunpack.c.l.b16 %v3292
        %v3361 = vunpack.c.l.b16 %v3293
        %v3362 = vunpack.c.l.b16 %v3294
        %v3363 = vunpack.c.l.b16 %v3295
        %v3364 = vunpack.c.l.b16 %v3296
        %v3365 = vunpack.c.l.b16 %v3297
        %v3366 = vunpack.c.l.b16 %v3298
        %v3367 = vpack.c.b16 %v3336, %v3335
        %v3368 = vpack.c.b16 %v3338, %v3337
        %v3369 = vpack.c.b16 %v3340, %v3339
        %v3370 = vpack.c.b16 %v3342, %v3341
        %v3371 = vpack.c.b16 %v3344, %v3343
        %v3372 = vpack.c.b16 %v3346, %v3345
        %v3373 = vpack.c.b16 %v3348, %v3347
        %v3374 = vpack.c.b16 %v3350, %v3349
        %v3375 = vpack.c.b16 %v3352, %v3351
        %v3376 = vpack.c.b16 %v3354, %v3353
        %v3377 = vpack.c.b16 %v3356, %v3355
        %v3378 = vpack.c.b16 %v3358, %v3357
        %v3379 = vpack.c.b16 %v3360, %v3359
        %v3380 = vpack.c.b16 %v3362, %v3361
        %v3381 = vpack.c.b16 %v3364, %v3363
        %v3382 = vpack.c.b16 %v3366, %v3365
        %3399 = vmatprep.subr.bf16.mxu0 0
        %3400 = vmatpush1.bf16.msra.mxu0 %v3367
        %3401 = vmatprep.subr.bf16.mxu0 0
        %3402 = vmatpush1.bf16.msra.mxu0 %v3368
        %3403 = vmatprep.subr.bf16.mxu0 0
        %3404 = vmatpush1.bf16.msra.mxu0 %v3369
        %3405 = vmatprep.subr.bf16.mxu0 0
        %3406 = vmatpush1.bf16.msra.mxu0 %v3370
        %3407 = vmatprep.subr.bf16.mxu0 0
        %3408 = vmatpush1.bf16.msra.mxu0 %v3371
        %3409 = vmatprep.subr.bf16.mxu0 0
        %3410 = vmatpush1.bf16.msra.mxu0 %v3372
        %3411 = vmatprep.subr.bf16.mxu0 0
        %3412 = vmatpush1.bf16.msra.mxu0 %v3373
        %3413 = vmatprep.subr.bf16.mxu0 0
        %3414 = vmatpush1.bf16.msra.mxu0 %v3374
        %3415 = vmatprep.subr.bf16.mxu0 0
        %3416 = vmatpush1.bf16.msra.mxu0 %v3375
        %3417 = vmatprep.subr.bf16.mxu0 0
        %3418 = vmatpush1.bf16.msra.mxu0 %v3376
        %3419 = vmatprep.subr.bf16.mxu0 0
        %3420 = vmatpush1.bf16.msra.mxu0 %v3377
        %3421 = vmatprep.subr.bf16.mxu0 0
        %3422 = vmatpush1.bf16.msra.mxu0 %v3378
        %3423 = vmatprep.subr.bf16.mxu0 0
        %3424 = vmatpush1.bf16.msra.mxu0 %v3379
        %3425 = vmatprep.subr.bf16.mxu0 0
        %3426 = vmatpush1.bf16.msra.mxu0 %v3380
        %3427 = vmatprep.subr.bf16.mxu0 0
        %3428 = vmatpush1.bf16.msra.mxu0 %v3381
        %3429 = vmatprep.subr.bf16.mxu0 0
        %3430 = vmatpush1.bf16.msra.mxu0 %v3382
        %3431 = vmatprep.mubr.bf16.mxu0 %v487
        %3432 = vmatmul.mubr.bf16.gmra.mrb[0].mxu0 %v486
        %v3433 = vpop.f32.mrb[0].mxu0
        %v3434 = vadd.f32 %v3301, %v3433
        %v3435 = vpop.f32.mrb[0].mxu0
        %v3436 = vpop.f32.mrb[0].mxu0
        %v3437 = vpop.f32.mrb[0].mxu0
        %3438 = vdwg.mxu0
        %v3439 = vlaneseq
        %v3440 = vshrl.u32 %v3439, 7
        %v3441 = vsub.s32 5, %v3440
        %v3442 = vrot.slane %v698, %v3441
        %v3443 = vmul.f32 %v3442, %v3434
        %v3444 = vadd.f32 %v3247, %v3443
        %v3445 = vlaneseq
        %v3446 = vshrl.u32 %v3445, 7
        %v3447 = vsub.s32 5, %v3446
        %v3448 = vrot.slane %v700, %v3447
        %v3449 = vmul.f32 %v3448, %v3434
        %v3450 = vadd.f32 %v3253, %v3449
        %v3451 = vlaneseq
        %v3452 = vshrl.u32 %v3451, 7
        %v3453 = vsub.s32 5, %v3452
        %v3454 = vrot.slane %v702, %v3453
        %v3455 = vmul.f32 %v3454, %v3434
        %v3456 = vadd.f32 %v3259, %v3455
        %v3457 = vlaneseq
        %v3458 = vshrl.u32 %v3457, 7
        %v3459 = vsub.s32 5, %v3458
        %v3460 = vrot.slane %v704, %v3459
        %v3461 = vmul.f32 %v3460, %v3434
        %v3462 = vadd.f32 %v3265, %v3461
        %s3463 = scalar_lea.vmem %s410, 1792 [#allocation4]
        %v3464 = vld [vmem:[%s3463] sm:$0xf]
        %v3465 = vld [vmem:[%s3463 + $0x4] sm:$0xf]
        %v3466 = vld [vmem:[%s3463 + $0x8] sm:$0xf]
        %v3467 = vld [vmem:[%s3463 + $0xc] sm:$0xf]
        %v3468 = vld [vmem:[%s3463 + $0x10] sm:$0xf]
        %v3469 = vld [vmem:[%s3463 + $0x14] sm:$0xf]
        %v3470 = vld [vmem:[%s3463 + $0x18] sm:$0xf]
        %v3471 = vld [vmem:[%s3463 + $0x1c] sm:$0xf]
        %v3472 = vld [vmem:[%s3463 + $0x20] sm:$0xf]
        %v3473 = vld [vmem:[%s3463 + $0x24] sm:$0xf]
        %v3474 = vld [vmem:[%s3463 + $0x28] sm:$0xf]
        %v3475 = vld [vmem:[%s3463 + $0x2c] sm:$0xf]
        %v3476 = vld [vmem:[%s3463 + $0x30] sm:$0xf]
        %v3477 = vld [vmem:[%s3463 + $0x34] sm:$0xf]
        %v3478 = vld [vmem:[%s3463 + $0x38] sm:$0xf]
        %v3479 = vld [vmem:[%s3463 + $0x3c] sm:$0xf]
        %v3480 = vld [vmem:[%s3463 + $0x40] sm:$0xf]
        %v3481 = vld [vmem:[%s3463 + $0x44] sm:$0xf]
        %v3482 = vld [vmem:[%s3463 + $0x48] sm:$0xf]
        %v3483 = vld [vmem:[%s3463 + $0x4c] sm:$0xf]
        %v3484 = vld [vmem:[%s3463 + $0x50] sm:$0xf]
        %v3485 = vld [vmem:[%s3463 + $0x54] sm:$0xf]
        %v3486 = vld [vmem:[%s3463 + $0x58] sm:$0xf]
        %v3487 = vld [vmem:[%s3463 + $0x5c] sm:$0xf]
        %v3488 = vld [vmem:[%s3463 + $0x60] sm:$0xf]
        %v3489 = vld [vmem:[%s3463 + $0x64] sm:$0xf]
        %v3490 = vld [vmem:[%s3463 + $0x68] sm:$0xf]
        %v3491 = vld [vmem:[%s3463 + $0x6c] sm:$0xf]
        %v3492 = vld [vmem:[%s3463 + $0x70] sm:$0xf]
        %v3493 = vld [vmem:[%s3463 + $0x74] sm:$0xf]
        %v3494 = vld [vmem:[%s3463 + $0x78] sm:$0xf]
        %v3495 = vld [vmem:[%s3463 + $0x7c] sm:$0xf]
        %3496 = vset.pattern.permute.xlu0 14
        %3497 = vperm.xlu0 %3496, %v576
        %v3498 = vpop.permute.xlu0 %3497
        %v3532 = vunpack.c.l.b16 %v3464
        %v3533 = vunpack.c.l.b16 %v3465
        %v3534 = vunpack.c.l.b16 %v3466
        %v3535 = vunpack.c.l.b16 %v3467
        %v3536 = vunpack.c.l.b16 %v3468
        %v3537 = vunpack.c.l.b16 %v3469
        %v3538 = vunpack.c.l.b16 %v3470
        %v3539 = vunpack.c.l.b16 %v3471
        %v3540 = vunpack.c.l.b16 %v3472
        %v3541 = vunpack.c.l.b16 %v3473
        %v3542 = vunpack.c.l.b16 %v3474
        %v3543 = vunpack.c.l.b16 %v3475
        %v3544 = vunpack.c.l.b16 %v3476
        %v3545 = vunpack.c.l.b16 %v3477
        %v3546 = vunpack.c.l.b16 %v3478
        %v3547 = vunpack.c.l.b16 %v3479
        %v3548 = vunpack.c.l.b16 %v3480
        %v3549 = vunpack.c.l.b16 %v3481
        %v3550 = vunpack.c.l.b16 %v3482
        %v3551 = vunpack.c.l.b16 %v3483
        %v3552 = vunpack.c.l.b16 %v3484
        %v3553 = vunpack.c.l.b16 %v3485
        %v3554 = vunpack.c.l.b16 %v3486
        %v3555 = vunpack.c.l.b16 %v3487
        %v3556 = vunpack.c.l.b16 %v3488
        %v3557 = vunpack.c.l.b16 %v3489
        %v3558 = vunpack.c.l.b16 %v3490
        %v3559 = vunpack.c.l.b16 %v3491
        %v3560 = vunpack.c.l.b16 %v3492
        %v3561 = vunpack.c.l.b16 %v3493
        %v3562 = vunpack.c.l.b16 %v3494
        %v3563 = vunpack.c.l.b16 %v3495
        %v3564 = vpack.c.b16 %v3533, %v3532
        %v3565 = vpack.c.b16 %v3535, %v3534
        %v3566 = vpack.c.b16 %v3537, %v3536
        %v3567 = vpack.c.b16 %v3539, %v3538
        %v3568 = vpack.c.b16 %v3541, %v3540
        %v3569 = vpack.c.b16 %v3543, %v3542
        %v3570 = vpack.c.b16 %v3545, %v3544
        %v3571 = vpack.c.b16 %v3547, %v3546
        %v3572 = vpack.c.b16 %v3549, %v3548
        %v3573 = vpack.c.b16 %v3551, %v3550
        %v3574 = vpack.c.b16 %v3553, %v3552
        %v3575 = vpack.c.b16 %v3555, %v3554
        %v3576 = vpack.c.b16 %v3557, %v3556
        %v3577 = vpack.c.b16 %v3559, %v3558
        %v3578 = vpack.c.b16 %v3561, %v3560
        %v3579 = vpack.c.b16 %v3563, %v3562
        %3596 = vmatprep.subr.bf16.mxu0 0
        %3597 = vmatpush1.bf16.msra.mxu0 %v3564
        %3598 = vmatprep.subr.bf16.mxu0 0
        %3599 = vmatpush1.bf16.msra.mxu0 %v3565
        %3600 = vmatprep.subr.bf16.mxu0 0
        %3601 = vmatpush1.bf16.msra.mxu0 %v3566
        %3602 = vmatprep.subr.bf16.mxu0 0
        %3603 = vmatpush1.bf16.msra.mxu0 %v3567
        %3604 = vmatprep.subr.bf16.mxu0 0
        %3605 = vmatpush1.bf16.msra.mxu0 %v3568
        %3606 = vmatprep.subr.bf16.mxu0 0
        %3607 = vmatpush1.bf16.msra.mxu0 %v3569
        %3608 = vmatprep.subr.bf16.mxu0 0
        %3609 = vmatpush1.bf16.msra.mxu0 %v3570
        %3610 = vmatprep.subr.bf16.mxu0 0
        %3611 = vmatpush1.bf16.msra.mxu0 %v3571
        %3612 = vmatprep.subr.bf16.mxu0 0
        %3613 = vmatpush1.bf16.msra.mxu0 %v3572
        %3614 = vmatprep.subr.bf16.mxu0 0
        %3615 = vmatpush1.bf16.msra.mxu0 %v3573
        %3616 = vmatprep.subr.bf16.mxu0 0
        %3617 = vmatpush1.bf16.msra.mxu0 %v3574
        %3618 = vmatprep.subr.bf16.mxu0 0
        %3619 = vmatpush1.bf16.msra.mxu0 %v3575
        %3620 = vmatprep.subr.bf16.mxu0 0
        %3621 = vmatpush1.bf16.msra.mxu0 %v3576
        %3622 = vmatprep.subr.bf16.mxu0 0
        %3623 = vmatpush1.bf16.msra.mxu0 %v3577
        %3624 = vmatprep.subr.bf16.mxu0 0
        %3625 = vmatpush1.bf16.msra.mxu0 %v3578
        %3626 = vmatprep.subr.bf16.mxu0 0
        %3627 = vmatpush1.bf16.msra.mxu0 %v3579
        %3628 = vmatprep.mubr.bf16.mxu0 %v487
        %3629 = vmatmul.mubr.bf16.gmra.mrb[0].mxu0 %v486
        %v3630 = vpop.f32.mrb[0].mxu0
        %v3631 = vadd.f32 %v3498, %v3630
        %v3632 = vpop.f32.mrb[0].mxu0
        %v3633 = vpop.f32.mrb[0].mxu0
        %v3634 = vpop.f32.mrb[0].mxu0
        %3635 = vdwg.mxu0
        %v3636 = vlaneseq
        %v3637 = vshrl.u32 %v3636, 7
        %v3638 = vsub.s32 6, %v3637
        %v3639 = vrot.slane %v698, %v3638
        %v3640 = vmul.f32 %v3639, %v3631
        %v3641 = vadd.f32 %v3444, %v3640
        %v3642 = vlaneseq
        %v3643 = vshrl.u32 %v3642, 7
        %v3644 = vsub.s32 6, %v3643
        %v3645 = vrot.slane %v700, %v3644
        %v3646 = vmul.f32 %v3645, %v3631
        %v3647 = vadd.f32 %v3450, %v3646
        %v3648 = vlaneseq
        %v3649 = vshrl.u32 %v3648, 7
        %v3650 = vsub.s32 6, %v3649
        %v3651 = vrot.slane %v702, %v3650
        %v3652 = vmul.f32 %v3651, %v3631
        %v3653 = vadd.f32 %v3456, %v3652
        %v3654 = vlaneseq
        %v3655 = vshrl.u32 %v3654, 7
        %v3656 = vsub.s32 6, %v3655
        %v3657 = vrot.slane %v704, %v3656
        %v3658 = vmul.f32 %v3657, %v3631
        %v3659 = vadd.f32 %v3462, %v3658
        %s3660 = scalar_lea.vmem %s410, 1920 [#allocation4]
        %v3661 = vld [vmem:[%s3660] sm:$0xf]
        %v3662 = vld [vmem:[%s3660 + $0x4] sm:$0xf]
        %v3663 = vld [vmem:[%s3660 + $0x8] sm:$0xf]
        %v3664 = vld [vmem:[%s3660 + $0xc] sm:$0xf]
        %v3665 = vld [vmem:[%s3660 + $0x10] sm:$0xf]
        %v3666 = vld [vmem:[%s3660 + $0x14] sm:$0xf]
        %v3667 = vld [vmem:[%s3660 + $0x18] sm:$0xf]
        %v3668 = vld [vmem:[%s3660 + $0x1c] sm:$0xf]
        %v3669 = vld [vmem:[%s3660 + $0x20] sm:$0xf]
        %v3670 = vld [vmem:[%s3660 + $0x24] sm:$0xf]
        %v3671 = vld [vmem:[%s3660 + $0x28] sm:$0xf]
        %v3672 = vld [vmem:[%s3660 + $0x2c] sm:$0xf]
        %v3673 = vld [vmem:[%s3660 + $0x30] sm:$0xf]
        %v3674 = vld [vmem:[%s3660 + $0x34] sm:$0xf]
        %v3675 = vld [vmem:[%s3660 + $0x38] sm:$0xf]
        %v3676 = vld [vmem:[%s3660 + $0x3c] sm:$0xf]
        %v3677 = vld [vmem:[%s3660 + $0x40] sm:$0xf]
        %v3678 = vld [vmem:[%s3660 + $0x44] sm:$0xf]
        %v3679 = vld [vmem:[%s3660 + $0x48] sm:$0xf]
        %v3680 = vld [vmem:[%s3660 + $0x4c] sm:$0xf]
        %v3681 = vld [vmem:[%s3660 + $0x50] sm:$0xf]
        %v3682 = vld [vmem:[%s3660 + $0x54] sm:$0xf]
        %v3683 = vld [vmem:[%s3660 + $0x58] sm:$0xf]
        %v3684 = vld [vmem:[%s3660 + $0x5c] sm:$0xf]
        %v3685 = vld [vmem:[%s3660 + $0x60] sm:$0xf]
        %v3686 = vld [vmem:[%s3660 + $0x64] sm:$0xf]
        %v3687 = vld [vmem:[%s3660 + $0x68] sm:$0xf]
        %v3688 = vld [vmem:[%s3660 + $0x6c] sm:$0xf]
        %v3689 = vld [vmem:[%s3660 + $0x70] sm:$0xf]
        %v3690 = vld [vmem:[%s3660 + $0x74] sm:$0xf]
        %v3691 = vld [vmem:[%s3660 + $0x78] sm:$0xf]
        %v3692 = vld [vmem:[%s3660 + $0x7c] sm:$0xf]
        %3693 = vset.pattern.permute.xlu0 15
        %3694 = vperm.xlu0 %3693, %v576
        %v3695 = vpop.permute.xlu0 %3694
        %v3729 = vunpack.c.l.b16 %v3661
        %v3730 = vunpack.c.l.b16 %v3662
        %v3731 = vunpack.c.l.b16 %v3663
        %v3732 = vunpack.c.l.b16 %v3664
        %v3733 = vunpack.c.l.b16 %v3665
        %v3734 = vunpack.c.l.b16 %v3666
        %v3735 = vunpack.c.l.b16 %v3667
        %v3736 = vunpack.c.l.b16 %v3668
        %v3737 = vunpack.c.l.b16 %v3669
        %v3738 = vunpack.c.l.b16 %v3670
        %v3739 = vunpack.c.l.b16 %v3671
        %v3740 = vunpack.c.l.b16 %v3672
        %v3741 = vunpack.c.l.b16 %v3673
        %v3742 = vunpack.c.l.b16 %v3674
        %v3743 = vunpack.c.l.b16 %v3675
        %v3744 = vunpack.c.l.b16 %v3676
        %v3745 = vunpack.c.l.b16 %v3677
        %v3746 = vunpack.c.l.b16 %v3678
        %v3747 = vunpack.c.l.b16 %v3679
        %v3748 = vunpack.c.l.b16 %v3680
        %v3749 = vunpack.c.l.b16 %v3681
        %v3750 = vunpack.c.l.b16 %v3682
        %v3751 = vunpack.c.l.b16 %v3683
        %v3752 = vunpack.c.l.b16 %v3684
        %v3753 = vunpack.c.l.b16 %v3685
        %v3754 = vunpack.c.l.b16 %v3686
        %v3755 = vunpack.c.l.b16 %v3687
        %v3756 = vunpack.c.l.b16 %v3688
        %v3757 = vunpack.c.l.b16 %v3689
        %v3758 = vunpack.c.l.b16 %v3690
        %v3759 = vunpack.c.l.b16 %v3691
        %v3760 = vunpack.c.l.b16 %v3692
        %v3761 = vpack.c.b16 %v3730, %v3729
        %v3762 = vpack.c.b16 %v3732, %v3731
        %v3763 = vpack.c.b16 %v3734, %v3733
        %v3764 = vpack.c.b16 %v3736, %v3735
        %v3765 = vpack.c.b16 %v3738, %v3737
        %v3766 = vpack.c.b16 %v3740, %v3739
        %v3767 = vpack.c.b16 %v3742, %v3741
        %v3768 = vpack.c.b16 %v3744, %v3743
        %v3769 = vpack.c.b16 %v3746, %v3745
        %v3770 = vpack.c.b16 %v3748, %v3747
        %v3771 = vpack.c.b16 %v3750, %v3749
        %v3772 = vpack.c.b16 %v3752, %v3751
        %v3773 = vpack.c.b16 %v3754, %v3753
        %v3774 = vpack.c.b16 %v3756, %v3755
        %v3775 = vpack.c.b16 %v3758, %v3757
        %v3776 = vpack.c.b16 %v3760, %v3759
        %3793 = vmatprep.subr.bf16.mxu0 0
        %3794 = vmatpush1.bf16.msra.mxu0 %v3761
        %3795 = vmatprep.subr.bf16.mxu0 0
        %3796 = vmatpush1.bf16.msra.mxu0 %v3762
        %3797 = vmatprep.subr.bf16.mxu0 0
        %3798 = vmatpush1.bf16.msra.mxu0 %v3763
        %3799 = vmatprep.subr.bf16.mxu0 0
        %3800 = vmatpush1.bf16.msra.mxu0 %v3764
        %3801 = vmatprep.subr.bf16.mxu0 0
        %3802 = vmatpush1.bf16.msra.mxu0 %v3765
        %3803 = vmatprep.subr.bf16.mxu0 0
        %3804 = vmatpush1.bf16.msra.mxu0 %v3766
        %3805 = vmatprep.subr.bf16.mxu0 0
        %3806 = vmatpush1.bf16.msra.mxu0 %v3767
        %3807 = vmatprep.subr.bf16.mxu0 0
        %3808 = vmatpush1.bf16.msra.mxu0 %v3768
        %3809 = vmatprep.subr.bf16.mxu0 0
        %3810 = vmatpush1.bf16.msra.mxu0 %v3769
        %3811 = vmatprep.subr.bf16.mxu0 0
        %3812 = vmatpush1.bf16.msra.mxu0 %v3770
        %3813 = vmatprep.subr.bf16.mxu0 0
        %3814 = vmatpush1.bf16.msra.mxu0 %v3771
        %3815 = vmatprep.subr.bf16.mxu0 0
        %3816 = vmatpush1.bf16.msra.mxu0 %v3772
        %3817 = vmatprep.subr.bf16.mxu0 0
        %3818 = vmatpush1.bf16.msra.mxu0 %v3773
        %3819 = vmatprep.subr.bf16.mxu0 0
        %3820 = vmatpush1.bf16.msra.mxu0 %v3774
        %3821 = vmatprep.subr.bf16.mxu0 0
        %3822 = vmatpush1.bf16.msra.mxu0 %v3775
        %3823 = vmatprep.subr.bf16.mxu0 0
        %3824 = vmatpush1.bf16.msra.mxu0 %v3776
        %3825 = vmatprep.mubr.bf16.mxu0 %v487
        %3826 = vmatmul.mubr.bf16.gmra.mrb[0].mxu0 %v486
        %v3827 = vpop.f32.mrb[0].mxu0
        %v3828 = vadd.f32 %v3695, %v3827
        %v3829 = vpop.f32.mrb[0].mxu0
        %v3830 = vpop.f32.mrb[0].mxu0
        %v3831 = vpop.f32.mrb[0].mxu0
        %3832 = vdwg.mxu0
        %v3833 = vlaneseq
        %v3834 = vshrl.u32 %v3833, 7
        %v3835 = vsub.s32 7, %v3834
        %v3836 = vrot.slane %v698, %v3835
        %v3837 = vmul.f32 %v3836, %v3828
        %v3838 = vadd.f32 %v3641, %v3837
        %v3839 = vlaneseq
        %v3840 = vshrl.u32 %v3839, 7
        %v3841 = vsub.s32 7, %v3840
        %v3842 = vrot.slane %v700, %v3841
        %v3843 = vmul.f32 %v3842, %v3828
        %v3844 = vadd.f32 %v3647, %v3843
        %v3845 = vlaneseq
        %v3846 = vshrl.u32 %v3845, 7
        %v3847 = vsub.s32 7, %v3846
        %v3848 = vrot.slane %v702, %v3847
        %v3849 = vmul.f32 %v3848, %v3828
        %v3850 = vadd.f32 %v3653, %v3849
        %v3851 = vlaneseq
        %v3852 = vshrl.u32 %v3851, 7
        %v3853 = vsub.s32 7, %v3852
        %v3854 = vrot.slane %v704, %v3853
        %v3855 = vmul.f32 %v3854, %v3828
        %v3856 = vadd.f32 %v3659, %v3855
        %3857 = vst [vmem:[%s455] sm:$0xff] %v3838
        %3858 = vst [vmem:[%s455 + $0x8] sm:$0xff] %v3844
        %3859 = vst [vmem:[%s455 + $0x10] sm:$0xff] %v3850
        %3860 = vst [vmem:[%s455 + $0x18] sm:$0xff] %v3856
        %s3861 = sand.u32 %s234, 1
        %s3862 = sand.u32 %s234, 1
        %s3863 = smul.addr %s3862, 32
        %s3864 = scalar_lea.vmem [#allocation6], %s3863
        // Predicated region
        $region102: #{lambda_layer_forward.3} parent=88 // pred_check
          %p3865 = pneg %p244
        $region103: #{lambda_layer_forward.3} parent=88 // pred_check_branch
          %3867 = sbr.rel (%p3865) target = $region105
        $region104: #{lambda_layer_forward.3} parent=88 // pred_region
          %s3868 = smul.addr %s27, 8
          %s3869 = sadd.s32 %s26, %s3868
          %s3870 = smul.addr %s3869, 8
          %s3871 = scalar_lea.vmem %s8, %s3870
          // Predicated region
          $region106: #{lambda_layer_forward.3} parent=104 // pred_check
            _
          $region107: #{lambda_layer_forward.3} parent=104 // pred_check_branch
            %3873 = sbr.rel (0) target = $region109
          $region108: #{lambda_layer_forward.3} parent=104 // pred_region
            // Predicated region
            $region110: #{lambda_layer_forward.3} parent=108 // pred_check
              _
            $region111: #{lambda_layer_forward.3} parent=108 // pred_check_branch
              %3875 = sbr.rel (0) target = $region113
            $region112: #{lambda_layer_forward.3} parent=108 // pred_region
              // Predicated region
              $region125: #{lambda_layer_forward.3} parent=112 // pred_check
                _
              $region126: #{lambda_layer_forward.3} parent=112 // pred_check_branch
                %3896 = sbr.rel (0) target = $region128
              $region127: #{lambda_layer_forward.3} parent=112 // pred_region
                loop: start=0, step=1, limit=1
                $region129: #{lambda_layer_forward.3} parent=127 // loop_pre_header
                  _
                $region130: #{lambda_layer_forward.3} parent=127 // loop_header
                  %s3898 = sphi 0, %s3902
                  %p3899 = scmp.ge.s32.totalorder %s3898, 1
                  %s3903 = sphi %s3864, %s3864
                  %s3904 = sphi %s3871, %s3871
                $region131: #{lambda_layer_forward.3} parent=127 // loop_header_branch
                  %3901 = sbr.rel (%p3899) target = $region135
                $region132: #{lambda_layer_forward.3} parent=127 // loop_body
                  %v3905 = vld [vmem:[%s3903] sm:$0xff]
                  %3906 = vst [vmem:[%s3904] sm:$0xff] %v3905
                  %v3907 = vld [vmem:[%s3903 + $0x8] sm:$0xff]
                  %3908 = vst [vmem:[%s3904 + $0x10] sm:$0xff] %v3907
                  %v3909 = vld [vmem:[%s3903 + $0x10] sm:$0xff]
                  %3910 = vst [vmem:[%s3904 + $0x20] sm:$0xff] %v3909
                  %v3911 = vld [vmem:[%s3903 + $0x18] sm:$0xff]
                  %3912 = vst [vmem:[%s3904 + $0x30] sm:$0xff] %v3911
                $region133: #{lambda_layer_forward.3} parent=127 // loop_footer
                  %s3902 = sadd.s32 1, %s3898
                $region134: #{lambda_layer_forward.3} parent=127 // loop_footer_branch
                  %3897 = sbr.rel target = $region130
                $region135: #{lambda_layer_forward.3} parent=127 // loop_exit
                  _
              $region128: #{lambda_layer_forward.3} parent=112 // pred_fallthru
                _
              // Predicated region
              $region136: #{lambda_layer_forward.3} parent=112 // pred_check
                _
              $region137: #{lambda_layer_forward.3} parent=112 // pred_check_branch
                %3914 = sbr.rel target = $region139
              $region138: #{lambda_layer_forward.3} parent=112 // pred_region
                _
              $region139: #{lambda_layer_forward.3} parent=112 // pred_fallthru
                _
            $region113: #{lambda_layer_forward.3} parent=108 // pred_fallthru
              _
            // Predicated region
            $region114: #{lambda_layer_forward.3} parent=108 // pred_check
              _
            $region115: #{lambda_layer_forward.3} parent=108 // pred_check_branch
              %3877 = sbr.rel target = $region117
            $region116: #{lambda_layer_forward.3} parent=108 // pred_region
              loop: start=0, step=1, limit=1
              $region118: #{lambda_layer_forward.3} parent=116 // loop_pre_header
                _
              $region119: #{lambda_layer_forward.3} parent=116 // loop_header
                %s3880 = sphi 0, %s3884
                %p3881 = scmp.ge.s32.totalorder %s3880, 1
                %s3885 = sphi %s3864, %s3864
                %s3886 = sphi %s3871, %s3871
              $region120: #{lambda_layer_forward.3} parent=116 // loop_header_branch
                %3883 = sbr.rel (%p3881) target = $region124
              $region121: #{lambda_layer_forward.3} parent=116 // loop_body
                %v3887 = vld [vmem:[%s3885] sm:$0xff]
                %3888 = vst [vmem:[%s3886] sm:$0xff] %v3887
                %v3889 = vld [vmem:[%s3885 + $0x8] sm:$0xff]
                %3890 = vst [vmem:[%s3886 + $0x10] sm:$0xff] %v3889
                %v3891 = vld [vmem:[%s3885 + $0x10] sm:$0xff]
                %3892 = vst [vmem:[%s3886 + $0x20] sm:$0xff] %v3891
                %v3893 = vld [vmem:[%s3885 + $0x18] sm:$0xff]
                %3894 = vst [vmem:[%s3886 + $0x30] sm:$0xff] %v3893
              $region122: #{lambda_layer_forward.3} parent=116 // loop_footer
                %s3884 = sadd.s32 1, %s3880
              $region123: #{lambda_layer_forward.3} parent=116 // loop_footer_branch
                %3879 = sbr.rel target = $region119
              $region124: #{lambda_layer_forward.3} parent=116 // loop_exit
                _
            $region117: #{lambda_layer_forward.3} parent=108 // pred_fallthru
              _
          $region109: #{lambda_layer_forward.3} parent=104 // pred_fallthru
            _
          %3915 = vnop
        $region105: #{lambda_layer_forward.3} parent=88 // pred_fallthru
          _
      $region89: #{lambda_layer_forward.3} parent=5 // pred_fallthru
        _
      %p3916 = scmp.le.s32.totalorder 2, %s17
      // Predicated region
      $region140: #{lambda_layer_forward.3} parent=5 // pred_check
        %p3917 = pneg %p3916
      $region141: #{lambda_layer_forward.3} parent=5 // pred_check_branch
        %3919 = sbr.rel (%p3917) target = $region143
      $region142: #{lambda_layer_forward.3} parent=5 // pred_region
        %s3920 = ssub.s32 %s17, 2
        // Predicated region
        $region144: #{lambda_layer_forward.3} parent=142 // pred_check
          %p3921 = pneg %p250
        $region145: #{lambda_layer_forward.3} parent=142 // pred_check_branch
          %3923 = sbr.rel (%p3921) target = $region147
        $region146: #{lambda_layer_forward.3} parent=142 // pred_region
          %s3924 = sand.u32 %s235, 1
          %s3925 = sand.u32 %s235, 1
          %s3926 = smul.addr %s3925, 32
          %s3927 = scalar_lea.vmem [#allocation6], %s3926
        $region147: #{lambda_layer_forward.3} parent=142 // pred_fallthru
          _
      $region143: #{lambda_layer_forward.3} parent=5 // pred_fallthru
        _
    $region6: #{lambda_layer_forward.3} parent=1 // loop_footer
      %s21 = sadd.s32 1, %s17
    $region7: #{lambda_layer_forward.3} parent=1 // loop_footer_branch
      %16 = sbr.rel target = $region3
    $region8: #{lambda_layer_forward.3} parent=1 // loop_exit
      _
    %3928 = vsyncpa [#allocation5], 1
    %s3929 = scalar_lea.sflag [#allocation5], 1
    %3930 = vsyncpa %s3929, 1

</llo_original>
